<compile_context>
chip_gen: v6e
topology: v6e:2x2x1
jax: 0.10.0
libtpu: 0.0.40
codegen_flags: <defaults>
</compile_context>

<pallas_src>
import jax
import jax.numpy as jnp
from jax.experimental import pallas as pl
from jax.experimental.pallas import tpu as pltpu

# Small shapes consistent with the module's forward (z is (seq, dim)).
SEQ = 8          # tokens per sequence
DIM = 32         # model dim
HEADS = 4
DH = DIM // HEADS
BATCH = 8        # independent sequences (batched MultiHeadAttention.forward)
BLK_B = 4        # sequences processed per grid step


def mha_kernel(x_ref, w_ref, b_ref, out_ref):
    blk_b, seq, dim = x_ref.shape
    rows = blk_b * seq

    x2 = x_ref[...].reshape(rows, dim).astype(jnp.float32)      # (rows, dim)
    w = w_ref[...]                                               # (dim, 4*dim) = [Wq|Wk|Wv|Wp]
    b = b_ref[...]                                               # (1, 4*dim)
    w_qkv, wp = w[:, : 3 * dim], w[:, 3 * dim:]
    b_qkv, bp = b[:, : 3 * dim], b[:, 3 * dim:]

    # Fused Q|K|V projection (1/sqrt(dh) already folded into the Q columns).
    qkv2 = jnp.dot(x2, w_qkv, preferred_element_type=jnp.float32) + b_qkv
    qkv = qkv2.reshape(blk_b, seq, 3 * dim)

    acc = jnp.zeros((rows, dim), jnp.float32)
    for h in range(HEADS):                                       # static unroll
        lo = h * DH
        qh = qkv[:, :, lo:lo + DH]                               # (B, S, DH)
        kh = qkv[:, :, dim + lo:dim + lo + DH]
        vh = qkv[:, :, 2 * dim + lo:2 * dim + lo + DH]

        # scores: batched contraction over DH (no explicit k^T materialization)
        s = jax.lax.dot_general(qh, kh, (((2,), (2,)), ((0,), (0,))),
                                preferred_element_type=jnp.float32)   # (B, S, S)
        a = jax.nn.softmax(s, axis=-1)          # F.softmax on 2-D scores -> last dim
        ho = jax.lax.dot_general(a, vh, (((2,), (1,)), ((0,), (0,))),
                                 preferred_element_type=jnp.float32)  # (B, S, DH)

        # accumulate this head's contribution through its slice of Wp
        # (replaces the lane-axis concat of head outputs).
        acc = acc + jnp.dot(ho.reshape(rows, DH), wp[lo:lo + DH, :],
                            preferred_element_type=jnp.float32)

    out_ref[...] = (acc + bp).reshape(blk_b, seq, dim).astype(out_ref.dtype)


def mha_forward(x, w_slab, b_slab, *, blk_b=BLK_B):
    batch, seq, dim = x.shape
    assert batch % blk_b == 0
    grid = (batch // blk_b,)
    return pl.pallas_call(
        mha_kernel,
        out_shape=jax.ShapeDtypeStruct(x.shape, x.dtype),
        grid_spec=pltpu.PrefetchScalarGridSpec(
            num_scalar_prefetch=0,
            grid=grid,
            in_specs=[
                pl.BlockSpec((blk_b, seq, dim), lambda i: (i, 0, 0)),
                pl.BlockSpec((dim, 4 * dim), lambda i: (0, 0)),   # weight slab (resident)
                pl.BlockSpec((1, 4 * dim), lambda i: (0, 0)),     # bias slab (resident)
            ],
            out_specs=pl.BlockSpec((blk_b, seq, dim), lambda i: (i, 0, 0)),
        ),
        compiler_params=pltpu.CompilerParams(
            dimension_semantics=("parallel",)),                   # megacore on v7x
    )(x, w_slab, b_slab)


def make_params(key):
    """Per-head q/k/v Linear weights (already transposed to (in, out)) + projection."""
    ks = jax.random.split(key, 6 * HEADS + 2)
    p = {"wq": [], "bq": [], "wk": [], "bk": [], "wv": [], "bv": []}
    i = 0
    for _ in range(HEADS):
        for name, shape in (("wq", (DIM, DH)), ("bq", (DH,)),
                            ("wk", (DIM, DH)), ("bk", (DH,)),
                            ("wv", (DIM, DH)), ("bv", (DH,))):
            p[name].append(0.1 * jax.random.normal(ks[i], shape, jnp.float32))
            i += 1
    p["wp"] = 0.1 * jax.random.normal(ks[i], (DIM, DIM), jnp.float32); i += 1
    p["bp"] = 0.1 * jax.random.normal(ks[i], (DIM,), jnp.float32)
    return p


def pack_params(p):
    """Pack everything into one lane-dense weight slab + one bias row.

    Head h's q/k/v weights occupy columns [h*DH:(h+1)*DH] of each dim-wide block;
    the 1/sqrt(DH) attention scale is folded into the Q block.
    """
    scale = 1.0 / (DH ** 0.5)
    wq = jnp.concatenate(p["wq"], axis=1) * scale       # (DIM, DIM)
    wk = jnp.concatenate(p["wk"], axis=1)
    wv = jnp.concatenate(p["wv"], axis=1)
    bq = jnp.concatenate(p["bq"], axis=0) * scale       # (DIM,)
    bk = jnp.concatenate(p["bk"], axis=0)
    bv = jnp.concatenate(p["bv"], axis=0)
    w_slab = jnp.concatenate([wq, wk, wv, p["wp"]], axis=1)            # (DIM, 4*DIM)
    b_slab = jnp.concatenate([bq, bk, bv, p["bp"]])[None, :]           # (1, 4*DIM)
    return w_slab, b_slab


def mha_reference(x, p):
    """Pure-JAX reference mirroring MultiHeadAttention.forward per sequence."""
    def one_seq(z):                                   # z: (SEQ, DIM)
        outs = []
        for h in range(HEADS):
            q = z @ p["wq"][h] + p["bq"][h]
            k = z @ p["wk"][h] + p["bk"][h]
            v = z @ p["wv"][h] + p["bv"][h]
            s = (q @ k.T) / (DH ** 0.5)
            outs.append(jax.nn.softmax(s, axis=-1) @ v)   # F.softmax -> last dim on 2-D
        out = jnp.concatenate(outs, axis=1)               # torch.cat(axis=1)
        return out @ p["wp"] + p["bp"]
    return jax.vmap(one_seq)(x)


if __name__ == "__main__":
    key = jax.random.PRNGKey(0)
    kx, kp = jax.random.split(key)
    x = jax.random.normal(kx, (BATCH, SEQ, DIM), jnp.float32)
    params = make_params(kp)
    w_slab, b_slab = pack_params(params)

    out = mha_forward(x, w_slab, b_slab)
    out = jax.block_until_ready(out)

    ref = mha_reference(x, params)
    assert out.shape == (BATCH, SEQ, DIM)
    assert jnp.allclose(out, ref, atol=1e-4, rtol=1e-4), "mismatch vs reference"
    print("KERNEL_OK")
</pallas_src>

<mosaic_0001>
module attributes {stable_mosaic.version = 11 : i64} {
  func.func @mha_kernel(%arg0: i32, %arg1: memref<4x8x32xf32, #tpu.memory_space<vmem>>, %arg2: memref<32x128xf32, #tpu.memory_space<vmem>>, %arg3: memref<1x128xf32, #tpu.memory_space<vmem>>, %arg4: memref<4x8x32xf32, #tpu.memory_space<vmem>>) attributes {dimension_semantics = [#tpu.dimension_semantics<parallel>], iteration_bounds = array<i64: 2>, scalar_prefetch = 0 : i64, scratch_operands = 0 : i64, tpu.core_type = #tpu.core_type<tc>, window_params = [{transform_indices = @transform_0, window_bounds = array<i64: 4, 8, 32>}, {pipeline_mode = #tpu.pipeline_mode<synchronous>, transform_indices = @transform_1, window_bounds = array<i64: 32, 128>}, {pipeline_mode = #tpu.pipeline_mode<synchronous>, transform_indices = @transform_2, window_bounds = array<i64: 1, 128>}, {transform_indices = @transform_3, window_bounds = array<i64: 4, 8, 32>}]} {
    %c0 = arith.constant 0 : index
    %c0_0 = arith.constant 0 : index
    %c0_1 = arith.constant 0 : index
    %0 = vector.load %arg1[%c0, %c0_0, %c0_1] : memref<4x8x32xf32, #tpu.memory_space<vmem>>, vector<4x8x32xf32>
    %1 = vector.shape_cast %0 : vector<4x8x32xf32> to vector<32x32xf32>
    %c0_2 = arith.constant 0 : index
    %c0_3 = arith.constant 0 : index
    %2 = vector.load %arg2[%c0_2, %c0_3] : memref<32x128xf32, #tpu.memory_space<vmem>>, vector<32x128xf32>
    %c0_4 = arith.constant 0 : index
    %c0_5 = arith.constant 0 : index
    %3 = vector.load %arg3[%c0_4, %c0_5] : memref<1x128xf32, #tpu.memory_space<vmem>>, vector<1x128xf32>
    %4 = vector.extract_strided_slice %2 {offsets = [0, 0], sizes = [32, 96], strides = [1, 1]} : vector<32x128xf32> to vector<32x96xf32>
    %5 = vector.extract_strided_slice %2 {offsets = [0, 96], sizes = [32, 32], strides = [1, 1]} : vector<32x128xf32> to vector<32x32xf32>
    %6 = vector.extract_strided_slice %3 {offsets = [0, 0], sizes = [1, 96], strides = [1, 1]} : vector<1x128xf32> to vector<1x96xf32>
    %7 = vector.extract_strided_slice %3 {offsets = [0, 96], sizes = [1, 32], strides = [1, 1]} : vector<1x128xf32> to vector<1x32xf32>
    %cst = arith.constant dense<0.000000e+00> : vector<32x96xf32>
    %8 = tpu.matmul %1, %4, %cst {dimension_numbers = #tpu.dot_dimension_numbers<[1], [0], [0], [1], [0, 0, 1, 1], [], []>} : vector<32x32xf32>, vector<32x96xf32>, vector<32x96xf32> -> vector<32x96xf32>
    %9 = vector.broadcast %6 : vector<1x96xf32> to vector<32x96xf32>
    %10 = arith.addf %8, %9 : vector<32x96xf32>
    %11 = vector.shape_cast %10 : vector<32x96xf32> to vector<4x8x96xf32>
    %cst_6 = arith.constant 0.000000e+00 : f32
    %12 = vector.broadcast %cst_6 : f32 to vector<32x32xf32>
    %13 = vector.extract_strided_slice %11 {offsets = [0, 0, 0], sizes = [4, 8, 8], strides = [1, 1, 1]} : vector<4x8x96xf32> to vector<4x8x8xf32>
    %14 = vector.extract_strided_slice %11 {offsets = [0, 0, 32], sizes = [4, 8, 8], strides = [1, 1, 1]} : vector<4x8x96xf32> to vector<4x8x8xf32>
    %15 = vector.extract_strided_slice %11 {offsets = [0, 0, 64], sizes = [4, 8, 8], strides = [1, 1, 1]} : vector<4x8x96xf32> to vector<4x8x8xf32>
    %cst_7 = arith.constant dense<0.000000e+00> : vector<4x8x8xf32>
    %16 = tpu.matmul %13, %14, %cst_7 {dimension_numbers = #tpu.dot_dimension_numbers<[2], [2], [1], [1], [0, 0, 0, 1, 1, 1], [0], [0]>} : vector<4x8x8xf32>, vector<4x8x8xf32>, vector<4x8x8xf32> -> vector<4x8x8xf32>
    %cst_8 = arith.constant dense<0xFF800000> : vector<4x8xf32>
    %17 = vector.multi_reduction <maximumf>, %16, %cst_8 [2] : vector<4x8x8xf32> to vector<4x8xf32>
    %cst_9 = arith.constant 0xFF800000 : f32
    %18 = vector.broadcast %cst_9 : f32 to vector<4x8xf32>
    %19 = arith.maximumf %18, %17 : vector<4x8xf32>
    %20 = vector.shape_cast %19 : vector<4x8xf32> to vector<4x8x1xf32>
    %21 = vector.broadcast %20 : vector<4x8x1xf32> to vector<4x8x8xf32>
    %22 = arith.subf %16, %21 : vector<4x8x8xf32>
    %23 = math.exp %22 : vector<4x8x8xf32>
    %cst_10 = arith.constant dense<0.000000e+00> : vector<4x8xf32>
    %24 = vector.multi_reduction <add>, %23, %cst_10 [2] : vector<4x8x8xf32> to vector<4x8xf32>
    %25 = vector.shape_cast %24 : vector<4x8xf32> to vector<4x8x1xf32>
    %26 = vector.broadcast %25 : vector<4x8x1xf32> to vector<4x8x8xf32>
    %27 = arith.divf %23, %26 : vector<4x8x8xf32>
    %cst_11 = arith.constant dense<0.000000e+00> : vector<4x8x8xf32>
    %28 = tpu.matmul %27, %15, %cst_11 {dimension_numbers = #tpu.dot_dimension_numbers<[2], [1], [1], [2], [0, 0, 0, 1, 1, 2], [0], [0]>} : vector<4x8x8xf32>, vector<4x8x8xf32>, vector<4x8x8xf32> -> vector<4x8x8xf32>
    %29 = vector.shape_cast %28 : vector<4x8x8xf32> to vector<32x8xf32>
    %30 = vector.extract_strided_slice %5 {offsets = [0, 0], sizes = [8, 32], strides = [1, 1]} : vector<32x32xf32> to vector<8x32xf32>
    %cst_12 = arith.constant dense<0.000000e+00> : vector<32x32xf32>
    %31 = tpu.matmul %29, %30, %cst_12 {dimension_numbers = #tpu.dot_dimension_numbers<[1], [0], [0], [1], [0, 0, 1, 1], [], []>} : vector<32x8xf32>, vector<8x32xf32>, vector<32x32xf32> -> vector<32x32xf32>
    %32 = arith.addf %12, %31 : vector<32x32xf32>
    %33 = vector.extract_strided_slice %11 {offsets = [0, 0, 8], sizes = [4, 8, 8], strides = [1, 1, 1]} : vector<4x8x96xf32> to vector<4x8x8xf32>
    %34 = vector.extract_strided_slice %11 {offsets = [0, 0, 40], sizes = [4, 8, 8], strides = [1, 1, 1]} : vector<4x8x96xf32> to vector<4x8x8xf32>
    %35 = vector.extract_strided_slice %11 {offsets = [0, 0, 72], sizes = [4, 8, 8], strides = [1, 1, 1]} : vector<4x8x96xf32> to vector<4x8x8xf32>
    %cst_13 = arith.constant dense<0.000000e+00> : vector<4x8x8xf32>
    %36 = tpu.matmul %33, %34, %cst_13 {dimension_numbers = #tpu.dot_dimension_numbers<[2], [2], [1], [1], [0, 0, 0, 1, 1, 1], [0], [0]>} : vector<4x8x8xf32>, vector<4x8x8xf32>, vector<4x8x8xf32> -> vector<4x8x8xf32>
    %cst_14 = arith.constant dense<0xFF800000> : vector<4x8xf32>
    %37 = vector.multi_reduction <maximumf>, %36, %cst_14 [2] : vector<4x8x8xf32> to vector<4x8xf32>
    %cst_15 = arith.constant 0xFF800000 : f32
    %38 = vector.broadcast %cst_15 : f32 to vector<4x8xf32>
    %39 = arith.maximumf %38, %37 : vector<4x8xf32>
    %40 = vector.shape_cast %39 : vector<4x8xf32> to vector<4x8x1xf32>
    %41 = vector.broadcast %40 : vector<4x8x1xf32> to vector<4x8x8xf32>
    %42 = arith.subf %36, %41 : vector<4x8x8xf32>
    %43 = math.exp %42 : vector<4x8x8xf32>
    %cst_16 = arith.constant dense<0.000000e+00> : vector<4x8xf32>
    %44 = vector.multi_reduction <add>, %43, %cst_16 [2] : vector<4x8x8xf32> to vector<4x8xf32>
    %45 = vector.shape_cast %44 : vector<4x8xf32> to vector<4x8x1xf32>
    %46 = vector.broadcast %45 : vector<4x8x1xf32> to vector<4x8x8xf32>
    %47 = arith.divf %43, %46 : vector<4x8x8xf32>
    %cst_17 = arith.constant dense<0.000000e+00> : vector<4x8x8xf32>
    %48 = tpu.matmul %47, %35, %cst_17 {dimension_numbers = #tpu.dot_dimension_numbers<[2], [1], [1], [2], [0, 0, 0, 1, 1, 2], [0], [0]>} : vector<4x8x8xf32>, vector<4x8x8xf32>, vector<4x8x8xf32> -> vector<4x8x8xf32>
    %49 = vector.shape_cast %48 : vector<4x8x8xf32> to vector<32x8xf32>
    %50 = vector.extract_strided_slice %5 {offsets = [8, 0], sizes = [8, 32], strides = [1, 1]} : vector<32x32xf32> to vector<8x32xf32>
    %cst_18 = arith.constant dense<0.000000e+00> : vector<32x32xf32>
    %51 = tpu.matmul %49, %50, %cst_18 {dimension_numbers = #tpu.dot_dimension_numbers<[1], [0], [0], [1], [0, 0, 1, 1], [], []>} : vector<32x8xf32>, vector<8x32xf32>, vector<32x32xf32> -> vector<32x32xf32>
    %52 = arith.addf %32, %51 : vector<32x32xf32>
    %53 = vector.extract_strided_slice %11 {offsets = [0, 0, 16], sizes = [4, 8, 8], strides = [1, 1, 1]} : vector<4x8x96xf32> to vector<4x8x8xf32>
    %54 = vector.extract_strided_slice %11 {offsets = [0, 0, 48], sizes = [4, 8, 8], strides = [1, 1, 1]} : vector<4x8x96xf32> to vector<4x8x8xf32>
    %55 = vector.extract_strided_slice %11 {offsets = [0, 0, 80], sizes = [4, 8, 8], strides = [1, 1, 1]} : vector<4x8x96xf32> to vector<4x8x8xf32>
    %cst_19 = arith.constant dense<0.000000e+00> : vector<4x8x8xf32>
    %56 = tpu.matmul %53, %54, %cst_19 {dimension_numbers = #tpu.dot_dimension_numbers<[2], [2], [1], [1], [0, 0, 0, 1, 1, 1], [0], [0]>} : vector<4x8x8xf32>, vector<4x8x8xf32>, vector<4x8x8xf32> -> vector<4x8x8xf32>
    %cst_20 = arith.constant dense<0xFF800000> : vector<4x8xf32>
    %57 = vector.multi_reduction <maximumf>, %56, %cst_20 [2] : vector<4x8x8xf32> to vector<4x8xf32>
    %cst_21 = arith.constant 0xFF800000 : f32
    %58 = vector.broadcast %cst_21 : f32 to vector<4x8xf32>
    %59 = arith.maximumf %58, %57 : vector<4x8xf32>
    %60 = vector.shape_cast %59 : vector<4x8xf32> to vector<4x8x1xf32>
    %61 = vector.broadcast %60 : vector<4x8x1xf32> to vector<4x8x8xf32>
    %62 = arith.subf %56, %61 : vector<4x8x8xf32>
    %63 = math.exp %62 : vector<4x8x8xf32>
    %cst_22 = arith.constant dense<0.000000e+00> : vector<4x8xf32>
    %64 = vector.multi_reduction <add>, %63, %cst_22 [2] : vector<4x8x8xf32> to vector<4x8xf32>
    %65 = vector.shape_cast %64 : vector<4x8xf32> to vector<4x8x1xf32>
    %66 = vector.broadcast %65 : vector<4x8x1xf32> to vector<4x8x8xf32>
    %67 = arith.divf %63, %66 : vector<4x8x8xf32>
    %cst_23 = arith.constant dense<0.000000e+00> : vector<4x8x8xf32>
    %68 = tpu.matmul %67, %55, %cst_23 {dimension_numbers = #tpu.dot_dimension_numbers<[2], [1], [1], [2], [0, 0, 0, 1, 1, 2], [0], [0]>} : vector<4x8x8xf32>, vector<4x8x8xf32>, vector<4x8x8xf32> -> vector<4x8x8xf32>
    %69 = vector.shape_cast %68 : vector<4x8x8xf32> to vector<32x8xf32>
    %70 = vector.extract_strided_slice %5 {offsets = [16, 0], sizes = [8, 32], strides = [1, 1]} : vector<32x32xf32> to vector<8x32xf32>
    %cst_24 = arith.constant dense<0.000000e+00> : vector<32x32xf32>
    %71 = tpu.matmul %69, %70, %cst_24 {dimension_numbers = #tpu.dot_dimension_numbers<[1], [0], [0], [1], [0, 0, 1, 1], [], []>} : vector<32x8xf32>, vector<8x32xf32>, vector<32x32xf32> -> vector<32x32xf32>
    %72 = arith.addf %52, %71 : vector<32x32xf32>
    %73 = vector.extract_strided_slice %11 {offsets = [0, 0, 24], sizes = [4, 8, 8], strides = [1, 1, 1]} : vector<4x8x96xf32> to vector<4x8x8xf32>
    %74 = vector.extract_strided_slice %11 {offsets = [0, 0, 56], sizes = [4, 8, 8], strides = [1, 1, 1]} : vector<4x8x96xf32> to vector<4x8x8xf32>
    %75 = vector.extract_strided_slice %11 {offsets = [0, 0, 88], sizes = [4, 8, 8], strides = [1, 1, 1]} : vector<4x8x96xf32> to vector<4x8x8xf32>
    %cst_25 = arith.constant dense<0.000000e+00> : vector<4x8x8xf32>
    %76 = tpu.matmul %73, %74, %cst_25 {dimension_numbers = #tpu.dot_dimension_numbers<[2], [2], [1], [1], [0, 0, 0, 1, 1, 1], [0], [0]>} : vector<4x8x8xf32>, vector<4x8x8xf32>, vector<4x8x8xf32> -> vector<4x8x8xf32>
    %cst_26 = arith.constant dense<0xFF800000> : vector<4x8xf32>
    %77 = vector.multi_reduction <maximumf>, %76, %cst_26 [2] : vector<4x8x8xf32> to vector<4x8xf32>
    %cst_27 = arith.constant 0xFF800000 : f32
    %78 = vector.broadcast %cst_27 : f32 to vector<4x8xf32>
    %79 = arith.maximumf %78, %77 : vector<4x8xf32>
    %80 = vector.shape_cast %79 : vector<4x8xf32> to vector<4x8x1xf32>
    %81 = vector.broadcast %80 : vector<4x8x1xf32> to vector<4x8x8xf32>
    %82 = arith.subf %76, %81 : vector<4x8x8xf32>
    %83 = math.exp %82 : vector<4x8x8xf32>
    %cst_28 = arith.constant dense<0.000000e+00> : vector<4x8xf32>
    %84 = vector.multi_reduction <add>, %83, %cst_28 [2] : vector<4x8x8xf32> to vector<4x8xf32>
    %85 = vector.shape_cast %84 : vector<4x8xf32> to vector<4x8x1xf32>
    %86 = vector.broadcast %85 : vector<4x8x1xf32> to vector<4x8x8xf32>
    %87 = arith.divf %83, %86 : vector<4x8x8xf32>
    %cst_29 = arith.constant dense<0.000000e+00> : vector<4x8x8xf32>
    %88 = tpu.matmul %87, %75, %cst_29 {dimension_numbers = #tpu.dot_dimension_numbers<[2], [1], [1], [2], [0, 0, 0, 1, 1, 2], [0], [0]>} : vector<4x8x8xf32>, vector<4x8x8xf32>, vector<4x8x8xf32> -> vector<4x8x8xf32>
    %89 = vector.shape_cast %88 : vector<4x8x8xf32> to vector<32x8xf32>
    %90 = vector.extract_strided_slice %5 {offsets = [24, 0], sizes = [8, 32], strides = [1, 1]} : vector<32x32xf32> to vector<8x32xf32>
    %cst_30 = arith.constant dense<0.000000e+00> : vector<32x32xf32>
    %91 = tpu.matmul %89, %90, %cst_30 {dimension_numbers = #tpu.dot_dimension_numbers<[1], [0], [0], [1], [0, 0, 1, 1], [], []>} : vector<32x8xf32>, vector<8x32xf32>, vector<32x32xf32> -> vector<32x32xf32>
    %92 = arith.addf %72, %91 : vector<32x32xf32>
    %93 = vector.broadcast %7 : vector<1x32xf32> to vector<32x32xf32>
    %94 = arith.addf %92, %93 : vector<32x32xf32>
    %95 = vector.shape_cast %94 : vector<32x32xf32> to vector<4x8x32xf32>
    %c0_31 = arith.constant 0 : index
    %c0_32 = arith.constant 0 : index
    %c0_33 = arith.constant 0 : index
    %96 = vector.load %arg4[%c0_31, %c0_32, %c0_33] : memref<4x8x32xf32, #tpu.memory_space<vmem>>, vector<4x8x32xf32>
    tpu.vector_store %arg4[%c0_31, %c0_32, %c0_33], %95 {strides = array<i32>} : memref<4x8x32xf32, #tpu.memory_space<vmem>>, vector<4x8x32xf32>,
    return
  }
  func.func @transform_0(%arg0: i32) -> (i32, i32, i32) {
    %c0_i32 = arith.constant 0 : i32
    %c0_i32_0 = arith.constant 0 : i32
    %c0_i32_1 = arith.constant 0 : i32
    return %arg0, %c0_i32, %c0_i32_0 : i32, i32, i32
  }
  func.func @transform_1(%arg0: i32) -> (i32, i32) {
    %c0_i32 = arith.constant 0 : i32
    %c0_i32_0 = arith.constant 0 : i32
    %c0_i32_1 = arith.constant 0 : i32
    return %c0_i32, %c0_i32_0 : i32, i32
  }
  func.func @transform_2(%arg0: i32) -> (i32, i32) {
    %c0_i32 = arith.constant 0 : i32
    %c0_i32_0 = arith.constant 0 : i32
    %c0_i32_1 = arith.constant 0 : i32
    return %c0_i32, %c0_i32_0 : i32, i32
  }
  func.func @transform_3(%arg0: i32) -> (i32, i32, i32) {
    %c0_i32 = arith.constant 0 : i32
    %c0_i32_0 = arith.constant 0 : i32
    %c0_i32_1 = arith.constant 0 : i32
    return %arg0, %c0_i32, %c0_i32_0 : i32, i32, i32
  }
}

</mosaic_0001>

<llo_original>
// kernel: tpu_custom_call.1
$region0: #{tpu_custom_call.1}
  #allocation0 [shape = 'u32[]', space=smem, size = 0x4, offset = 0x4, fixed_abs, tag = 'smem constant byte address 0x4 - core index']
  #allocation1 [shape = 'u32[144,128]{1,0:T(1,128)}', space=vmem, size = 0x12000, scoped, tag = 'internal scratch']
  %s0 = inlined_call_operand.hbm [shape: f32[8,8,32], index: 0, kind: input, shape index: {}]
  %s1 = inlined_call_operand.hbm [shape: f32[32,128], index: 1, kind: input, shape index: {}]
  %s2 = inlined_call_operand.vmem [shape: f32[1,128], index: 2, kind: input, shape index: {}]
  %s3 = inlined_call_operand.hbm [shape: f32[8,8,32], index: 3, kind: output, shape index: {}]
  %s4 = sld [smem:[#allocation0]]
  $region53: #{tpu_custom_call.1} parent=0
    _
  %s6 = ssub.s32 1, %s4
  %s7 = scalar_select 0, %s6, %s4
  $region1: #{tpu_custom_call.1} parent=0
    #allocation2 [shape = 'u8[32768]{0}', space=vmem, size = 0x8000, scoped, tag = 'input window, operand 0']
    #allocation3 [shape = 's32[2]{0}', space=sflag, size = 0x8, scoped, tag = 'scoped memory for tpu_custom_call.1']
    #allocation4 [shape = 's32[2]{0}', space=sflag, size = 0x8, scoped, tag = 'scoped memory for tpu_custom_call.1']
    #allocation5 [shape = 'u8[16384]{0}', space=vmem, size = 0x4000, scoped, tag = 'input window, operand 1, single buffered']
    #allocation6 [shape = 's32[1]{0}', space=sflag, size = 0x4, scoped, tag = 'scoped memory for tpu_custom_call.1']
    #allocation7 [shape = 'u8[32768]{0}', space=vmem, size = 0x8000, scoped, tag = 'output window, operand 0']
    %8 = vsyncpa [#allocation3], 0
    %s9 = scalar_lea.sflag [#allocation3], 1
    %10 = vsyncpa %s9, 0
    %11 = vsyncpa [#allocation6], 0
    %12 = vsyncpa [#allocation4], 0
    %s13 = scalar_lea.sflag [#allocation4], 1
    %14 = vsyncpa %s13, 0
    loop: start=0, step=1, limit=4
    $region2: #{tpu_custom_call.1} parent=1 // loop_pre_header
      _
    $region3: #{tpu_custom_call.1} parent=1 // loop_header
      %s16 = sphi 0, %s20
      %p17 = scmp.ge.s32.totalorder %s16, 4
      %s26 = sphi 0, %s28
      %s29 = sphi 0, %s26
      %s30 = sphi 0, %s29
      %s46 = sphi 0, %s30
      %s50 = sphi 0, %s50
      %s52 = sphi 0, %s50
      %s53 = sphi 0, %s52
      %s67 = sphi 0, %s53
      %s71 = sphi 0, %s71
      %s73 = sphi 0, %s71
      %s74 = sphi 0, %s73
      %s88 = sphi 0, %s74
      %s94 = sphi 0, %s96
      %s97 = sphi 0, %s94
      %s98 = sphi 0, %s97
      %s114 = sphi 0, %s98
    $region4: #{tpu_custom_call.1} parent=1 // loop_header_branch
      %19 = sbr.rel (%p17) target = $region8
    $region5: #{tpu_custom_call.1} parent=1 // loop_body
      %s21 = ssub.s32 %s16, 1
      %s22 = ssub.s32 %s16, 2
      %s23 = sadd.s32 %s16, 1
      %s24 = ssub.s32 %s16, %s23
      %p25 = scmp.eq.s32.totalorder %s24, 0
      %s27 = sadd.s32 %s26, 1
      %s28 = scalar_select %p25, %s26, %s27
      %p31 = pneg %p25
      %p32 = scmp.eq.s32.totalorder %s16, 1
      %p33 = por %p31, %p32
      %p34 = scmp.ne.s32.totalorder %s26, %s29
      %p35 = scmp.eq.s32.totalorder %s16, 0
      %p36 = por %p34, %p35
      %p37 = scmp.ne.s32.totalorder %s26, %s29
      %p38 = scmp.eq.s32.totalorder %s21, 1
      %p39 = por %p37, %p38
      %p40 = scmp.ne.s32.totalorder %s29, %s30
      %p41 = scmp.eq.s32.totalorder %s21, 0
      %p42 = por %p40, %p41
      %p43 = scmp.ne.s32.totalorder %s29, %s30
      %p44 = scmp.eq.s32.totalorder %s22, 1
      %p45 = por %p43, %p44
      %p47 = scmp.ne.s32.totalorder %s30, %s46
      %p48 = scmp.eq.s32.totalorder %s22, 0
      %p49 = por %p47, %p48
      %s51 = sadd.s32 %s50, 1
      %p54 = scmp.eq.s32.totalorder %s16, 1
      %p55 = scmp.ne.s32.totalorder %s50, %s52
      %p56 = scmp.eq.s32.totalorder %s16, 0
      %p57 = por %p55, %p56
      %p58 = scmp.ne.s32.totalorder %s50, %s52
      %p59 = scmp.eq.s32.totalorder %s21, 1
      %p60 = por %p58, %p59
      %p61 = scmp.ne.s32.totalorder %s52, %s53
      %p62 = scmp.eq.s32.totalorder %s21, 0
      %p63 = por %p61, %p62
      %p64 = scmp.ne.s32.totalorder %s52, %s53
      %p65 = scmp.eq.s32.totalorder %s22, 1
      %p66 = por %p64, %p65
      %p68 = scmp.ne.s32.totalorder %s53, %s67
      %p69 = scmp.eq.s32.totalorder %s22, 0
      %p70 = por %p68, %p69
      %s72 = sadd.s32 %s71, 1
      %p75 = scmp.eq.s32.totalorder %s16, 1
      %p76 = scmp.ne.s32.totalorder %s71, %s73
      %p77 = scmp.eq.s32.totalorder %s16, 0
      %p78 = por %p76, %p77
      %p79 = scmp.ne.s32.totalorder %s71, %s73
      %p80 = scmp.eq.s32.totalorder %s21, 1
      %p81 = por %p79, %p80
      %p82 = scmp.ne.s32.totalorder %s73, %s74
      %p83 = scmp.eq.s32.totalorder %s21, 0
      %p84 = por %p82, %p83
      %p85 = scmp.ne.s32.totalorder %s73, %s74
      %p86 = scmp.eq.s32.totalorder %s22, 1
      %p87 = por %p85, %p86
      %p89 = scmp.ne.s32.totalorder %s74, %s88
      %p90 = scmp.eq.s32.totalorder %s22, 0
      %p91 = por %p89, %p90
      %s92 = ssub.s32 %s16, %s23
      %p93 = scmp.eq.s32.totalorder %s92, 0
      %s95 = sadd.s32 %s94, 1
      %s96 = scalar_select %p93, %s94, %s95
      %p99 = pneg %p93
      %p100 = scmp.eq.s32.totalorder %s16, 1
      %p101 = por %p99, %p100
      %p102 = scmp.ne.s32.totalorder %s94, %s97
      %p103 = scmp.eq.s32.totalorder %s16, 0
      %p104 = por %p102, %p103
      %p105 = scmp.ne.s32.totalorder %s94, %s97
      %p106 = scmp.eq.s32.totalorder %s21, 1
      %p107 = por %p105, %p106
      %p108 = scmp.ne.s32.totalorder %s97, %s98
      %p109 = scmp.eq.s32.totalorder %s21, 0
      %p110 = por %p108, %p109
      %p111 = scmp.ne.s32.totalorder %s97, %s98
      %p112 = scmp.eq.s32.totalorder %s22, 1
      %p113 = por %p111, %p112
      %p115 = scmp.ne.s32.totalorder %s98, %s114
      %p116 = scmp.eq.s32.totalorder %s22, 0
      %p117 = por %p115, %p116
      %p118 = scmp.le.s32.totalorder 1, %s16
      %p119 = scmp.lt.s32.totalorder %s16, 3
      %p120 = pnand %p118, %p119
      %p121 = pneg %p120
      // Predicated region
      $region9: #{tpu_custom_call.1} parent=5 // pred_check
        _
      $region10: #{tpu_custom_call.1} parent=5 // pred_check_branch
        %123 = sbr.rel (%p120) target = $region12
      $region11: #{tpu_custom_call.1} parent=5 // pred_region
        %s124 = ssub.s32 %s16, 1
        // Predicated region
        $region13: #{tpu_custom_call.1} parent=11 // pred_check
          %p125 = pneg %p63
        $region14: #{tpu_custom_call.1} parent=11 // pred_check_branch
          %127 = sbr.rel (%p125) target = $region16
        $region15: #{tpu_custom_call.1} parent=11 // pred_region
          %s129 = ssub.s32 512, 512
          %130 = vsyncadd [#allocation6], %s129
          %s131 = sshll.u32 [#allocation5], 4
          %s132 = int_to_ptr.vmem [resolvable:$true] %s131
          %137 = dma.hbm_to_vmem [thread:$0]  %s1, 512, %s132, [#allocation6], 128, 128, 8
        $region16: #{tpu_custom_call.1} parent=11 // pred_fallthru
          _
        // Predicated region
        $region17: #{tpu_custom_call.1} parent=11 // pred_check
          %p138 = pneg %p84
        $region18: #{tpu_custom_call.1} parent=11 // pred_check_branch
          %140 = sbr.rel (%p138) target = $region20
        $region19: #{tpu_custom_call.1} parent=11 // pred_region
          _
        $region20: #{tpu_custom_call.1} parent=11 // pred_fallthru
          _
      $region12: #{tpu_custom_call.1} parent=5 // pred_fallthru
        _
      %p141 = scmp.lt.s32.totalorder %s16, 2
      // Predicated region
      $region21: #{tpu_custom_call.1} parent=5 // pred_check
        %p142 = pneg %p141
      $region22: #{tpu_custom_call.1} parent=5 // pred_check_branch
        %144 = sbr.rel (%p142) target = $region24
      $region23: #{tpu_custom_call.1} parent=5 // pred_region
        // Predicated region
        $region25: #{tpu_custom_call.1} parent=23 // pred_check
          %p145 = pneg %p36
        $region26: #{tpu_custom_call.1} parent=23 // pred_check_branch
          %147 = sbr.rel (%p145) target = $region28
        $region27: #{tpu_custom_call.1} parent=23 // pred_region
          %s148 = sand.u32 %s26, 1
          %s149 = scalar_lea.sflag [#allocation3], %s148
          %s150 = sand.u32 %s26, 1
          %s151 = smul.addr %s150, 32
          %s152 = scalar_lea.vmem [#allocation2], %s151
          %s153 = smul.u32 4, %s16
          %s155 = ssub.s32 512, 512
          %156 = vsyncadd %s149, %s155
          %s157 = smul.addr %s153, 128
          %s158 = scalar_lea.hbm %s0, %s157
          %s159 = sshll.u32 %s152, 4
          %s160 = int_to_ptr.vmem [resolvable:$true] %s159
          %165 = dma.hbm_to_vmem [thread:$0]  %s158, 512, %s160, %s149, 128, 128, 8
        $region28: #{tpu_custom_call.1} parent=23 // pred_fallthru
          _
      $region24: #{tpu_custom_call.1} parent=5 // pred_fallthru
        _
      %p166 = scmp.le.s32.totalorder 1, %s16
      %p167 = scmp.lt.s32.totalorder %s16, 3
      %p168 = pnand %p166, %p167
      %p169 = pneg %p168
      // Predicated region
      $region29: #{tpu_custom_call.1} parent=5 // pred_check
        _
      $region30: #{tpu_custom_call.1} parent=5 // pred_check_branch
        %171 = sbr.rel (%p168) target = $region32
      $region31: #{tpu_custom_call.1} parent=5 // pred_region
        %s172 = ssub.s32 %s16, 1
        %s173 = sand.u32 %s29, 1
        %s174 = scalar_lea.sflag [#allocation3], %s173
        %s175 = sand.u32 %s29, 1
        %s176 = smul.addr %s175, 32
        %s177 = scalar_lea.vmem [#allocation2], %s176
        // Predicated region
        $region33: #{tpu_custom_call.1} parent=31 // pred_check
          %p178 = pneg %p42
        $region34: #{tpu_custom_call.1} parent=31 // pred_check_branch
          %180 = sbr.rel (%p178) target = $region36
        $region35: #{tpu_custom_call.1} parent=31 // pred_region
          %181 = dma.done %s174, 512
        $region36: #{tpu_custom_call.1} parent=31 // pred_fallthru
          _
        // Predicated region
        $region37: #{tpu_custom_call.1} parent=31 // pred_check
          %p182 = pneg %p63
        $region38: #{tpu_custom_call.1} parent=31 // pred_check_branch
          %184 = sbr.rel (%p182) target = $region40
        $region39: #{tpu_custom_call.1} parent=31 // pred_region
          %185 = dma.done [#allocation6], 512
        $region40: #{tpu_custom_call.1} parent=31 // pred_fallthru
          _
        %s186 = sand.u32 %s29, 1
        %s187 = scalar_lea.sflag [#allocation3], %s186
        %s188 = sand.u32 %s29, 1
        %s189 = smul.addr %s188, 32
        %s190 = scalar_lea.vmem [#allocation2], %s189
        %p191 = pneg %p42
        %p192 = pneg %p39
        %p193 = pneg %p63
        %p194 = pneg %p60
        %p195 = pneg %p84
        %p196 = pneg %p81
        %p197 = pneg %p110
        %p198 = pneg %p107
        %s199 = sand.u32 %s97, 1
        %s200 = scalar_lea.sflag [#allocation4], %s199
        %s201 = sand.u32 %s97, 1
        %s202 = smul.addr %s201, 32
        %s203 = scalar_lea.vmem [#allocation7], %s202
        %s204 = smul.u32 4, %s21
        %s205 = smul.u32 4, %s21
        %v206 = vld [vmem:[%s177] sm:$0xff]
        %v207 = vld [vmem:[%s177 + $0x8] sm:$0xff]
        %v208 = vld [vmem:[%s177 + $0x10] sm:$0xff]
        %v209 = vld [vmem:[%s177 + $0x18] sm:$0xff]
        %v210 = vld [vmem:[#allocation5] sm:$0xff]
        %v211 = vld [vmem:[#allocation5 + $0x8] sm:$0xff]
        %v212 = vld [vmem:[#allocation5 + $0x10] sm:$0xff]
        %v213 = vld [vmem:[#allocation5 + $0x18] sm:$0xff]
        %v214 = vld [vmem:[%s2] sm:$0x1]
        %v216 = vlaneseq
        %v217 = vshrl.u32 %v216, 7
        %v218 = vsub.s32 0, %v217
        %v219 = vrot.slane %v214, %v218
        %vm221 = vcmask 261120
        %v223 = vsel %vm221, %v206, 0
        %v226 = vsel %vm221, %v207, 0
        %v229 = vsel %vm221, %v208, 0
        %v232 = vsel %vm221, %v209, 0
        %234 = vmatprep.subr.mxu0 0.0
        %235 = vmatpush1.msra.mxu0 0.0
        %236 = vmatprep.subr.mxu0 0.0
        %237 = vmatpush1.msra.mxu0 0.0
        %238 = vmatprep.subr.mxu0 0.0
        %239 = vmatpush1.msra.mxu0 0.0
        %240 = vmatprep.subr.mxu0 0.0
        %241 = vmatpush1.msra.mxu0 0.0
        %242 = vmatprep.subr.mxu0 0.0
        %243 = vmatpush1.msra.mxu0 0.0
        %244 = vmatprep.subr.mxu0 0.0
        %245 = vmatpush1.msra.mxu0 0.0
        %246 = vmatprep.subr.mxu0 0.0
        %247 = vmatpush1.msra.mxu0 0.0
        %248 = vmatprep.subr.mxu0 0.0
        %249 = vmatpush1.msra.mxu0 0.0
        %250 = vmatprep.subr.mxu0 0.0
        %251 = vmatpush1.msra.mxu0 0.0
        %252 = vmatprep.subr.mxu0 0.0
        %253 = vmatpush1.msra.mxu0 0.0
        %254 = vmatprep.subr.mxu0 0.0
        %255 = vmatpush1.msra.mxu0 0.0
        %256 = vmatprep.subr.mxu0 0.0
        %257 = vmatpush1.msra.mxu0 0.0
        %258 = vmatprep.subr.mxu0 0.0
        %259 = vmatpush1.msra.mxu0 %v213
        %260 = vmatprep.subr.mxu0 0.0
        %261 = vmatpush1.msra.mxu0 %v212
        %262 = vmatprep.subr.mxu0 0.0
        %263 = vmatpush1.msra.mxu0 %v211
        %264 = vmatprep.subr.mxu0 0.0
        %265 = vmatpush1.msra.mxu0 %v210
        %266 = vmatprep.subr.mxu0 0.0
        %267 = vmatpush2.msra.mxu0 0.0
        %268 = vmatprep.subr.mxu0 0.0
        %269 = vmatpush2.msra.mxu0 0.0
        %270 = vmatprep.subr.mxu0 0.0
        %271 = vmatpush2.msra.mxu0 0.0
        %272 = vmatprep.subr.mxu0 0.0
        %273 = vmatpush2.msra.mxu0 0.0
        %274 = vmatprep.subr.mxu0 0.0
        %275 = vmatpush2.msra.mxu0 0.0
        %276 = vmatprep.subr.mxu0 0.0
        %277 = vmatpush2.msra.mxu0 0.0
        %278 = vmatprep.subr.mxu0 0.0
        %279 = vmatpush2.msra.mxu0 0.0
        %280 = vmatprep.subr.mxu0 0.0
        %281 = vmatpush2.msra.mxu0 0.0
        %282 = vmatprep.subr.mxu0 0.0
        %283 = vmatpush2.msra.mxu0 0.0
        %284 = vmatprep.subr.mxu0 0.0
        %285 = vmatpush2.msra.mxu0 0.0
        %286 = vmatprep.subr.mxu0 0.0
        %287 = vmatpush2.msra.mxu0 0.0
        %288 = vmatprep.subr.mxu0 0.0
        %289 = vmatpush2.msra.mxu0 0.0
        %290 = vmatprep.subr.mxu0 0.0
        %291 = vmatpush2.msra.mxu0 0.0
        %292 = vmatprep.subr.mxu0 0.0
        %293 = vmatpush2.msra.mxu0 0.0
        %294 = vmatprep.subr.mxu0 0.0
        %295 = vmatpush2.msra.mxu0 0.0
        %296 = vmatprep.subr.mxu0 0.0
        %297 = vmatpush2.msra.mxu0 0.0
        %298 = vmatprep.mubr.f32.mxu0 0.0
        %299 = vmatmul.mubr.f32.gmra.mxu0 %v223
        %v300 = vpop.f32.mrf.mxu0
        %v301 = vadd.f32 %v219, %v300
        %v302 = vpop.f32.mrf.mxu0
        %303 = vmatprep.mubr.f32.mxu0 0.0
        %304 = vmatmul.mubr.f32.gmra.mxu0 %v226
        %v305 = vpop.f32.mrf.mxu0
        %v306 = vadd.f32 %v219, %v305
        %v307 = vpop.f32.mrf.mxu0
        %308 = vmatprep.mubr.f32.mxu0 0.0
        %309 = vmatmul.mubr.f32.gmra.mxu0 %v229
        %v310 = vpop.f32.mrf.mxu0
        %v311 = vadd.f32 %v219, %v310
        %v312 = vpop.f32.mrf.mxu0
        %313 = vmatprep.mubr.f32.mxu0 0.0
        %314 = vmatmul.mubr.f32.gmra.mxu0 %v232
        %v315 = vpop.f32.mrf.mxu0
        %v316 = vadd.f32 %v219, %v315
        %v317 = vpop.f32.mrf.mxu0
        %318 = vdwg.mxu0
        %320 = vrot.lane.b32.xlu0 %v301, 96
        %v321 = vpop.permute.xlu0 %320
        %vm322 = vcmask 64512
        %v323 = vsel %vm322, %v301, 0
        %v325 = vsel %vm322, %v321, 0
        %327 = vmatprep.subr.mxu0 0.0
        %328 = vmatpush1.xpose.msra.mxu0 0.0
        %329 = vmatprep.subr.mxu0 0.0
        %330 = vmatpush1.xpose.msra.mxu0 0.0
        %331 = vmatprep.subr.mxu0 0.0
        %332 = vmatpush1.xpose.msra.mxu0 0.0
        %333 = vmatprep.subr.mxu0 0.0
        %334 = vmatpush1.xpose.msra.mxu0 0.0
        %335 = vmatprep.subr.mxu0 0.0
        %336 = vmatpush1.xpose.msra.mxu0 0.0
        %337 = vmatprep.subr.mxu0 0.0
        %338 = vmatpush1.xpose.msra.mxu0 0.0
        %339 = vmatprep.subr.mxu0 0.0
        %340 = vmatpush1.xpose.msra.mxu0 0.0
        %341 = vmatprep.subr.mxu0 0.0
        %342 = vmatpush1.xpose.msra.mxu0 0.0
        %343 = vmatprep.subr.mxu0 0.0
        %344 = vmatpush1.xpose.msra.mxu0 0.0
        %345 = vmatprep.subr.mxu0 0.0
        %346 = vmatpush1.xpose.msra.mxu0 0.0
        %347 = vmatprep.subr.mxu0 0.0
        %348 = vmatpush1.xpose.msra.mxu0 0.0
        %349 = vmatprep.subr.mxu0 0.0
        %350 = vmatpush1.xpose.msra.mxu0 0.0
        %351 = vmatprep.subr.mxu0 0.0
        %352 = vmatpush1.xpose.msra.mxu0 0.0
        %353 = vmatprep.subr.mxu0 0.0
        %354 = vmatpush1.xpose.msra.mxu0 0.0
        %355 = vmatprep.subr.mxu0 0.0
        %356 = vmatpush1.xpose.msra.mxu0 0.0
        %357 = vmatprep.subr.mxu0 0.0
        %358 = vmatpush1.xpose.msra.mxu0 %v325
        %359 = vmatprep.subr.mxu0 0.0
        %360 = vmatpush2.xpose.msra.mxu0 0.0
        %361 = vmatprep.subr.mxu0 0.0
        %362 = vmatpush2.xpose.msra.mxu0 0.0
        %363 = vmatprep.subr.mxu0 0.0
        %364 = vmatpush2.xpose.msra.mxu0 0.0
        %365 = vmatprep.subr.mxu0 0.0
        %366 = vmatpush2.xpose.msra.mxu0 0.0
        %367 = vmatprep.subr.mxu0 0.0
        %368 = vmatpush2.xpose.msra.mxu0 0.0
        %369 = vmatprep.subr.mxu0 0.0
        %370 = vmatpush2.xpose.msra.mxu0 0.0
        %371 = vmatprep.subr.mxu0 0.0
        %372 = vmatpush2.xpose.msra.mxu0 0.0
        %373 = vmatprep.subr.mxu0 0.0
        %374 = vmatpush2.xpose.msra.mxu0 0.0
        %375 = vmatprep.subr.mxu0 0.0
        %376 = vmatpush2.xpose.msra.mxu0 0.0
        %377 = vmatprep.subr.mxu0 0.0
        %378 = vmatpush2.xpose.msra.mxu0 0.0
        %379 = vmatprep.subr.mxu0 0.0
        %380 = vmatpush2.xpose.msra.mxu0 0.0
        %381 = vmatprep.subr.mxu0 0.0
        %382 = vmatpush2.xpose.msra.mxu0 0.0
        %383 = vmatprep.subr.mxu0 0.0
        %384 = vmatpush2.xpose.msra.mxu0 0.0
        %385 = vmatprep.subr.mxu0 0.0
        %386 = vmatpush2.xpose.msra.mxu0 0.0
        %387 = vmatprep.subr.mxu0 0.0
        %388 = vmatpush2.xpose.msra.mxu0 0.0
        %389 = vmatprep.subr.mxu0 0.0
        %390 = vmatpush2.xpose.msra.mxu0 0.0
        %391 = vmatprep.mubr.f32.mxu0 0.0
        %392 = vmatmul.mubr.f32.gmra.mxu0 %v323
        %v393 = vpop.f32.mrf.mxu0
        %v394 = vadd.f32 0.0, %v393
        %v395 = vpop.f32.mrf.mxu0
        %396 = vdwg.mxu0
        %398 = vrot.lane.b32.xlu0 %v306, 96
        %v399 = vpop.permute.xlu0 %398
        %v400 = vsel %vm322, %v306, 0
        %v402 = vsel %vm322, %v399, 0
        %404 = vmatprep.subr.mxu0 0.0
        %405 = vmatpush1.xpose.msra.mxu0 0.0
        %406 = vmatprep.subr.mxu0 0.0
        %407 = vmatpush1.xpose.msra.mxu0 0.0
        %408 = vmatprep.subr.mxu0 0.0
        %409 = vmatpush1.xpose.msra.mxu0 0.0
        %410 = vmatprep.subr.mxu0 0.0
        %411 = vmatpush1.xpose.msra.mxu0 0.0
        %412 = vmatprep.subr.mxu0 0.0
        %413 = vmatpush1.xpose.msra.mxu0 0.0
        %414 = vmatprep.subr.mxu0 0.0
        %415 = vmatpush1.xpose.msra.mxu0 0.0
        %416 = vmatprep.subr.mxu0 0.0
        %417 = vmatpush1.xpose.msra.mxu0 0.0
        %418 = vmatprep.subr.mxu0 0.0
        %419 = vmatpush1.xpose.msra.mxu0 0.0
        %420 = vmatprep.subr.mxu0 0.0
        %421 = vmatpush1.xpose.msra.mxu0 0.0
        %422 = vmatprep.subr.mxu0 0.0
        %423 = vmatpush1.xpose.msra.mxu0 0.0
        %424 = vmatprep.subr.mxu0 0.0
        %425 = vmatpush1.xpose.msra.mxu0 0.0
        %426 = vmatprep.subr.mxu0 0.0
        %427 = vmatpush1.xpose.msra.mxu0 0.0
        %428 = vmatprep.subr.mxu0 0.0
        %429 = vmatpush1.xpose.msra.mxu0 0.0
        %430 = vmatprep.subr.mxu0 0.0
        %431 = vmatpush1.xpose.msra.mxu0 0.0
        %432 = vmatprep.subr.mxu0 0.0
        %433 = vmatpush1.xpose.msra.mxu0 0.0
        %434 = vmatprep.subr.mxu0 0.0
        %435 = vmatpush1.xpose.msra.mxu0 %v402
        %436 = vmatprep.subr.mxu0 0.0
        %437 = vmatpush2.xpose.msra.mxu0 0.0
        %438 = vmatprep.subr.mxu0 0.0
        %439 = vmatpush2.xpose.msra.mxu0 0.0
        %440 = vmatprep.subr.mxu0 0.0
        %441 = vmatpush2.xpose.msra.mxu0 0.0
        %442 = vmatprep.subr.mxu0 0.0
        %443 = vmatpush2.xpose.msra.mxu0 0.0
        %444 = vmatprep.subr.mxu0 0.0
        %445 = vmatpush2.xpose.msra.mxu0 0.0
        %446 = vmatprep.subr.mxu0 0.0
        %447 = vmatpush2.xpose.msra.mxu0 0.0
        %448 = vmatprep.subr.mxu0 0.0
        %449 = vmatpush2.xpose.msra.mxu0 0.0
        %450 = vmatprep.subr.mxu0 0.0
        %451 = vmatpush2.xpose.msra.mxu0 0.0
        %452 = vmatprep.subr.mxu0 0.0
        %453 = vmatpush2.xpose.msra.mxu0 0.0
        %454 = vmatprep.subr.mxu0 0.0
        %455 = vmatpush2.xpose.msra.mxu0 0.0
        %456 = vmatprep.subr.mxu0 0.0
        %457 = vmatpush2.xpose.msra.mxu0 0.0
        %458 = vmatprep.subr.mxu0 0.0
        %459 = vmatpush2.xpose.msra.mxu0 0.0
        %460 = vmatprep.subr.mxu0 0.0
        %461 = vmatpush2.xpose.msra.mxu0 0.0
        %462 = vmatprep.subr.mxu0 0.0
        %463 = vmatpush2.xpose.msra.mxu0 0.0
        %464 = vmatprep.subr.mxu0 0.0
        %465 = vmatpush2.xpose.msra.mxu0 0.0
        %466 = vmatprep.subr.mxu0 0.0
        %467 = vmatpush2.xpose.msra.mxu0 0.0
        %468 = vmatprep.mubr.f32.mxu0 0.0
        %469 = vmatmul.mubr.f32.gmra.mxu0 %v400
        %v470 = vpop.f32.mrf.mxu0
        %v471 = vadd.f32 0.0, %v470
        %v472 = vpop.f32.mrf.mxu0
        %473 = vdwg.mxu0
        %475 = vrot.lane.b32.xlu0 %v311, 96
        %v476 = vpop.permute.xlu0 %475
        %v477 = vsel %vm322, %v311, 0
        %v479 = vsel %vm322, %v476, 0
        %481 = vmatprep.subr.mxu0 0.0
        %482 = vmatpush1.xpose.msra.mxu0 0.0
        %483 = vmatprep.subr.mxu0 0.0
        %484 = vmatpush1.xpose.msra.mxu0 0.0
        %485 = vmatprep.subr.mxu0 0.0
        %486 = vmatpush1.xpose.msra.mxu0 0.0
        %487 = vmatprep.subr.mxu0 0.0
        %488 = vmatpush1.xpose.msra.mxu0 0.0
        %489 = vmatprep.subr.mxu0 0.0
        %490 = vmatpush1.xpose.msra.mxu0 0.0
        %491 = vmatprep.subr.mxu0 0.0
        %492 = vmatpush1.xpose.msra.mxu0 0.0
        %493 = vmatprep.subr.mxu0 0.0
        %494 = vmatpush1.xpose.msra.mxu0 0.0
        %495 = vmatprep.subr.mxu0 0.0
        %496 = vmatpush1.xpose.msra.mxu0 0.0
        %497 = vmatprep.subr.mxu0 0.0
        %498 = vmatpush1.xpose.msra.mxu0 0.0
        %499 = vmatprep.subr.mxu0 0.0
        %500 = vmatpush1.xpose.msra.mxu0 0.0
        %501 = vmatprep.subr.mxu0 0.0
        %502 = vmatpush1.xpose.msra.mxu0 0.0
        %503 = vmatprep.subr.mxu0 0.0
        %504 = vmatpush1.xpose.msra.mxu0 0.0
        %505 = vmatprep.subr.mxu0 0.0
        %506 = vmatpush1.xpose.msra.mxu0 0.0
        %507 = vmatprep.subr.mxu0 0.0
        %508 = vmatpush1.xpose.msra.mxu0 0.0
        %509 = vmatprep.subr.mxu0 0.0
        %510 = vmatpush1.xpose.msra.mxu0 0.0
        %511 = vmatprep.subr.mxu0 0.0
        %512 = vmatpush1.xpose.msra.mxu0 %v479
        %513 = vmatprep.subr.mxu0 0.0
        %514 = vmatpush2.xpose.msra.mxu0 0.0
        %515 = vmatprep.subr.mxu0 0.0
        %516 = vmatpush2.xpose.msra.mxu0 0.0
        %517 = vmatprep.subr.mxu0 0.0
        %518 = vmatpush2.xpose.msra.mxu0 0.0
        %519 = vmatprep.subr.mxu0 0.0
        %520 = vmatpush2.xpose.msra.mxu0 0.0
        %521 = vmatprep.subr.mxu0 0.0
        %522 = vmatpush2.xpose.msra.mxu0 0.0
        %523 = vmatprep.subr.mxu0 0.0
        %524 = vmatpush2.xpose.msra.mxu0 0.0
        %525 = vmatprep.subr.mxu0 0.0
        %526 = vmatpush2.xpose.msra.mxu0 0.0
        %527 = vmatprep.subr.mxu0 0.0
        %528 = vmatpush2.xpose.msra.mxu0 0.0
        %529 = vmatprep.subr.mxu0 0.0
        %530 = vmatpush2.xpose.msra.mxu0 0.0
        %531 = vmatprep.subr.mxu0 0.0
        %532 = vmatpush2.xpose.msra.mxu0 0.0
        %533 = vmatprep.subr.mxu0 0.0
        %534 = vmatpush2.xpose.msra.mxu0 0.0
        %535 = vmatprep.subr.mxu0 0.0
        %536 = vmatpush2.xpose.msra.mxu0 0.0
        %537 = vmatprep.subr.mxu0 0.0
        %538 = vmatpush2.xpose.msra.mxu0 0.0
        %539 = vmatprep.subr.mxu0 0.0
        %540 = vmatpush2.xpose.msra.mxu0 0.0
        %541 = vmatprep.subr.mxu0 0.0
        %542 = vmatpush2.xpose.msra.mxu0 0.0
        %543 = vmatprep.subr.mxu0 0.0
        %544 = vmatpush2.xpose.msra.mxu0 0.0
        %545 = vmatprep.mubr.f32.mxu0 0.0
        %546 = vmatmul.mubr.f32.gmra.mxu0 %v477
        %v547 = vpop.f32.mrf.mxu0
        %v548 = vadd.f32 0.0, %v547
        %v549 = vpop.f32.mrf.mxu0
        %550 = vdwg.mxu0
        %552 = vrot.lane.b32.xlu0 %v316, 96
        %v553 = vpop.permute.xlu0 %552
        %v554 = vsel %vm322, %v316, 0
        %v556 = vsel %vm322, %v553, 0
        %558 = vmatprep.subr.mxu0 0.0
        %559 = vmatpush1.xpose.msra.mxu0 0.0
        %560 = vmatprep.subr.mxu0 0.0
        %561 = vmatpush1.xpose.msra.mxu0 0.0
        %562 = vmatprep.subr.mxu0 0.0
        %563 = vmatpush1.xpose.msra.mxu0 0.0
        %564 = vmatprep.subr.mxu0 0.0
        %565 = vmatpush1.xpose.msra.mxu0 0.0
        %566 = vmatprep.subr.mxu0 0.0
        %567 = vmatpush1.xpose.msra.mxu0 0.0
        %568 = vmatprep.subr.mxu0 0.0
        %569 = vmatpush1.xpose.msra.mxu0 0.0
        %570 = vmatprep.subr.mxu0 0.0
        %571 = vmatpush1.xpose.msra.mxu0 0.0
        %572 = vmatprep.subr.mxu0 0.0
        %573 = vmatpush1.xpose.msra.mxu0 0.0
        %574 = vmatprep.subr.mxu0 0.0
        %575 = vmatpush1.xpose.msra.mxu0 0.0
        %576 = vmatprep.subr.mxu0 0.0
        %577 = vmatpush1.xpose.msra.mxu0 0.0
        %578 = vmatprep.subr.mxu0 0.0
        %579 = vmatpush1.xpose.msra.mxu0 0.0
        %580 = vmatprep.subr.mxu0 0.0
        %581 = vmatpush1.xpose.msra.mxu0 0.0
        %582 = vmatprep.subr.mxu0 0.0
        %583 = vmatpush1.xpose.msra.mxu0 0.0
        %584 = vmatprep.subr.mxu0 0.0
        %585 = vmatpush1.xpose.msra.mxu0 0.0
        %586 = vmatprep.subr.mxu0 0.0
        %587 = vmatpush1.xpose.msra.mxu0 0.0
        %588 = vmatprep.subr.mxu0 0.0
        %589 = vmatpush1.xpose.msra.mxu0 %v556
        %590 = vmatprep.subr.mxu0 0.0
        %591 = vmatpush2.xpose.msra.mxu0 0.0
        %592 = vmatprep.subr.mxu0 0.0
        %593 = vmatpush2.xpose.msra.mxu0 0.0
        %594 = vmatprep.subr.mxu0 0.0
        %595 = vmatpush2.xpose.msra.mxu0 0.0
        %596 = vmatprep.subr.mxu0 0.0
        %597 = vmatpush2.xpose.msra.mxu0 0.0
        %598 = vmatprep.subr.mxu0 0.0
        %599 = vmatpush2.xpose.msra.mxu0 0.0
        %600 = vmatprep.subr.mxu0 0.0
        %601 = vmatpush2.xpose.msra.mxu0 0.0
        %602 = vmatprep.subr.mxu0 0.0
        %603 = vmatpush2.xpose.msra.mxu0 0.0
        %604 = vmatprep.subr.mxu0 0.0
        %605 = vmatpush2.xpose.msra.mxu0 0.0
        %606 = vmatprep.subr.mxu0 0.0
        %607 = vmatpush2.xpose.msra.mxu0 0.0
        %608 = vmatprep.subr.mxu0 0.0
        %609 = vmatpush2.xpose.msra.mxu0 0.0
        %610 = vmatprep.subr.mxu0 0.0
        %611 = vmatpush2.xpose.msra.mxu0 0.0
        %612 = vmatprep.subr.mxu0 0.0
        %613 = vmatpush2.xpose.msra.mxu0 0.0
        %614 = vmatprep.subr.mxu0 0.0
        %615 = vmatpush2.xpose.msra.mxu0 0.0
        %616 = vmatprep.subr.mxu0 0.0
        %617 = vmatpush2.xpose.msra.mxu0 0.0
        %618 = vmatprep.subr.mxu0 0.0
        %619 = vmatpush2.xpose.msra.mxu0 0.0
        %620 = vmatprep.subr.mxu0 0.0
        %621 = vmatpush2.xpose.msra.mxu0 0.0
        %622 = vmatprep.mubr.f32.mxu0 0.0
        %623 = vmatmul.mubr.f32.gmra.mxu0 %v554
        %v624 = vpop.f32.mrf.mxu0
        %v625 = vadd.f32 0.0, %v624
        %v626 = vpop.f32.mrf.mxu0
        %627 = vdwg.mxu0
        %v628 = vsel %vm322, %v394, -inf
        %629 = vmax.xlane.f32.xlu0 %v628
        %v630 = vpop.xlane.xlu0 %629
        %v631 = vsel %vm322, %v471, -inf
        %632 = vmax.xlane.f32.xlu0 %v631
        %v633 = vpop.xlane.xlu0 %632
        %v634 = vsel %vm322, %v548, -inf
        %635 = vmax.xlane.f32.xlu0 %v634
        %v636 = vpop.xlane.xlu0 %635
        %v637 = vsel %vm322, %v625, -inf
        %638 = vmax.xlane.f32.xlu0 %v637
        %v639 = vpop.xlane.xlu0 %638
        %v640 = vsub.f32 %v394, %v630
        %v641 = vsub.f32 %v471, %v633
        %v642 = vsub.f32 %v548, %v636
        %v643 = vsub.f32 %v625, %v639
        %v644 = vmul.f32 %v640, 1.442695
        %v645 = vpow.pop %v644
        %v646 = vmul.f32 %v641, 1.442695
        %v647 = vpow.pop %v646
        %v648 = vmul.f32 %v642, 1.442695
        %v649 = vpow.pop %v648
        %v650 = vmul.f32 %v643, 1.442695
        %v651 = vpow.pop %v650
        %v652 = vsel %vm322, %v645, 0.0
        %653 = vadd.xlane.f32.xlu0 %v652
        %v654 = vpop.xlane.xlu0 %653
        %v655 = vsel %vm322, %v647, 0.0
        %656 = vadd.xlane.f32.xlu0 %v655
        %v657 = vpop.xlane.xlu0 %656
        %v658 = vsel %vm322, %v649, 0.0
        %659 = vadd.xlane.f32.xlu0 %v658
        %v660 = vpop.xlane.xlu0 %659
        %v661 = vsel %vm322, %v651, 0.0
        %662 = vadd.xlane.f32.xlu0 %v661
        %v663 = vpop.xlane.xlu0 %662
        %v664 = vrcp.pop %v654
        %v665 = vmul.f32 %v645, %v664
        %v666 = vrcp.pop %v657
        %v667 = vmul.f32 %v647, %v666
        %v668 = vrcp.pop %v660
        %v669 = vmul.f32 %v649, %v668
        %v670 = vrcp.pop %v663
        %v671 = vmul.f32 %v651, %v670
        %672 = vrot.lane.b32.xlu0 %v301, 64
        %v673 = vpop.permute.xlu0 %672
        %v676 = vsel %vm322, %v665, 0
        %678 = vmatprep.subr.mxu0 0.0
        %679 = vmatpush1.msra.mxu0 0.0
        %680 = vmatprep.subr.mxu0 0.0
        %681 = vmatpush1.msra.mxu0 0.0
        %682 = vmatprep.subr.mxu0 0.0
        %683 = vmatpush1.msra.mxu0 0.0
        %684 = vmatprep.subr.mxu0 0.0
        %685 = vmatpush1.msra.mxu0 0.0
        %686 = vmatprep.subr.mxu0 0.0
        %687 = vmatpush1.msra.mxu0 0.0
        %688 = vmatprep.subr.mxu0 0.0
        %689 = vmatpush1.msra.mxu0 0.0
        %690 = vmatprep.subr.mxu0 0.0
        %691 = vmatpush1.msra.mxu0 0.0
        %692 = vmatprep.subr.mxu0 0.0
        %693 = vmatpush1.msra.mxu0 0.0
        %694 = vmatprep.subr.mxu0 0.0
        %695 = vmatpush1.msra.mxu0 0.0
        %696 = vmatprep.subr.mxu0 0.0
        %697 = vmatpush1.msra.mxu0 0.0
        %698 = vmatprep.subr.mxu0 0.0
        %699 = vmatpush1.msra.mxu0 0.0
        %700 = vmatprep.subr.mxu0 0.0
        %701 = vmatpush1.msra.mxu0 0.0
        %702 = vmatprep.subr.mxu0 0.0
        %703 = vmatpush1.msra.mxu0 0.0
        %704 = vmatprep.subr.mxu0 0.0
        %705 = vmatpush1.msra.mxu0 0.0
        %706 = vmatprep.subr.mxu0 0.0
        %707 = vmatpush1.msra.mxu0 0.0
        %708 = vmatprep.subr.mxu0 0.0
        %709 = vmatpush1.msra.mxu0 %v673
        %710 = vmatprep.subr.mxu0 0.0
        %711 = vmatpush2.msra.mxu0 0.0
        %712 = vmatprep.subr.mxu0 0.0
        %713 = vmatpush2.msra.mxu0 0.0
        %714 = vmatprep.subr.mxu0 0.0
        %715 = vmatpush2.msra.mxu0 0.0
        %716 = vmatprep.subr.mxu0 0.0
        %717 = vmatpush2.msra.mxu0 0.0
        %718 = vmatprep.subr.mxu0 0.0
        %719 = vmatpush2.msra.mxu0 0.0
        %720 = vmatprep.subr.mxu0 0.0
        %721 = vmatpush2.msra.mxu0 0.0
        %722 = vmatprep.subr.mxu0 0.0
        %723 = vmatpush2.msra.mxu0 0.0
        %724 = vmatprep.subr.mxu0 0.0
        %725 = vmatpush2.msra.mxu0 0.0
        %726 = vmatprep.subr.mxu0 0.0
        %727 = vmatpush2.msra.mxu0 0.0
        %728 = vmatprep.subr.mxu0 0.0
        %729 = vmatpush2.msra.mxu0 0.0
        %730 = vmatprep.subr.mxu0 0.0
        %731 = vmatpush2.msra.mxu0 0.0
        %732 = vmatprep.subr.mxu0 0.0
        %733 = vmatpush2.msra.mxu0 0.0
        %734 = vmatprep.subr.mxu0 0.0
        %735 = vmatpush2.msra.mxu0 0.0
        %736 = vmatprep.subr.mxu0 0.0
        %737 = vmatpush2.msra.mxu0 0.0
        %738 = vmatprep.subr.mxu0 0.0
        %739 = vmatpush2.msra.mxu0 0.0
        %740 = vmatprep.subr.mxu0 0.0
        %741 = vmatpush2.msra.mxu0 0.0
        %742 = vmatprep.mubr.f32.mxu0 0.0
        %743 = vmatmul.mubr.f32.gmra.mxu0 %v676
        %v744 = vpop.f32.mrf.mxu0
        %v745 = vadd.f32 0.0, %v744
        %v746 = vpop.f32.mrf.mxu0
        %747 = vdwg.mxu0
        %748 = vrot.lane.b32.xlu0 %v306, 64
        %v749 = vpop.permute.xlu0 %748
        %v752 = vsel %vm322, %v667, 0
        %754 = vmatprep.subr.mxu0 0.0
        %755 = vmatpush1.msra.mxu0 0.0
        %756 = vmatprep.subr.mxu0 0.0
        %757 = vmatpush1.msra.mxu0 0.0
        %758 = vmatprep.subr.mxu0 0.0
        %759 = vmatpush1.msra.mxu0 0.0
        %760 = vmatprep.subr.mxu0 0.0
        %761 = vmatpush1.msra.mxu0 0.0
        %762 = vmatprep.subr.mxu0 0.0
        %763 = vmatpush1.msra.mxu0 0.0
        %764 = vmatprep.subr.mxu0 0.0
        %765 = vmatpush1.msra.mxu0 0.0
        %766 = vmatprep.subr.mxu0 0.0
        %767 = vmatpush1.msra.mxu0 0.0
        %768 = vmatprep.subr.mxu0 0.0
        %769 = vmatpush1.msra.mxu0 0.0
        %770 = vmatprep.subr.mxu0 0.0
        %771 = vmatpush1.msra.mxu0 0.0
        %772 = vmatprep.subr.mxu0 0.0
        %773 = vmatpush1.msra.mxu0 0.0
        %774 = vmatprep.subr.mxu0 0.0
        %775 = vmatpush1.msra.mxu0 0.0
        %776 = vmatprep.subr.mxu0 0.0
        %777 = vmatpush1.msra.mxu0 0.0
        %778 = vmatprep.subr.mxu0 0.0
        %779 = vmatpush1.msra.mxu0 0.0
        %780 = vmatprep.subr.mxu0 0.0
        %781 = vmatpush1.msra.mxu0 0.0
        %782 = vmatprep.subr.mxu0 0.0
        %783 = vmatpush1.msra.mxu0 0.0
        %784 = vmatprep.subr.mxu0 0.0
        %785 = vmatpush1.msra.mxu0 %v749
        %786 = vmatprep.subr.mxu0 0.0
        %787 = vmatpush2.msra.mxu0 0.0
        %788 = vmatprep.subr.mxu0 0.0
        %789 = vmatpush2.msra.mxu0 0.0
        %790 = vmatprep.subr.mxu0 0.0
        %791 = vmatpush2.msra.mxu0 0.0
        %792 = vmatprep.subr.mxu0 0.0
        %793 = vmatpush2.msra.mxu0 0.0
        %794 = vmatprep.subr.mxu0 0.0
        %795 = vmatpush2.msra.mxu0 0.0
        %796 = vmatprep.subr.mxu0 0.0
        %797 = vmatpush2.msra.mxu0 0.0
        %798 = vmatprep.subr.mxu0 0.0
        %799 = vmatpush2.msra.mxu0 0.0
        %800 = vmatprep.subr.mxu0 0.0
        %801 = vmatpush2.msra.mxu0 0.0
        %802 = vmatprep.subr.mxu0 0.0
        %803 = vmatpush2.msra.mxu0 0.0
        %804 = vmatprep.subr.mxu0 0.0
        %805 = vmatpush2.msra.mxu0 0.0
        %806 = vmatprep.subr.mxu0 0.0
        %807 = vmatpush2.msra.mxu0 0.0
        %808 = vmatprep.subr.mxu0 0.0
        %809 = vmatpush2.msra.mxu0 0.0
        %810 = vmatprep.subr.mxu0 0.0
        %811 = vmatpush2.msra.mxu0 0.0
        %812 = vmatprep.subr.mxu0 0.0
        %813 = vmatpush2.msra.mxu0 0.0
        %814 = vmatprep.subr.mxu0 0.0
        %815 = vmatpush2.msra.mxu0 0.0
        %816 = vmatprep.subr.mxu0 0.0
        %817 = vmatpush2.msra.mxu0 0.0
        %818 = vmatprep.mubr.f32.mxu0 0.0
        %819 = vmatmul.mubr.f32.gmra.mxu0 %v752
        %v820 = vpop.f32.mrf.mxu0
        %v821 = vadd.f32 0.0, %v820
        %v822 = vpop.f32.mrf.mxu0
        %823 = vdwg.mxu0
        %824 = vrot.lane.b32.xlu0 %v311, 64
        %v825 = vpop.permute.xlu0 %824
        %v828 = vsel %vm322, %v669, 0
        %830 = vmatprep.subr.mxu0 0.0
        %831 = vmatpush1.msra.mxu0 0.0
        %832 = vmatprep.subr.mxu0 0.0
        %833 = vmatpush1.msra.mxu0 0.0
        %834 = vmatprep.subr.mxu0 0.0
        %835 = vmatpush1.msra.mxu0 0.0
        %836 = vmatprep.subr.mxu0 0.0
        %837 = vmatpush1.msra.mxu0 0.0
        %838 = vmatprep.subr.mxu0 0.0
        %839 = vmatpush1.msra.mxu0 0.0
        %840 = vmatprep.subr.mxu0 0.0
        %841 = vmatpush1.msra.mxu0 0.0
        %842 = vmatprep.subr.mxu0 0.0
        %843 = vmatpush1.msra.mxu0 0.0
        %844 = vmatprep.subr.mxu0 0.0
        %845 = vmatpush1.msra.mxu0 0.0
        %846 = vmatprep.subr.mxu0 0.0
        %847 = vmatpush1.msra.mxu0 0.0
        %848 = vmatprep.subr.mxu0 0.0
        %849 = vmatpush1.msra.mxu0 0.0
        %850 = vmatprep.subr.mxu0 0.0
        %851 = vmatpush1.msra.mxu0 0.0
        %852 = vmatprep.subr.mxu0 0.0
        %853 = vmatpush1.msra.mxu0 0.0
        %854 = vmatprep.subr.mxu0 0.0
        %855 = vmatpush1.msra.mxu0 0.0
        %856 = vmatprep.subr.mxu0 0.0
        %857 = vmatpush1.msra.mxu0 0.0
        %858 = vmatprep.subr.mxu0 0.0
        %859 = vmatpush1.msra.mxu0 0.0
        %860 = vmatprep.subr.mxu0 0.0
        %861 = vmatpush1.msra.mxu0 %v825
        %862 = vmatprep.subr.mxu0 0.0
        %863 = vmatpush2.msra.mxu0 0.0
        %864 = vmatprep.subr.mxu0 0.0
        %865 = vmatpush2.msra.mxu0 0.0
        %866 = vmatprep.subr.mxu0 0.0
        %867 = vmatpush2.msra.mxu0 0.0
        %868 = vmatprep.subr.mxu0 0.0
        %869 = vmatpush2.msra.mxu0 0.0
        %870 = vmatprep.subr.mxu0 0.0
        %871 = vmatpush2.msra.mxu0 0.0
        %872 = vmatprep.subr.mxu0 0.0
        %873 = vmatpush2.msra.mxu0 0.0
        %874 = vmatprep.subr.mxu0 0.0
        %875 = vmatpush2.msra.mxu0 0.0
        %876 = vmatprep.subr.mxu0 0.0
        %877 = vmatpush2.msra.mxu0 0.0
        %878 = vmatprep.subr.mxu0 0.0
        %879 = vmatpush2.msra.mxu0 0.0
        %880 = vmatprep.subr.mxu0 0.0
        %881 = vmatpush2.msra.mxu0 0.0
        %882 = vmatprep.subr.mxu0 0.0
        %883 = vmatpush2.msra.mxu0 0.0
        %884 = vmatprep.subr.mxu0 0.0
        %885 = vmatpush2.msra.mxu0 0.0
        %886 = vmatprep.subr.mxu0 0.0
        %887 = vmatpush2.msra.mxu0 0.0
        %888 = vmatprep.subr.mxu0 0.0
        %889 = vmatpush2.msra.mxu0 0.0
        %890 = vmatprep.subr.mxu0 0.0
        %891 = vmatpush2.msra.mxu0 0.0
        %892 = vmatprep.subr.mxu0 0.0
        %893 = vmatpush2.msra.mxu0 0.0
        %894 = vmatprep.mubr.f32.mxu0 0.0
        %895 = vmatmul.mubr.f32.gmra.mxu0 %v828
        %v896 = vpop.f32.mrf.mxu0
        %v897 = vadd.f32 0.0, %v896
        %v898 = vpop.f32.mrf.mxu0
        %899 = vdwg.mxu0
        %900 = vrot.lane.b32.xlu0 %v316, 64
        %v901 = vpop.permute.xlu0 %900
        %v904 = vsel %vm322, %v671, 0
        %906 = vmatprep.subr.mxu0 0.0
        %907 = vmatpush1.msra.mxu0 0.0
        %908 = vmatprep.subr.mxu0 0.0
        %909 = vmatpush1.msra.mxu0 0.0
        %910 = vmatprep.subr.mxu0 0.0
        %911 = vmatpush1.msra.mxu0 0.0
        %912 = vmatprep.subr.mxu0 0.0
        %913 = vmatpush1.msra.mxu0 0.0
        %914 = vmatprep.subr.mxu0 0.0
        %915 = vmatpush1.msra.mxu0 0.0
        %916 = vmatprep.subr.mxu0 0.0
        %917 = vmatpush1.msra.mxu0 0.0
        %918 = vmatprep.subr.mxu0 0.0
        %919 = vmatpush1.msra.mxu0 0.0
        %920 = vmatprep.subr.mxu0 0.0
        %921 = vmatpush1.msra.mxu0 0.0
        %922 = vmatprep.subr.mxu0 0.0
        %923 = vmatpush1.msra.mxu0 0.0
        %924 = vmatprep.subr.mxu0 0.0
        %925 = vmatpush1.msra.mxu0 0.0
        %926 = vmatprep.subr.mxu0 0.0
        %927 = vmatpush1.msra.mxu0 0.0
        %928 = vmatprep.subr.mxu0 0.0
        %929 = vmatpush1.msra.mxu0 0.0
        %930 = vmatprep.subr.mxu0 0.0
        %931 = vmatpush1.msra.mxu0 0.0
        %932 = vmatprep.subr.mxu0 0.0
        %933 = vmatpush1.msra.mxu0 0.0
        %934 = vmatprep.subr.mxu0 0.0
        %935 = vmatpush1.msra.mxu0 0.0
        %936 = vmatprep.subr.mxu0 0.0
        %937 = vmatpush1.msra.mxu0 %v901
        %938 = vmatprep.subr.mxu0 0.0
        %939 = vmatpush2.msra.mxu0 0.0
        %940 = vmatprep.subr.mxu0 0.0
        %941 = vmatpush2.msra.mxu0 0.0
        %942 = vmatprep.subr.mxu0 0.0
        %943 = vmatpush2.msra.mxu0 0.0
        %944 = vmatprep.subr.mxu0 0.0
        %945 = vmatpush2.msra.mxu0 0.0
        %946 = vmatprep.subr.mxu0 0.0
        %947 = vmatpush2.msra.mxu0 0.0
        %948 = vmatprep.subr.mxu0 0.0
        %949 = vmatpush2.msra.mxu0 0.0
        %950 = vmatprep.subr.mxu0 0.0
        %951 = vmatpush2.msra.mxu0 0.0
        %952 = vmatprep.subr.mxu0 0.0
        %953 = vmatpush2.msra.mxu0 0.0
        %954 = vmatprep.subr.mxu0 0.0
        %955 = vmatpush2.msra.mxu0 0.0
        %956 = vmatprep.subr.mxu0 0.0
        %957 = vmatpush2.msra.mxu0 0.0
        %958 = vmatprep.subr.mxu0 0.0
        %959 = vmatpush2.msra.mxu0 0.0
        %960 = vmatprep.subr.mxu0 0.0
        %961 = vmatpush2.msra.mxu0 0.0
        %962 = vmatprep.subr.mxu0 0.0
        %963 = vmatpush2.msra.mxu0 0.0
        %964 = vmatprep.subr.mxu0 0.0
        %965 = vmatpush2.msra.mxu0 0.0
        %966 = vmatprep.subr.mxu0 0.0
        %967 = vmatpush2.msra.mxu0 0.0
        %968 = vmatprep.subr.mxu0 0.0
        %969 = vmatpush2.msra.mxu0 0.0
        %970 = vmatprep.mubr.f32.mxu0 0.0
        %971 = vmatmul.mubr.f32.gmra.mxu0 %v904
        %v972 = vpop.f32.mrf.mxu0
        %v973 = vadd.f32 0.0, %v972
        %v974 = vpop.f32.mrf.mxu0
        %975 = vdwg.mxu0
        %976 = vrot.lane.b32.xlu0 %v301, 120
        %v977 = vpop.permute.xlu0 %976
        %978 = vrot.lane.b32.xlu0 %v301, 88
        %v979 = vpop.permute.xlu0 %978
        %v980 = vsel %vm322, %v977, 0
        %v982 = vsel %vm322, %v979, 0
        %984 = vmatprep.subr.mxu0 0.0
        %985 = vmatpush1.xpose.msra.mxu0 0.0
        %986 = vmatprep.subr.mxu0 0.0
        %987 = vmatpush1.xpose.msra.mxu0 0.0
        %988 = vmatprep.subr.mxu0 0.0
        %989 = vmatpush1.xpose.msra.mxu0 0.0
        %990 = vmatprep.subr.mxu0 0.0
        %991 = vmatpush1.xpose.msra.mxu0 0.0
        %992 = vmatprep.subr.mxu0 0.0
        %993 = vmatpush1.xpose.msra.mxu0 0.0
        %994 = vmatprep.subr.mxu0 0.0
        %995 = vmatpush1.xpose.msra.mxu0 0.0
        %996 = vmatprep.subr.mxu0 0.0
        %997 = vmatpush1.xpose.msra.mxu0 0.0
        %998 = vmatprep.subr.mxu0 0.0
        %999 = vmatpush1.xpose.msra.mxu0 0.0
        %1000 = vmatprep.subr.mxu0 0.0
        %1001 = vmatpush1.xpose.msra.mxu0 0.0
        %1002 = vmatprep.subr.mxu0 0.0
        %1003 = vmatpush1.xpose.msra.mxu0 0.0
        %1004 = vmatprep.subr.mxu0 0.0
        %1005 = vmatpush1.xpose.msra.mxu0 0.0
        %1006 = vmatprep.subr.mxu0 0.0
        %1007 = vmatpush1.xpose.msra.mxu0 0.0
        %1008 = vmatprep.subr.mxu0 0.0
        %1009 = vmatpush1.xpose.msra.mxu0 0.0
        %1010 = vmatprep.subr.mxu0 0.0
        %1011 = vmatpush1.xpose.msra.mxu0 0.0
        %1012 = vmatprep.subr.mxu0 0.0
        %1013 = vmatpush1.xpose.msra.mxu0 0.0
        %1014 = vmatprep.subr.mxu0 0.0
        %1015 = vmatpush1.xpose.msra.mxu0 %v982
        %1016 = vmatprep.subr.mxu0 0.0
        %1017 = vmatpush2.xpose.msra.mxu0 0.0
        %1018 = vmatprep.subr.mxu0 0.0
        %1019 = vmatpush2.xpose.msra.mxu0 0.0
        %1020 = vmatprep.subr.mxu0 0.0
        %1021 = vmatpush2.xpose.msra.mxu0 0.0
        %1022 = vmatprep.subr.mxu0 0.0
        %1023 = vmatpush2.xpose.msra.mxu0 0.0
        %1024 = vmatprep.subr.mxu0 0.0
        %1025 = vmatpush2.xpose.msra.mxu0 0.0
        %1026 = vmatprep.subr.mxu0 0.0
        %1027 = vmatpush2.xpose.msra.mxu0 0.0
        %1028 = vmatprep.subr.mxu0 0.0
        %1029 = vmatpush2.xpose.msra.mxu0 0.0
        %1030 = vmatprep.subr.mxu0 0.0
        %1031 = vmatpush2.xpose.msra.mxu0 0.0
        %1032 = vmatprep.subr.mxu0 0.0
        %1033 = vmatpush2.xpose.msra.mxu0 0.0
        %1034 = vmatprep.subr.mxu0 0.0
        %1035 = vmatpush2.xpose.msra.mxu0 0.0
        %1036 = vmatprep.subr.mxu0 0.0
        %1037 = vmatpush2.xpose.msra.mxu0 0.0
        %1038 = vmatprep.subr.mxu0 0.0
        %1039 = vmatpush2.xpose.msra.mxu0 0.0
        %1040 = vmatprep.subr.mxu0 0.0
        %1041 = vmatpush2.xpose.msra.mxu0 0.0
        %1042 = vmatprep.subr.mxu0 0.0
        %1043 = vmatpush2.xpose.msra.mxu0 0.0
        %1044 = vmatprep.subr.mxu0 0.0
        %1045 = vmatpush2.xpose.msra.mxu0 0.0
        %1046 = vmatprep.subr.mxu0 0.0
        %1047 = vmatpush2.xpose.msra.mxu0 0.0
        %1048 = vmatprep.mubr.f32.mxu0 0.0
        %1049 = vmatmul.mubr.f32.gmra.mxu0 %v980
        %v1050 = vpop.f32.mrf.mxu0
        %v1051 = vadd.f32 0.0, %v1050
        %v1052 = vpop.f32.mrf.mxu0
        %1053 = vdwg.mxu0
        %1054 = vrot.lane.b32.xlu0 %v306, 120
        %v1055 = vpop.permute.xlu0 %1054
        %1056 = vrot.lane.b32.xlu0 %v306, 88
        %v1057 = vpop.permute.xlu0 %1056
        %v1058 = vsel %vm322, %v1055, 0
        %v1060 = vsel %vm322, %v1057, 0
        %1062 = vmatprep.subr.mxu0 0.0
        %1063 = vmatpush1.xpose.msra.mxu0 0.0
        %1064 = vmatprep.subr.mxu0 0.0
        %1065 = vmatpush1.xpose.msra.mxu0 0.0
        %1066 = vmatprep.subr.mxu0 0.0
        %1067 = vmatpush1.xpose.msra.mxu0 0.0
        %1068 = vmatprep.subr.mxu0 0.0
        %1069 = vmatpush1.xpose.msra.mxu0 0.0
        %1070 = vmatprep.subr.mxu0 0.0
        %1071 = vmatpush1.xpose.msra.mxu0 0.0
        %1072 = vmatprep.subr.mxu0 0.0
        %1073 = vmatpush1.xpose.msra.mxu0 0.0
        %1074 = vmatprep.subr.mxu0 0.0
        %1075 = vmatpush1.xpose.msra.mxu0 0.0
        %1076 = vmatprep.subr.mxu0 0.0
        %1077 = vmatpush1.xpose.msra.mxu0 0.0
        %1078 = vmatprep.subr.mxu0 0.0
        %1079 = vmatpush1.xpose.msra.mxu0 0.0
        %1080 = vmatprep.subr.mxu0 0.0
        %1081 = vmatpush1.xpose.msra.mxu0 0.0
        %1082 = vmatprep.subr.mxu0 0.0
        %1083 = vmatpush1.xpose.msra.mxu0 0.0
        %1084 = vmatprep.subr.mxu0 0.0
        %1085 = vmatpush1.xpose.msra.mxu0 0.0
        %1086 = vmatprep.subr.mxu0 0.0
        %1087 = vmatpush1.xpose.msra.mxu0 0.0
        %1088 = vmatprep.subr.mxu0 0.0
        %1089 = vmatpush1.xpose.msra.mxu0 0.0
        %1090 = vmatprep.subr.mxu0 0.0
        %1091 = vmatpush1.xpose.msra.mxu0 0.0
        %1092 = vmatprep.subr.mxu0 0.0
        %1093 = vmatpush1.xpose.msra.mxu0 %v1060
        %1094 = vmatprep.subr.mxu0 0.0
        %1095 = vmatpush2.xpose.msra.mxu0 0.0
        %1096 = vmatprep.subr.mxu0 0.0
        %1097 = vmatpush2.xpose.msra.mxu0 0.0
        %1098 = vmatprep.subr.mxu0 0.0
        %1099 = vmatpush2.xpose.msra.mxu0 0.0
        %1100 = vmatprep.subr.mxu0 0.0
        %1101 = vmatpush2.xpose.msra.mxu0 0.0
        %1102 = vmatprep.subr.mxu0 0.0
        %1103 = vmatpush2.xpose.msra.mxu0 0.0
        %1104 = vmatprep.subr.mxu0 0.0
        %1105 = vmatpush2.xpose.msra.mxu0 0.0
        %1106 = vmatprep.subr.mxu0 0.0
        %1107 = vmatpush2.xpose.msra.mxu0 0.0
        %1108 = vmatprep.subr.mxu0 0.0
        %1109 = vmatpush2.xpose.msra.mxu0 0.0
        %1110 = vmatprep.subr.mxu0 0.0
        %1111 = vmatpush2.xpose.msra.mxu0 0.0
        %1112 = vmatprep.subr.mxu0 0.0
        %1113 = vmatpush2.xpose.msra.mxu0 0.0
        %1114 = vmatprep.subr.mxu0 0.0
        %1115 = vmatpush2.xpose.msra.mxu0 0.0
        %1116 = vmatprep.subr.mxu0 0.0
        %1117 = vmatpush2.xpose.msra.mxu0 0.0
        %1118 = vmatprep.subr.mxu0 0.0
        %1119 = vmatpush2.xpose.msra.mxu0 0.0
        %1120 = vmatprep.subr.mxu0 0.0
        %1121 = vmatpush2.xpose.msra.mxu0 0.0
        %1122 = vmatprep.subr.mxu0 0.0
        %1123 = vmatpush2.xpose.msra.mxu0 0.0
        %1124 = vmatprep.subr.mxu0 0.0
        %1125 = vmatpush2.xpose.msra.mxu0 0.0
        %1126 = vmatprep.mubr.f32.mxu0 0.0
        %1127 = vmatmul.mubr.f32.gmra.mxu0 %v1058
        %v1128 = vpop.f32.mrf.mxu0
        %v1129 = vadd.f32 0.0, %v1128
        %v1130 = vpop.f32.mrf.mxu0
        %1131 = vdwg.mxu0
        %1132 = vrot.lane.b32.xlu0 %v311, 120
        %v1133 = vpop.permute.xlu0 %1132
        %1134 = vrot.lane.b32.xlu0 %v311, 88
        %v1135 = vpop.permute.xlu0 %1134
        %v1136 = vsel %vm322, %v1133, 0
        %v1138 = vsel %vm322, %v1135, 0
        %1140 = vmatprep.subr.mxu0 0.0
        %1141 = vmatpush1.xpose.msra.mxu0 0.0
        %1142 = vmatprep.subr.mxu0 0.0
        %1143 = vmatpush1.xpose.msra.mxu0 0.0
        %1144 = vmatprep.subr.mxu0 0.0
        %1145 = vmatpush1.xpose.msra.mxu0 0.0
        %1146 = vmatprep.subr.mxu0 0.0
        %1147 = vmatpush1.xpose.msra.mxu0 0.0
        %1148 = vmatprep.subr.mxu0 0.0
        %1149 = vmatpush1.xpose.msra.mxu0 0.0
        %1150 = vmatprep.subr.mxu0 0.0
        %1151 = vmatpush1.xpose.msra.mxu0 0.0
        %1152 = vmatprep.subr.mxu0 0.0
        %1153 = vmatpush1.xpose.msra.mxu0 0.0
        %1154 = vmatprep.subr.mxu0 0.0
        %1155 = vmatpush1.xpose.msra.mxu0 0.0
        %1156 = vmatprep.subr.mxu0 0.0
        %1157 = vmatpush1.xpose.msra.mxu0 0.0
        %1158 = vmatprep.subr.mxu0 0.0
        %1159 = vmatpush1.xpose.msra.mxu0 0.0
        %1160 = vmatprep.subr.mxu0 0.0
        %1161 = vmatpush1.xpose.msra.mxu0 0.0
        %1162 = vmatprep.subr.mxu0 0.0
        %1163 = vmatpush1.xpose.msra.mxu0 0.0
        %1164 = vmatprep.subr.mxu0 0.0
        %1165 = vmatpush1.xpose.msra.mxu0 0.0
        %1166 = vmatprep.subr.mxu0 0.0
        %1167 = vmatpush1.xpose.msra.mxu0 0.0
        %1168 = vmatprep.subr.mxu0 0.0
        %1169 = vmatpush1.xpose.msra.mxu0 0.0
        %1170 = vmatprep.subr.mxu0 0.0
        %1171 = vmatpush1.xpose.msra.mxu0 %v1138
        %1172 = vmatprep.subr.mxu0 0.0
        %1173 = vmatpush2.xpose.msra.mxu0 0.0
        %1174 = vmatprep.subr.mxu0 0.0
        %1175 = vmatpush2.xpose.msra.mxu0 0.0
        %1176 = vmatprep.subr.mxu0 0.0
        %1177 = vmatpush2.xpose.msra.mxu0 0.0
        %1178 = vmatprep.subr.mxu0 0.0
        %1179 = vmatpush2.xpose.msra.mxu0 0.0
        %1180 = vmatprep.subr.mxu0 0.0
        %1181 = vmatpush2.xpose.msra.mxu0 0.0
        %1182 = vmatprep.subr.mxu0 0.0
        %1183 = vmatpush2.xpose.msra.mxu0 0.0
        %1184 = vmatprep.subr.mxu0 0.0
        %1185 = vmatpush2.xpose.msra.mxu0 0.0
        %1186 = vmatprep.subr.mxu0 0.0
        %1187 = vmatpush2.xpose.msra.mxu0 0.0
        %1188 = vmatprep.subr.mxu0 0.0
        %1189 = vmatpush2.xpose.msra.mxu0 0.0
        %1190 = vmatprep.subr.mxu0 0.0
        %1191 = vmatpush2.xpose.msra.mxu0 0.0
        %1192 = vmatprep.subr.mxu0 0.0
        %1193 = vmatpush2.xpose.msra.mxu0 0.0
        %1194 = vmatprep.subr.mxu0 0.0
        %1195 = vmatpush2.xpose.msra.mxu0 0.0
        %1196 = vmatprep.subr.mxu0 0.0
        %1197 = vmatpush2.xpose.msra.mxu0 0.0
        %1198 = vmatprep.subr.mxu0 0.0
        %1199 = vmatpush2.xpose.msra.mxu0 0.0
        %1200 = vmatprep.subr.mxu0 0.0
        %1201 = vmatpush2.xpose.msra.mxu0 0.0
        %1202 = vmatprep.subr.mxu0 0.0
        %1203 = vmatpush2.xpose.msra.mxu0 0.0
        %1204 = vmatprep.mubr.f32.mxu0 0.0
        %1205 = vmatmul.mubr.f32.gmra.mxu0 %v1136
        %v1206 = vpop.f32.mrf.mxu0
        %v1207 = vadd.f32 0.0, %v1206
        %v1208 = vpop.f32.mrf.mxu0
        %1209 = vdwg.mxu0
        %1210 = vrot.lane.b32.xlu0 %v316, 120
        %v1211 = vpop.permute.xlu0 %1210
        %1212 = vrot.lane.b32.xlu0 %v316, 88
        %v1213 = vpop.permute.xlu0 %1212
        %v1214 = vsel %vm322, %v1211, 0
        %v1216 = vsel %vm322, %v1213, 0
        %1218 = vmatprep.subr.mxu0 0.0
        %1219 = vmatpush1.xpose.msra.mxu0 0.0
        %1220 = vmatprep.subr.mxu0 0.0
        %1221 = vmatpush1.xpose.msra.mxu0 0.0
        %1222 = vmatprep.subr.mxu0 0.0
        %1223 = vmatpush1.xpose.msra.mxu0 0.0
        %1224 = vmatprep.subr.mxu0 0.0
        %1225 = vmatpush1.xpose.msra.mxu0 0.0
        %1226 = vmatprep.subr.mxu0 0.0
        %1227 = vmatpush1.xpose.msra.mxu0 0.0
        %1228 = vmatprep.subr.mxu0 0.0
        %1229 = vmatpush1.xpose.msra.mxu0 0.0
        %1230 = vmatprep.subr.mxu0 0.0
        %1231 = vmatpush1.xpose.msra.mxu0 0.0
        %1232 = vmatprep.subr.mxu0 0.0
        %1233 = vmatpush1.xpose.msra.mxu0 0.0
        %1234 = vmatprep.subr.mxu0 0.0
        %1235 = vmatpush1.xpose.msra.mxu0 0.0
        %1236 = vmatprep.subr.mxu0 0.0
        %1237 = vmatpush1.xpose.msra.mxu0 0.0
        %1238 = vmatprep.subr.mxu0 0.0
        %1239 = vmatpush1.xpose.msra.mxu0 0.0
        %1240 = vmatprep.subr.mxu0 0.0
        %1241 = vmatpush1.xpose.msra.mxu0 0.0
        %1242 = vmatprep.subr.mxu0 0.0
        %1243 = vmatpush1.xpose.msra.mxu0 0.0
        %1244 = vmatprep.subr.mxu0 0.0
        %1245 = vmatpush1.xpose.msra.mxu0 0.0
        %1246 = vmatprep.subr.mxu0 0.0
        %1247 = vmatpush1.xpose.msra.mxu0 0.0
        %1248 = vmatprep.subr.mxu0 0.0
        %1249 = vmatpush1.xpose.msra.mxu0 %v1216
        %1250 = vmatprep.subr.mxu0 0.0
        %1251 = vmatpush2.xpose.msra.mxu0 0.0
        %1252 = vmatprep.subr.mxu0 0.0
        %1253 = vmatpush2.xpose.msra.mxu0 0.0
        %1254 = vmatprep.subr.mxu0 0.0
        %1255 = vmatpush2.xpose.msra.mxu0 0.0
        %1256 = vmatprep.subr.mxu0 0.0
        %1257 = vmatpush2.xpose.msra.mxu0 0.0
        %1258 = vmatprep.subr.mxu0 0.0
        %1259 = vmatpush2.xpose.msra.mxu0 0.0
        %1260 = vmatprep.subr.mxu0 0.0
        %1261 = vmatpush2.xpose.msra.mxu0 0.0
        %1262 = vmatprep.subr.mxu0 0.0
        %1263 = vmatpush2.xpose.msra.mxu0 0.0
        %1264 = vmatprep.subr.mxu0 0.0
        %1265 = vmatpush2.xpose.msra.mxu0 0.0
        %1266 = vmatprep.subr.mxu0 0.0
        %1267 = vmatpush2.xpose.msra.mxu0 0.0
        %1268 = vmatprep.subr.mxu0 0.0
        %1269 = vmatpush2.xpose.msra.mxu0 0.0
        %1270 = vmatprep.subr.mxu0 0.0
        %1271 = vmatpush2.xpose.msra.mxu0 0.0
        %1272 = vmatprep.subr.mxu0 0.0
        %1273 = vmatpush2.xpose.msra.mxu0 0.0
        %1274 = vmatprep.subr.mxu0 0.0
        %1275 = vmatpush2.xpose.msra.mxu0 0.0
        %1276 = vmatprep.subr.mxu0 0.0
        %1277 = vmatpush2.xpose.msra.mxu0 0.0
        %1278 = vmatprep.subr.mxu0 0.0
        %1279 = vmatpush2.xpose.msra.mxu0 0.0
        %1280 = vmatprep.subr.mxu0 0.0
        %1281 = vmatpush2.xpose.msra.mxu0 0.0
        %1282 = vmatprep.mubr.f32.mxu0 0.0
        %1283 = vmatmul.mubr.f32.gmra.mxu0 %v1214
        %v1284 = vpop.f32.mrf.mxu0
        %v1285 = vadd.f32 0.0, %v1284
        %v1286 = vpop.f32.mrf.mxu0
        %1287 = vdwg.mxu0
        %v1288 = vsel %vm322, %v1051, -inf
        %1289 = vmax.xlane.f32.xlu0 %v1288
        %v1290 = vpop.xlane.xlu0 %1289
        %v1291 = vsel %vm322, %v1129, -inf
        %1292 = vmax.xlane.f32.xlu0 %v1291
        %v1293 = vpop.xlane.xlu0 %1292
        %v1294 = vsel %vm322, %v1207, -inf
        %1295 = vmax.xlane.f32.xlu0 %v1294
        %v1296 = vpop.xlane.xlu0 %1295
        %v1297 = vsel %vm322, %v1285, -inf
        %1298 = vmax.xlane.f32.xlu0 %v1297
        %v1299 = vpop.xlane.xlu0 %1298
        %v1300 = vsub.f32 %v1051, %v1290
        %v1301 = vsub.f32 %v1129, %v1293
        %v1302 = vsub.f32 %v1207, %v1296
        %v1303 = vsub.f32 %v1285, %v1299
        %v1304 = vmul.f32 %v1300, 1.442695
        %v1305 = vpow.pop %v1304
        %v1306 = vmul.f32 %v1301, 1.442695
        %v1307 = vpow.pop %v1306
        %v1308 = vmul.f32 %v1302, 1.442695
        %v1309 = vpow.pop %v1308
        %v1310 = vmul.f32 %v1303, 1.442695
        %v1311 = vpow.pop %v1310
        %v1312 = vsel %vm322, %v1305, 0.0
        %1313 = vadd.xlane.f32.xlu0 %v1312
        %v1314 = vpop.xlane.xlu0 %1313
        %v1315 = vsel %vm322, %v1307, 0.0
        %1316 = vadd.xlane.f32.xlu0 %v1315
        %v1317 = vpop.xlane.xlu0 %1316
        %v1318 = vsel %vm322, %v1309, 0.0
        %1319 = vadd.xlane.f32.xlu0 %v1318
        %v1320 = vpop.xlane.xlu0 %1319
        %v1321 = vsel %vm322, %v1311, 0.0
        %1322 = vadd.xlane.f32.xlu0 %v1321
        %v1323 = vpop.xlane.xlu0 %1322
        %v1324 = vrcp.pop %v1314
        %v1325 = vmul.f32 %v1305, %v1324
        %v1326 = vrcp.pop %v1317
        %v1327 = vmul.f32 %v1307, %v1326
        %v1328 = vrcp.pop %v1320
        %v1329 = vmul.f32 %v1309, %v1328
        %v1330 = vrcp.pop %v1323
        %v1331 = vmul.f32 %v1311, %v1330
        %1332 = vrot.lane.b32.xlu0 %v301, 56
        %v1333 = vpop.permute.xlu0 %1332
        %v1336 = vsel %vm322, %v1325, 0
        %1338 = vmatprep.subr.mxu0 0.0
        %1339 = vmatpush1.msra.mxu0 0.0
        %1340 = vmatprep.subr.mxu0 0.0
        %1341 = vmatpush1.msra.mxu0 0.0
        %1342 = vmatprep.subr.mxu0 0.0
        %1343 = vmatpush1.msra.mxu0 0.0
        %1344 = vmatprep.subr.mxu0 0.0
        %1345 = vmatpush1.msra.mxu0 0.0
        %1346 = vmatprep.subr.mxu0 0.0
        %1347 = vmatpush1.msra.mxu0 0.0
        %1348 = vmatprep.subr.mxu0 0.0
        %1349 = vmatpush1.msra.mxu0 0.0
        %1350 = vmatprep.subr.mxu0 0.0
        %1351 = vmatpush1.msra.mxu0 0.0
        %1352 = vmatprep.subr.mxu0 0.0
        %1353 = vmatpush1.msra.mxu0 0.0
        %1354 = vmatprep.subr.mxu0 0.0
        %1355 = vmatpush1.msra.mxu0 0.0
        %1356 = vmatprep.subr.mxu0 0.0
        %1357 = vmatpush1.msra.mxu0 0.0
        %1358 = vmatprep.subr.mxu0 0.0
        %1359 = vmatpush1.msra.mxu0 0.0
        %1360 = vmatprep.subr.mxu0 0.0
        %1361 = vmatpush1.msra.mxu0 0.0
        %1362 = vmatprep.subr.mxu0 0.0
        %1363 = vmatpush1.msra.mxu0 0.0
        %1364 = vmatprep.subr.mxu0 0.0
        %1365 = vmatpush1.msra.mxu0 0.0
        %1366 = vmatprep.subr.mxu0 0.0
        %1367 = vmatpush1.msra.mxu0 0.0
        %1368 = vmatprep.subr.mxu0 0.0
        %1369 = vmatpush1.msra.mxu0 %v1333
        %1370 = vmatprep.subr.mxu0 0.0
        %1371 = vmatpush2.msra.mxu0 0.0
        %1372 = vmatprep.subr.mxu0 0.0
        %1373 = vmatpush2.msra.mxu0 0.0
        %1374 = vmatprep.subr.mxu0 0.0
        %1375 = vmatpush2.msra.mxu0 0.0
        %1376 = vmatprep.subr.mxu0 0.0
        %1377 = vmatpush2.msra.mxu0 0.0
        %1378 = vmatprep.subr.mxu0 0.0
        %1379 = vmatpush2.msra.mxu0 0.0
        %1380 = vmatprep.subr.mxu0 0.0
        %1381 = vmatpush2.msra.mxu0 0.0
        %1382 = vmatprep.subr.mxu0 0.0
        %1383 = vmatpush2.msra.mxu0 0.0
        %1384 = vmatprep.subr.mxu0 0.0
        %1385 = vmatpush2.msra.mxu0 0.0
        %1386 = vmatprep.subr.mxu0 0.0
        %1387 = vmatpush2.msra.mxu0 0.0
        %1388 = vmatprep.subr.mxu0 0.0
        %1389 = vmatpush2.msra.mxu0 0.0
        %1390 = vmatprep.subr.mxu0 0.0
        %1391 = vmatpush2.msra.mxu0 0.0
        %1392 = vmatprep.subr.mxu0 0.0
        %1393 = vmatpush2.msra.mxu0 0.0
        %1394 = vmatprep.subr.mxu0 0.0
        %1395 = vmatpush2.msra.mxu0 0.0
        %1396 = vmatprep.subr.mxu0 0.0
        %1397 = vmatpush2.msra.mxu0 0.0
        %1398 = vmatprep.subr.mxu0 0.0
        %1399 = vmatpush2.msra.mxu0 0.0
        %1400 = vmatprep.subr.mxu0 0.0
        %1401 = vmatpush2.msra.mxu0 0.0
        %1402 = vmatprep.mubr.f32.mxu0 0.0
        %1403 = vmatmul.mubr.f32.gmra.mxu0 %v1336
        %v1404 = vpop.f32.mrf.mxu0
        %v1405 = vadd.f32 0.0, %v1404
        %v1406 = vpop.f32.mrf.mxu0
        %1407 = vdwg.mxu0
        %1408 = vrot.lane.b32.xlu0 %v306, 56
        %v1409 = vpop.permute.xlu0 %1408
        %v1412 = vsel %vm322, %v1327, 0
        %1414 = vmatprep.subr.mxu0 0.0
        %1415 = vmatpush1.msra.mxu0 0.0
        %1416 = vmatprep.subr.mxu0 0.0
        %1417 = vmatpush1.msra.mxu0 0.0
        %1418 = vmatprep.subr.mxu0 0.0
        %1419 = vmatpush1.msra.mxu0 0.0
        %1420 = vmatprep.subr.mxu0 0.0
        %1421 = vmatpush1.msra.mxu0 0.0
        %1422 = vmatprep.subr.mxu0 0.0
        %1423 = vmatpush1.msra.mxu0 0.0
        %1424 = vmatprep.subr.mxu0 0.0
        %1425 = vmatpush1.msra.mxu0 0.0
        %1426 = vmatprep.subr.mxu0 0.0
        %1427 = vmatpush1.msra.mxu0 0.0
        %1428 = vmatprep.subr.mxu0 0.0
        %1429 = vmatpush1.msra.mxu0 0.0
        %1430 = vmatprep.subr.mxu0 0.0
        %1431 = vmatpush1.msra.mxu0 0.0
        %1432 = vmatprep.subr.mxu0 0.0
        %1433 = vmatpush1.msra.mxu0 0.0
        %1434 = vmatprep.subr.mxu0 0.0
        %1435 = vmatpush1.msra.mxu0 0.0
        %1436 = vmatprep.subr.mxu0 0.0
        %1437 = vmatpush1.msra.mxu0 0.0
        %1438 = vmatprep.subr.mxu0 0.0
        %1439 = vmatpush1.msra.mxu0 0.0
        %1440 = vmatprep.subr.mxu0 0.0
        %1441 = vmatpush1.msra.mxu0 0.0
        %1442 = vmatprep.subr.mxu0 0.0
        %1443 = vmatpush1.msra.mxu0 0.0
        %1444 = vmatprep.subr.mxu0 0.0
        %1445 = vmatpush1.msra.mxu0 %v1409
        %1446 = vmatprep.subr.mxu0 0.0
        %1447 = vmatpush2.msra.mxu0 0.0
        %1448 = vmatprep.subr.mxu0 0.0
        %1449 = vmatpush2.msra.mxu0 0.0
        %1450 = vmatprep.subr.mxu0 0.0
        %1451 = vmatpush2.msra.mxu0 0.0
        %1452 = vmatprep.subr.mxu0 0.0
        %1453 = vmatpush2.msra.mxu0 0.0
        %1454 = vmatprep.subr.mxu0 0.0
        %1455 = vmatpush2.msra.mxu0 0.0
        %1456 = vmatprep.subr.mxu0 0.0
        %1457 = vmatpush2.msra.mxu0 0.0
        %1458 = vmatprep.subr.mxu0 0.0
        %1459 = vmatpush2.msra.mxu0 0.0
        %1460 = vmatprep.subr.mxu0 0.0
        %1461 = vmatpush2.msra.mxu0 0.0
        %1462 = vmatprep.subr.mxu0 0.0
        %1463 = vmatpush2.msra.mxu0 0.0
        %1464 = vmatprep.subr.mxu0 0.0
        %1465 = vmatpush2.msra.mxu0 0.0
        %1466 = vmatprep.subr.mxu0 0.0
        %1467 = vmatpush2.msra.mxu0 0.0
        %1468 = vmatprep.subr.mxu0 0.0
        %1469 = vmatpush2.msra.mxu0 0.0
        %1470 = vmatprep.subr.mxu0 0.0
        %1471 = vmatpush2.msra.mxu0 0.0
        %1472 = vmatprep.subr.mxu0 0.0
        %1473 = vmatpush2.msra.mxu0 0.0
        %1474 = vmatprep.subr.mxu0 0.0
        %1475 = vmatpush2.msra.mxu0 0.0
        %1476 = vmatprep.subr.mxu0 0.0
        %1477 = vmatpush2.msra.mxu0 0.0
        %1478 = vmatprep.mubr.f32.mxu0 0.0
        %1479 = vmatmul.mubr.f32.gmra.mxu0 %v1412
        %v1480 = vpop.f32.mrf.mxu0
        %v1481 = vadd.f32 0.0, %v1480
        %v1482 = vpop.f32.mrf.mxu0
        %1483 = vdwg.mxu0
        %1484 = vrot.lane.b32.xlu0 %v311, 56
        %v1485 = vpop.permute.xlu0 %1484
        %v1488 = vsel %vm322, %v1329, 0
        %1490 = vmatprep.subr.mxu0 0.0
        %1491 = vmatpush1.msra.mxu0 0.0
        %1492 = vmatprep.subr.mxu0 0.0
        %1493 = vmatpush1.msra.mxu0 0.0
        %1494 = vmatprep.subr.mxu0 0.0
        %1495 = vmatpush1.msra.mxu0 0.0
        %1496 = vmatprep.subr.mxu0 0.0
        %1497 = vmatpush1.msra.mxu0 0.0
        %1498 = vmatprep.subr.mxu0 0.0
        %1499 = vmatpush1.msra.mxu0 0.0
        %1500 = vmatprep.subr.mxu0 0.0
        %1501 = vmatpush1.msra.mxu0 0.0
        %1502 = vmatprep.subr.mxu0 0.0
        %1503 = vmatpush1.msra.mxu0 0.0
        %1504 = vmatprep.subr.mxu0 0.0
        %1505 = vmatpush1.msra.mxu0 0.0
        %1506 = vmatprep.subr.mxu0 0.0
        %1507 = vmatpush1.msra.mxu0 0.0
        %1508 = vmatprep.subr.mxu0 0.0
        %1509 = vmatpush1.msra.mxu0 0.0
        %1510 = vmatprep.subr.mxu0 0.0
        %1511 = vmatpush1.msra.mxu0 0.0
        %1512 = vmatprep.subr.mxu0 0.0
        %1513 = vmatpush1.msra.mxu0 0.0
        %1514 = vmatprep.subr.mxu0 0.0
        %1515 = vmatpush1.msra.mxu0 0.0
        %1516 = vmatprep.subr.mxu0 0.0
        %1517 = vmatpush1.msra.mxu0 0.0
        %1518 = vmatprep.subr.mxu0 0.0
        %1519 = vmatpush1.msra.mxu0 0.0
        %1520 = vmatprep.subr.mxu0 0.0
        %1521 = vmatpush1.msra.mxu0 %v1485
        %1522 = vmatprep.subr.mxu0 0.0
        %1523 = vmatpush2.msra.mxu0 0.0
        %1524 = vmatprep.subr.mxu0 0.0
        %1525 = vmatpush2.msra.mxu0 0.0
        %1526 = vmatprep.subr.mxu0 0.0
        %1527 = vmatpush2.msra.mxu0 0.0
        %1528 = vmatprep.subr.mxu0 0.0
        %1529 = vmatpush2.msra.mxu0 0.0
        %1530 = vmatprep.subr.mxu0 0.0
        %1531 = vmatpush2.msra.mxu0 0.0
        %1532 = vmatprep.subr.mxu0 0.0
        %1533 = vmatpush2.msra.mxu0 0.0
        %1534 = vmatprep.subr.mxu0 0.0
        %1535 = vmatpush2.msra.mxu0 0.0
        %1536 = vmatprep.subr.mxu0 0.0
        %1537 = vmatpush2.msra.mxu0 0.0
        %1538 = vmatprep.subr.mxu0 0.0
        %1539 = vmatpush2.msra.mxu0 0.0
        %1540 = vmatprep.subr.mxu0 0.0
        %1541 = vmatpush2.msra.mxu0 0.0
        %1542 = vmatprep.subr.mxu0 0.0
        %1543 = vmatpush2.msra.mxu0 0.0
        %1544 = vmatprep.subr.mxu0 0.0
        %1545 = vmatpush2.msra.mxu0 0.0
        %1546 = vmatprep.subr.mxu0 0.0
        %1547 = vmatpush2.msra.mxu0 0.0
        %1548 = vmatprep.subr.mxu0 0.0
        %1549 = vmatpush2.msra.mxu0 0.0
        %1550 = vmatprep.subr.mxu0 0.0
        %1551 = vmatpush2.msra.mxu0 0.0
        %1552 = vmatprep.subr.mxu0 0.0
        %1553 = vmatpush2.msra.mxu0 0.0
        %1554 = vmatprep.mubr.f32.mxu0 0.0
        %1555 = vmatmul.mubr.f32.gmra.mxu0 %v1488
        %v1556 = vpop.f32.mrf.mxu0
        %v1557 = vadd.f32 0.0, %v1556
        %v1558 = vpop.f32.mrf.mxu0
        %1559 = vdwg.mxu0
        %1560 = vrot.lane.b32.xlu0 %v316, 56
        %v1561 = vpop.permute.xlu0 %1560
        %v1564 = vsel %vm322, %v1331, 0
        %1566 = vmatprep.subr.mxu0 0.0
        %1567 = vmatpush1.msra.mxu0 0.0
        %1568 = vmatprep.subr.mxu0 0.0
        %1569 = vmatpush1.msra.mxu0 0.0
        %1570 = vmatprep.subr.mxu0 0.0
        %1571 = vmatpush1.msra.mxu0 0.0
        %1572 = vmatprep.subr.mxu0 0.0
        %1573 = vmatpush1.msra.mxu0 0.0
        %1574 = vmatprep.subr.mxu0 0.0
        %1575 = vmatpush1.msra.mxu0 0.0
        %1576 = vmatprep.subr.mxu0 0.0
        %1577 = vmatpush1.msra.mxu0 0.0
        %1578 = vmatprep.subr.mxu0 0.0
        %1579 = vmatpush1.msra.mxu0 0.0
        %1580 = vmatprep.subr.mxu0 0.0
        %1581 = vmatpush1.msra.mxu0 0.0
        %1582 = vmatprep.subr.mxu0 0.0
        %1583 = vmatpush1.msra.mxu0 0.0
        %1584 = vmatprep.subr.mxu0 0.0
        %1585 = vmatpush1.msra.mxu0 0.0
        %1586 = vmatprep.subr.mxu0 0.0
        %1587 = vmatpush1.msra.mxu0 0.0
        %1588 = vmatprep.subr.mxu0 0.0
        %1589 = vmatpush1.msra.mxu0 0.0
        %1590 = vmatprep.subr.mxu0 0.0
        %1591 = vmatpush1.msra.mxu0 0.0
        %1592 = vmatprep.subr.mxu0 0.0
        %1593 = vmatpush1.msra.mxu0 0.0
        %1594 = vmatprep.subr.mxu0 0.0
        %1595 = vmatpush1.msra.mxu0 0.0
        %1596 = vmatprep.subr.mxu0 0.0
        %1597 = vmatpush1.msra.mxu0 %v1561
        %1598 = vmatprep.subr.mxu0 0.0
        %1599 = vmatpush2.msra.mxu0 0.0
        %1600 = vmatprep.subr.mxu0 0.0
        %1601 = vmatpush2.msra.mxu0 0.0
        %1602 = vmatprep.subr.mxu0 0.0
        %1603 = vmatpush2.msra.mxu0 0.0
        %1604 = vmatprep.subr.mxu0 0.0
        %1605 = vmatpush2.msra.mxu0 0.0
        %1606 = vmatprep.subr.mxu0 0.0
        %1607 = vmatpush2.msra.mxu0 0.0
        %1608 = vmatprep.subr.mxu0 0.0
        %1609 = vmatpush2.msra.mxu0 0.0
        %1610 = vmatprep.subr.mxu0 0.0
        %1611 = vmatpush2.msra.mxu0 0.0
        %1612 = vmatprep.subr.mxu0 0.0
        %1613 = vmatpush2.msra.mxu0 0.0
        %1614 = vmatprep.subr.mxu0 0.0
        %1615 = vmatpush2.msra.mxu0 0.0
        %1616 = vmatprep.subr.mxu0 0.0
        %1617 = vmatpush2.msra.mxu0 0.0
        %1618 = vmatprep.subr.mxu0 0.0
        %1619 = vmatpush2.msra.mxu0 0.0
        %1620 = vmatprep.subr.mxu0 0.0
        %1621 = vmatpush2.msra.mxu0 0.0
        %1622 = vmatprep.subr.mxu0 0.0
        %1623 = vmatpush2.msra.mxu0 0.0
        %1624 = vmatprep.subr.mxu0 0.0
        %1625 = vmatpush2.msra.mxu0 0.0
        %1626 = vmatprep.subr.mxu0 0.0
        %1627 = vmatpush2.msra.mxu0 0.0
        %1628 = vmatprep.subr.mxu0 0.0
        %1629 = vmatpush2.msra.mxu0 0.0
        %1630 = vmatprep.mubr.f32.mxu0 0.0
        %1631 = vmatmul.mubr.f32.gmra.mxu0 %v1564
        %v1632 = vpop.f32.mrf.mxu0
        %v1633 = vadd.f32 0.0, %v1632
        %v1634 = vpop.f32.mrf.mxu0
        %1635 = vdwg.mxu0
        %1637 = vrot.lane.b32.xlu0 %v211, 32
        %v1638 = vpop.permute.xlu0 %1637
        %v1641 = vsel %vm322, %v1405, 0
        %v1644 = vsel %vm322, %v1481, 0
        %v1647 = vsel %vm322, %v1557, 0
        %v1650 = vsel %vm322, %v1633, 0
        %1652 = vmatprep.subr.mxu0 0.0
        %1653 = vmatpush1.msra.mxu0 0.0
        %1654 = vmatprep.subr.mxu0 0.0
        %1655 = vmatpush1.msra.mxu0 0.0
        %1656 = vmatprep.subr.mxu0 0.0
        %1657 = vmatpush1.msra.mxu0 0.0
        %1658 = vmatprep.subr.mxu0 0.0
        %1659 = vmatpush1.msra.mxu0 0.0
        %1660 = vmatprep.subr.mxu0 0.0
        %1661 = vmatpush1.msra.mxu0 0.0
        %1662 = vmatprep.subr.mxu0 0.0
        %1663 = vmatpush1.msra.mxu0 0.0
        %1664 = vmatprep.subr.mxu0 0.0
        %1665 = vmatpush1.msra.mxu0 0.0
        %1666 = vmatprep.subr.mxu0 0.0
        %1667 = vmatpush1.msra.mxu0 0.0
        %1668 = vmatprep.subr.mxu0 0.0
        %1669 = vmatpush1.msra.mxu0 0.0
        %1670 = vmatprep.subr.mxu0 0.0
        %1671 = vmatpush1.msra.mxu0 0.0
        %1672 = vmatprep.subr.mxu0 0.0
        %1673 = vmatpush1.msra.mxu0 0.0
        %1674 = vmatprep.subr.mxu0 0.0
        %1675 = vmatpush1.msra.mxu0 0.0
        %1676 = vmatprep.subr.mxu0 0.0
        %1677 = vmatpush1.msra.mxu0 0.0
        %1678 = vmatprep.subr.mxu0 0.0
        %1679 = vmatpush1.msra.mxu0 0.0
        %1680 = vmatprep.subr.mxu0 0.0
        %1681 = vmatpush1.msra.mxu0 0.0
        %1682 = vmatprep.subr.mxu0 0.0
        %1683 = vmatpush1.msra.mxu0 %v1638
        %1684 = vmatprep.subr.mxu0 0.0
        %1685 = vmatpush2.msra.mxu0 0.0
        %1686 = vmatprep.subr.mxu0 0.0
        %1687 = vmatpush2.msra.mxu0 0.0
        %1688 = vmatprep.subr.mxu0 0.0
        %1689 = vmatpush2.msra.mxu0 0.0
        %1690 = vmatprep.subr.mxu0 0.0
        %1691 = vmatpush2.msra.mxu0 0.0
        %1692 = vmatprep.subr.mxu0 0.0
        %1693 = vmatpush2.msra.mxu0 0.0
        %1694 = vmatprep.subr.mxu0 0.0
        %1695 = vmatpush2.msra.mxu0 0.0
        %1696 = vmatprep.subr.mxu0 0.0
        %1697 = vmatpush2.msra.mxu0 0.0
        %1698 = vmatprep.subr.mxu0 0.0
        %1699 = vmatpush2.msra.mxu0 0.0
        %1700 = vmatprep.subr.mxu0 0.0
        %1701 = vmatpush2.msra.mxu0 0.0
        %1702 = vmatprep.subr.mxu0 0.0
        %1703 = vmatpush2.msra.mxu0 0.0
        %1704 = vmatprep.subr.mxu0 0.0
        %1705 = vmatpush2.msra.mxu0 0.0
        %1706 = vmatprep.subr.mxu0 0.0
        %1707 = vmatpush2.msra.mxu0 0.0
        %1708 = vmatprep.subr.mxu0 0.0
        %1709 = vmatpush2.msra.mxu0 0.0
        %1710 = vmatprep.subr.mxu0 0.0
        %1711 = vmatpush2.msra.mxu0 0.0
        %1712 = vmatprep.subr.mxu0 0.0
        %1713 = vmatpush2.msra.mxu0 0.0
        %1714 = vmatprep.subr.mxu0 0.0
        %1715 = vmatpush2.msra.mxu0 0.0
        %1716 = vmatprep.mubr.f32.mxu0 0.0
        %1717 = vmatmul.mubr.f32.gmra.mxu0 %v1641
        %v1718 = vpop.f32.mrf.mxu0
        %v1719 = vadd.f32 0.0, %v1718
        %v1720 = vpop.f32.mrf.mxu0
        %1721 = vmatprep.mubr.f32.mxu0 0.0
        %1722 = vmatmul.mubr.f32.gmra.mxu0 %v1644
        %v1723 = vpop.f32.mrf.mxu0
        %v1724 = vadd.f32 0.0, %v1723
        %v1725 = vpop.f32.mrf.mxu0
        %1726 = vmatprep.mubr.f32.mxu0 0.0
        %1727 = vmatmul.mubr.f32.gmra.mxu0 %v1647
        %v1728 = vpop.f32.mrf.mxu0
        %v1729 = vadd.f32 0.0, %v1728
        %v1730 = vpop.f32.mrf.mxu0
        %1731 = vmatprep.mubr.f32.mxu0 0.0
        %1732 = vmatmul.mubr.f32.gmra.mxu0 %v1650
        %v1733 = vpop.f32.mrf.mxu0
        %v1734 = vadd.f32 0.0, %v1733
        %v1735 = vpop.f32.mrf.mxu0
        %1736 = vdwg.mxu0
        %1738 = vrot.lane.b32.xlu0 %v210, 32
        %v1739 = vpop.permute.xlu0 %1738
        %v1742 = vsel %vm322, %v745, 0
        %v1745 = vsel %vm322, %v821, 0
        %v1748 = vsel %vm322, %v897, 0
        %v1751 = vsel %vm322, %v973, 0
        %1753 = vmatprep.subr.mxu0 0.0
        %1754 = vmatpush1.msra.mxu0 0.0
        %1755 = vmatprep.subr.mxu0 0.0
        %1756 = vmatpush1.msra.mxu0 0.0
        %1757 = vmatprep.subr.mxu0 0.0
        %1758 = vmatpush1.msra.mxu0 0.0
        %1759 = vmatprep.subr.mxu0 0.0
        %1760 = vmatpush1.msra.mxu0 0.0
        %1761 = vmatprep.subr.mxu0 0.0
        %1762 = vmatpush1.msra.mxu0 0.0
        %1763 = vmatprep.subr.mxu0 0.0
        %1764 = vmatpush1.msra.mxu0 0.0
        %1765 = vmatprep.subr.mxu0 0.0
        %1766 = vmatpush1.msra.mxu0 0.0
        %1767 = vmatprep.subr.mxu0 0.0
        %1768 = vmatpush1.msra.mxu0 0.0
        %1769 = vmatprep.subr.mxu0 0.0
        %1770 = vmatpush1.msra.mxu0 0.0
        %1771 = vmatprep.subr.mxu0 0.0
        %1772 = vmatpush1.msra.mxu0 0.0
        %1773 = vmatprep.subr.mxu0 0.0
        %1774 = vmatpush1.msra.mxu0 0.0
        %1775 = vmatprep.subr.mxu0 0.0
        %1776 = vmatpush1.msra.mxu0 0.0
        %1777 = vmatprep.subr.mxu0 0.0
        %1778 = vmatpush1.msra.mxu0 0.0
        %1779 = vmatprep.subr.mxu0 0.0
        %1780 = vmatpush1.msra.mxu0 0.0
        %1781 = vmatprep.subr.mxu0 0.0
        %1782 = vmatpush1.msra.mxu0 0.0
        %1783 = vmatprep.subr.mxu0 0.0
        %1784 = vmatpush1.msra.mxu0 %v1739
        %1785 = vmatprep.subr.mxu0 0.0
        %1786 = vmatpush2.msra.mxu0 0.0
        %1787 = vmatprep.subr.mxu0 0.0
        %1788 = vmatpush2.msra.mxu0 0.0
        %1789 = vmatprep.subr.mxu0 0.0
        %1790 = vmatpush2.msra.mxu0 0.0
        %1791 = vmatprep.subr.mxu0 0.0
        %1792 = vmatpush2.msra.mxu0 0.0
        %1793 = vmatprep.subr.mxu0 0.0
        %1794 = vmatpush2.msra.mxu0 0.0
        %1795 = vmatprep.subr.mxu0 0.0
        %1796 = vmatpush2.msra.mxu0 0.0
        %1797 = vmatprep.subr.mxu0 0.0
        %1798 = vmatpush2.msra.mxu0 0.0
        %1799 = vmatprep.subr.mxu0 0.0
        %1800 = vmatpush2.msra.mxu0 0.0
        %1801 = vmatprep.subr.mxu0 0.0
        %1802 = vmatpush2.msra.mxu0 0.0
        %1803 = vmatprep.subr.mxu0 0.0
        %1804 = vmatpush2.msra.mxu0 0.0
        %1805 = vmatprep.subr.mxu0 0.0
        %1806 = vmatpush2.msra.mxu0 0.0
        %1807 = vmatprep.subr.mxu0 0.0
        %1808 = vmatpush2.msra.mxu0 0.0
        %1809 = vmatprep.subr.mxu0 0.0
        %1810 = vmatpush2.msra.mxu0 0.0
        %1811 = vmatprep.subr.mxu0 0.0
        %1812 = vmatpush2.msra.mxu0 0.0
        %1813 = vmatprep.subr.mxu0 0.0
        %1814 = vmatpush2.msra.mxu0 0.0
        %1815 = vmatprep.subr.mxu0 0.0
        %1816 = vmatpush2.msra.mxu0 0.0
        %1817 = vmatprep.mubr.f32.mxu0 0.0
        %1818 = vmatmul.mubr.f32.gmra.mxu0 %v1742
        %v1819 = vpop.f32.mrf.mxu0
        %v1820 = vadd.f32 %v1719, %v1819
        %v1821 = vpop.f32.mrf.mxu0
        %1822 = vmatprep.mubr.f32.mxu0 0.0
        %1823 = vmatmul.mubr.f32.gmra.mxu0 %v1745
        %v1824 = vpop.f32.mrf.mxu0
        %v1825 = vadd.f32 %v1724, %v1824
        %v1826 = vpop.f32.mrf.mxu0
        %1827 = vmatprep.mubr.f32.mxu0 0.0
        %1828 = vmatmul.mubr.f32.gmra.mxu0 %v1748
        %v1829 = vpop.f32.mrf.mxu0
        %v1830 = vadd.f32 %v1729, %v1829
        %v1831 = vpop.f32.mrf.mxu0
        %1832 = vmatprep.mubr.f32.mxu0 0.0
        %1833 = vmatmul.mubr.f32.gmra.mxu0 %v1751
        %v1834 = vpop.f32.mrf.mxu0
        %v1835 = vadd.f32 %v1734, %v1834
        %v1836 = vpop.f32.mrf.mxu0
        %1837 = vdwg.mxu0
        %1838 = vrot.lane.b32.xlu0 %v301, 112
        %v1839 = vpop.permute.xlu0 %1838
        %1840 = vrot.lane.b32.xlu0 %v301, 80
        %v1841 = vpop.permute.xlu0 %1840
        %v1842 = vsel %vm322, %v1839, 0
        %v1844 = vsel %vm322, %v1841, 0
        %1846 = vmatprep.subr.mxu0 0.0
        %1847 = vmatpush1.xpose.msra.mxu0 0.0
        %1848 = vmatprep.subr.mxu0 0.0
        %1849 = vmatpush1.xpose.msra.mxu0 0.0
        %1850 = vmatprep.subr.mxu0 0.0
        %1851 = vmatpush1.xpose.msra.mxu0 0.0
        %1852 = vmatprep.subr.mxu0 0.0
        %1853 = vmatpush1.xpose.msra.mxu0 0.0
        %1854 = vmatprep.subr.mxu0 0.0
        %1855 = vmatpush1.xpose.msra.mxu0 0.0
        %1856 = vmatprep.subr.mxu0 0.0
        %1857 = vmatpush1.xpose.msra.mxu0 0.0
        %1858 = vmatprep.subr.mxu0 0.0
        %1859 = vmatpush1.xpose.msra.mxu0 0.0
        %1860 = vmatprep.subr.mxu0 0.0
        %1861 = vmatpush1.xpose.msra.mxu0 0.0
        %1862 = vmatprep.subr.mxu0 0.0
        %1863 = vmatpush1.xpose.msra.mxu0 0.0
        %1864 = vmatprep.subr.mxu0 0.0
        %1865 = vmatpush1.xpose.msra.mxu0 0.0
        %1866 = vmatprep.subr.mxu0 0.0
        %1867 = vmatpush1.xpose.msra.mxu0 0.0
        %1868 = vmatprep.subr.mxu0 0.0
        %1869 = vmatpush1.xpose.msra.mxu0 0.0
        %1870 = vmatprep.subr.mxu0 0.0
        %1871 = vmatpush1.xpose.msra.mxu0 0.0
        %1872 = vmatprep.subr.mxu0 0.0
        %1873 = vmatpush1.xpose.msra.mxu0 0.0
        %1874 = vmatprep.subr.mxu0 0.0
        %1875 = vmatpush1.xpose.msra.mxu0 0.0
        %1876 = vmatprep.subr.mxu0 0.0
        %1877 = vmatpush1.xpose.msra.mxu0 %v1844
        %1878 = vmatprep.subr.mxu0 0.0
        %1879 = vmatpush2.xpose.msra.mxu0 0.0
        %1880 = vmatprep.subr.mxu0 0.0
        %1881 = vmatpush2.xpose.msra.mxu0 0.0
        %1882 = vmatprep.subr.mxu0 0.0
        %1883 = vmatpush2.xpose.msra.mxu0 0.0
        %1884 = vmatprep.subr.mxu0 0.0
        %1885 = vmatpush2.xpose.msra.mxu0 0.0
        %1886 = vmatprep.subr.mxu0 0.0
        %1887 = vmatpush2.xpose.msra.mxu0 0.0
        %1888 = vmatprep.subr.mxu0 0.0
        %1889 = vmatpush2.xpose.msra.mxu0 0.0
        %1890 = vmatprep.subr.mxu0 0.0
        %1891 = vmatpush2.xpose.msra.mxu0 0.0
        %1892 = vmatprep.subr.mxu0 0.0
        %1893 = vmatpush2.xpose.msra.mxu0 0.0
        %1894 = vmatprep.subr.mxu0 0.0
        %1895 = vmatpush2.xpose.msra.mxu0 0.0
        %1896 = vmatprep.subr.mxu0 0.0
        %1897 = vmatpush2.xpose.msra.mxu0 0.0
        %1898 = vmatprep.subr.mxu0 0.0
        %1899 = vmatpush2.xpose.msra.mxu0 0.0
        %1900 = vmatprep.subr.mxu0 0.0
        %1901 = vmatpush2.xpose.msra.mxu0 0.0
        %1902 = vmatprep.subr.mxu0 0.0
        %1903 = vmatpush2.xpose.msra.mxu0 0.0
        %1904 = vmatprep.subr.mxu0 0.0
        %1905 = vmatpush2.xpose.msra.mxu0 0.0
        %1906 = vmatprep.subr.mxu0 0.0
        %1907 = vmatpush2.xpose.msra.mxu0 0.0
        %1908 = vmatprep.subr.mxu0 0.0
        %1909 = vmatpush2.xpose.msra.mxu0 0.0
        %1910 = vmatprep.mubr.f32.mxu0 0.0
        %1911 = vmatmul.mubr.f32.gmra.mxu0 %v1842
        %v1912 = vpop.f32.mrf.mxu0
        %v1913 = vadd.f32 0.0, %v1912
        %v1914 = vpop.f32.mrf.mxu0
        %1915 = vdwg.mxu0
        %1916 = vrot.lane.b32.xlu0 %v306, 112
        %v1917 = vpop.permute.xlu0 %1916
        %1918 = vrot.lane.b32.xlu0 %v306, 80
        %v1919 = vpop.permute.xlu0 %1918
        %v1920 = vsel %vm322, %v1917, 0
        %v1922 = vsel %vm322, %v1919, 0
        %1924 = vmatprep.subr.mxu0 0.0
        %1925 = vmatpush1.xpose.msra.mxu0 0.0
        %1926 = vmatprep.subr.mxu0 0.0
        %1927 = vmatpush1.xpose.msra.mxu0 0.0
        %1928 = vmatprep.subr.mxu0 0.0
        %1929 = vmatpush1.xpose.msra.mxu0 0.0
        %1930 = vmatprep.subr.mxu0 0.0
        %1931 = vmatpush1.xpose.msra.mxu0 0.0
        %1932 = vmatprep.subr.mxu0 0.0
        %1933 = vmatpush1.xpose.msra.mxu0 0.0
        %1934 = vmatprep.subr.mxu0 0.0
        %1935 = vmatpush1.xpose.msra.mxu0 0.0
        %1936 = vmatprep.subr.mxu0 0.0
        %1937 = vmatpush1.xpose.msra.mxu0 0.0
        %1938 = vmatprep.subr.mxu0 0.0
        %1939 = vmatpush1.xpose.msra.mxu0 0.0
        %1940 = vmatprep.subr.mxu0 0.0
        %1941 = vmatpush1.xpose.msra.mxu0 0.0
        %1942 = vmatprep.subr.mxu0 0.0
        %1943 = vmatpush1.xpose.msra.mxu0 0.0
        %1944 = vmatprep.subr.mxu0 0.0
        %1945 = vmatpush1.xpose.msra.mxu0 0.0
        %1946 = vmatprep.subr.mxu0 0.0
        %1947 = vmatpush1.xpose.msra.mxu0 0.0
        %1948 = vmatprep.subr.mxu0 0.0
        %1949 = vmatpush1.xpose.msra.mxu0 0.0
        %1950 = vmatprep.subr.mxu0 0.0
        %1951 = vmatpush1.xpose.msra.mxu0 0.0
        %1952 = vmatprep.subr.mxu0 0.0
        %1953 = vmatpush1.xpose.msra.mxu0 0.0
        %1954 = vmatprep.subr.mxu0 0.0
        %1955 = vmatpush1.xpose.msra.mxu0 %v1922
        %1956 = vmatprep.subr.mxu0 0.0
        %1957 = vmatpush2.xpose.msra.mxu0 0.0
        %1958 = vmatprep.subr.mxu0 0.0
        %1959 = vmatpush2.xpose.msra.mxu0 0.0
        %1960 = vmatprep.subr.mxu0 0.0
        %1961 = vmatpush2.xpose.msra.mxu0 0.0
        %1962 = vmatprep.subr.mxu0 0.0
        %1963 = vmatpush2.xpose.msra.mxu0 0.0
        %1964 = vmatprep.subr.mxu0 0.0
        %1965 = vmatpush2.xpose.msra.mxu0 0.0
        %1966 = vmatprep.subr.mxu0 0.0
        %1967 = vmatpush2.xpose.msra.mxu0 0.0
        %1968 = vmatprep.subr.mxu0 0.0
        %1969 = vmatpush2.xpose.msra.mxu0 0.0
        %1970 = vmatprep.subr.mxu0 0.0
        %1971 = vmatpush2.xpose.msra.mxu0 0.0
        %1972 = vmatprep.subr.mxu0 0.0
        %1973 = vmatpush2.xpose.msra.mxu0 0.0
        %1974 = vmatprep.subr.mxu0 0.0
        %1975 = vmatpush2.xpose.msra.mxu0 0.0
        %1976 = vmatprep.subr.mxu0 0.0
        %1977 = vmatpush2.xpose.msra.mxu0 0.0
        %1978 = vmatprep.subr.mxu0 0.0
        %1979 = vmatpush2.xpose.msra.mxu0 0.0
        %1980 = vmatprep.subr.mxu0 0.0
        %1981 = vmatpush2.xpose.msra.mxu0 0.0
        %1982 = vmatprep.subr.mxu0 0.0
        %1983 = vmatpush2.xpose.msra.mxu0 0.0
        %1984 = vmatprep.subr.mxu0 0.0
        %1985 = vmatpush2.xpose.msra.mxu0 0.0
        %1986 = vmatprep.subr.mxu0 0.0
        %1987 = vmatpush2.xpose.msra.mxu0 0.0
        %1988 = vmatprep.mubr.f32.mxu0 0.0
        %1989 = vmatmul.mubr.f32.gmra.mxu0 %v1920
        %v1990 = vpop.f32.mrf.mxu0
        %v1991 = vadd.f32 0.0, %v1990
        %v1992 = vpop.f32.mrf.mxu0
        %1993 = vdwg.mxu0
        %1994 = vrot.lane.b32.xlu0 %v311, 112
        %v1995 = vpop.permute.xlu0 %1994
        %1996 = vrot.lane.b32.xlu0 %v311, 80
        %v1997 = vpop.permute.xlu0 %1996
        %v1998 = vsel %vm322, %v1995, 0
        %v2000 = vsel %vm322, %v1997, 0
        %2002 = vmatprep.subr.mxu0 0.0
        %2003 = vmatpush1.xpose.msra.mxu0 0.0
        %2004 = vmatprep.subr.mxu0 0.0
        %2005 = vmatpush1.xpose.msra.mxu0 0.0
        %2006 = vmatprep.subr.mxu0 0.0
        %2007 = vmatpush1.xpose.msra.mxu0 0.0
        %2008 = vmatprep.subr.mxu0 0.0
        %2009 = vmatpush1.xpose.msra.mxu0 0.0
        %2010 = vmatprep.subr.mxu0 0.0
        %2011 = vmatpush1.xpose.msra.mxu0 0.0
        %2012 = vmatprep.subr.mxu0 0.0
        %2013 = vmatpush1.xpose.msra.mxu0 0.0
        %2014 = vmatprep.subr.mxu0 0.0
        %2015 = vmatpush1.xpose.msra.mxu0 0.0
        %2016 = vmatprep.subr.mxu0 0.0
        %2017 = vmatpush1.xpose.msra.mxu0 0.0
        %2018 = vmatprep.subr.mxu0 0.0
        %2019 = vmatpush1.xpose.msra.mxu0 0.0
        %2020 = vmatprep.subr.mxu0 0.0
        %2021 = vmatpush1.xpose.msra.mxu0 0.0
        %2022 = vmatprep.subr.mxu0 0.0
        %2023 = vmatpush1.xpose.msra.mxu0 0.0
        %2024 = vmatprep.subr.mxu0 0.0
        %2025 = vmatpush1.xpose.msra.mxu0 0.0
        %2026 = vmatprep.subr.mxu0 0.0
        %2027 = vmatpush1.xpose.msra.mxu0 0.0
        %2028 = vmatprep.subr.mxu0 0.0
        %2029 = vmatpush1.xpose.msra.mxu0 0.0
        %2030 = vmatprep.subr.mxu0 0.0
        %2031 = vmatpush1.xpose.msra.mxu0 0.0
        %2032 = vmatprep.subr.mxu0 0.0
        %2033 = vmatpush1.xpose.msra.mxu0 %v2000
        %2034 = vmatprep.subr.mxu0 0.0
        %2035 = vmatpush2.xpose.msra.mxu0 0.0
        %2036 = vmatprep.subr.mxu0 0.0
        %2037 = vmatpush2.xpose.msra.mxu0 0.0
        %2038 = vmatprep.subr.mxu0 0.0
        %2039 = vmatpush2.xpose.msra.mxu0 0.0
        %2040 = vmatprep.subr.mxu0 0.0
        %2041 = vmatpush2.xpose.msra.mxu0 0.0
        %2042 = vmatprep.subr.mxu0 0.0
        %2043 = vmatpush2.xpose.msra.mxu0 0.0
        %2044 = vmatprep.subr.mxu0 0.0
        %2045 = vmatpush2.xpose.msra.mxu0 0.0
        %2046 = vmatprep.subr.mxu0 0.0
        %2047 = vmatpush2.xpose.msra.mxu0 0.0
        %2048 = vmatprep.subr.mxu0 0.0
        %2049 = vmatpush2.xpose.msra.mxu0 0.0
        %2050 = vmatprep.subr.mxu0 0.0
        %2051 = vmatpush2.xpose.msra.mxu0 0.0
        %2052 = vmatprep.subr.mxu0 0.0
        %2053 = vmatpush2.xpose.msra.mxu0 0.0
        %2054 = vmatprep.subr.mxu0 0.0
        %2055 = vmatpush2.xpose.msra.mxu0 0.0
        %2056 = vmatprep.subr.mxu0 0.0
        %2057 = vmatpush2.xpose.msra.mxu0 0.0
        %2058 = vmatprep.subr.mxu0 0.0
        %2059 = vmatpush2.xpose.msra.mxu0 0.0
        %2060 = vmatprep.subr.mxu0 0.0
        %2061 = vmatpush2.xpose.msra.mxu0 0.0
        %2062 = vmatprep.subr.mxu0 0.0
        %2063 = vmatpush2.xpose.msra.mxu0 0.0
        %2064 = vmatprep.subr.mxu0 0.0
        %2065 = vmatpush2.xpose.msra.mxu0 0.0
        %2066 = vmatprep.mubr.f32.mxu0 0.0
        %2067 = vmatmul.mubr.f32.gmra.mxu0 %v1998
        %v2068 = vpop.f32.mrf.mxu0
        %v2069 = vadd.f32 0.0, %v2068
        %v2070 = vpop.f32.mrf.mxu0
        %2071 = vdwg.mxu0
        %2072 = vrot.lane.b32.xlu0 %v316, 112
        %v2073 = vpop.permute.xlu0 %2072
        %2074 = vrot.lane.b32.xlu0 %v316, 80
        %v2075 = vpop.permute.xlu0 %2074
        %v2076 = vsel %vm322, %v2073, 0
        %v2078 = vsel %vm322, %v2075, 0
        %2080 = vmatprep.subr.mxu0 0.0
        %2081 = vmatpush1.xpose.msra.mxu0 0.0
        %2082 = vmatprep.subr.mxu0 0.0
        %2083 = vmatpush1.xpose.msra.mxu0 0.0
        %2084 = vmatprep.subr.mxu0 0.0
        %2085 = vmatpush1.xpose.msra.mxu0 0.0
        %2086 = vmatprep.subr.mxu0 0.0
        %2087 = vmatpush1.xpose.msra.mxu0 0.0
        %2088 = vmatprep.subr.mxu0 0.0
        %2089 = vmatpush1.xpose.msra.mxu0 0.0
        %2090 = vmatprep.subr.mxu0 0.0
        %2091 = vmatpush1.xpose.msra.mxu0 0.0
        %2092 = vmatprep.subr.mxu0 0.0
        %2093 = vmatpush1.xpose.msra.mxu0 0.0
        %2094 = vmatprep.subr.mxu0 0.0
        %2095 = vmatpush1.xpose.msra.mxu0 0.0
        %2096 = vmatprep.subr.mxu0 0.0
        %2097 = vmatpush1.xpose.msra.mxu0 0.0
        %2098 = vmatprep.subr.mxu0 0.0
        %2099 = vmatpush1.xpose.msra.mxu0 0.0
        %2100 = vmatprep.subr.mxu0 0.0
        %2101 = vmatpush1.xpose.msra.mxu0 0.0
        %2102 = vmatprep.subr.mxu0 0.0
        %2103 = vmatpush1.xpose.msra.mxu0 0.0
        %2104 = vmatprep.subr.mxu0 0.0
        %2105 = vmatpush1.xpose.msra.mxu0 0.0
        %2106 = vmatprep.subr.mxu0 0.0
        %2107 = vmatpush1.xpose.msra.mxu0 0.0
        %2108 = vmatprep.subr.mxu0 0.0
        %2109 = vmatpush1.xpose.msra.mxu0 0.0
        %2110 = vmatprep.subr.mxu0 0.0
        %2111 = vmatpush1.xpose.msra.mxu0 %v2078
        %2112 = vmatprep.subr.mxu0 0.0
        %2113 = vmatpush2.xpose.msra.mxu0 0.0
        %2114 = vmatprep.subr.mxu0 0.0
        %2115 = vmatpush2.xpose.msra.mxu0 0.0
        %2116 = vmatprep.subr.mxu0 0.0
        %2117 = vmatpush2.xpose.msra.mxu0 0.0
        %2118 = vmatprep.subr.mxu0 0.0
        %2119 = vmatpush2.xpose.msra.mxu0 0.0
        %2120 = vmatprep.subr.mxu0 0.0
        %2121 = vmatpush2.xpose.msra.mxu0 0.0
        %2122 = vmatprep.subr.mxu0 0.0
        %2123 = vmatpush2.xpose.msra.mxu0 0.0
        %2124 = vmatprep.subr.mxu0 0.0
        %2125 = vmatpush2.xpose.msra.mxu0 0.0
        %2126 = vmatprep.subr.mxu0 0.0
        %2127 = vmatpush2.xpose.msra.mxu0 0.0
        %2128 = vmatprep.subr.mxu0 0.0
        %2129 = vmatpush2.xpose.msra.mxu0 0.0
        %2130 = vmatprep.subr.mxu0 0.0
        %2131 = vmatpush2.xpose.msra.mxu0 0.0
        %2132 = vmatprep.subr.mxu0 0.0
        %2133 = vmatpush2.xpose.msra.mxu0 0.0
        %2134 = vmatprep.subr.mxu0 0.0
        %2135 = vmatpush2.xpose.msra.mxu0 0.0
        %2136 = vmatprep.subr.mxu0 0.0
        %2137 = vmatpush2.xpose.msra.mxu0 0.0
        %2138 = vmatprep.subr.mxu0 0.0
        %2139 = vmatpush2.xpose.msra.mxu0 0.0
        %2140 = vmatprep.subr.mxu0 0.0
        %2141 = vmatpush2.xpose.msra.mxu0 0.0
        %2142 = vmatprep.subr.mxu0 0.0
        %2143 = vmatpush2.xpose.msra.mxu0 0.0
        %2144 = vmatprep.mubr.f32.mxu0 0.0
        %2145 = vmatmul.mubr.f32.gmra.mxu0 %v2076
        %v2146 = vpop.f32.mrf.mxu0
        %v2147 = vadd.f32 0.0, %v2146
        %v2148 = vpop.f32.mrf.mxu0
        %2149 = vdwg.mxu0
        %v2150 = vsel %vm322, %v1913, -inf
        %2151 = vmax.xlane.f32.xlu0 %v2150
        %v2152 = vpop.xlane.xlu0 %2151
        %v2153 = vsel %vm322, %v1991, -inf
        %2154 = vmax.xlane.f32.xlu0 %v2153
        %v2155 = vpop.xlane.xlu0 %2154
        %v2156 = vsel %vm322, %v2069, -inf
        %2157 = vmax.xlane.f32.xlu0 %v2156
        %v2158 = vpop.xlane.xlu0 %2157
        %v2159 = vsel %vm322, %v2147, -inf
        %2160 = vmax.xlane.f32.xlu0 %v2159
        %v2161 = vpop.xlane.xlu0 %2160
        %v2162 = vsub.f32 %v1913, %v2152
        %v2163 = vsub.f32 %v1991, %v2155
        %v2164 = vsub.f32 %v2069, %v2158
        %v2165 = vsub.f32 %v2147, %v2161
        %v2166 = vmul.f32 %v2162, 1.442695
        %v2167 = vpow.pop %v2166
        %v2168 = vmul.f32 %v2163, 1.442695
        %v2169 = vpow.pop %v2168
        %v2170 = vmul.f32 %v2164, 1.442695
        %v2171 = vpow.pop %v2170
        %v2172 = vmul.f32 %v2165, 1.442695
        %v2173 = vpow.pop %v2172
        %v2174 = vsel %vm322, %v2167, 0.0
        %2175 = vadd.xlane.f32.xlu0 %v2174
        %v2176 = vpop.xlane.xlu0 %2175
        %v2177 = vsel %vm322, %v2169, 0.0
        %2178 = vadd.xlane.f32.xlu0 %v2177
        %v2179 = vpop.xlane.xlu0 %2178
        %v2180 = vsel %vm322, %v2171, 0.0
        %2181 = vadd.xlane.f32.xlu0 %v2180
        %v2182 = vpop.xlane.xlu0 %2181
        %v2183 = vsel %vm322, %v2173, 0.0
        %2184 = vadd.xlane.f32.xlu0 %v2183
        %v2185 = vpop.xlane.xlu0 %2184
        %v2186 = vrcp.pop %v2176
        %v2187 = vmul.f32 %v2167, %v2186
        %v2188 = vrcp.pop %v2179
        %v2189 = vmul.f32 %v2169, %v2188
        %v2190 = vrcp.pop %v2182
        %v2191 = vmul.f32 %v2171, %v2190
        %v2192 = vrcp.pop %v2185
        %v2193 = vmul.f32 %v2173, %v2192
        %2194 = vrot.lane.b32.xlu0 %v301, 48
        %v2195 = vpop.permute.xlu0 %2194
        %v2198 = vsel %vm322, %v2187, 0
        %2200 = vmatprep.subr.mxu0 0.0
        %2201 = vmatpush1.msra.mxu0 0.0
        %2202 = vmatprep.subr.mxu0 0.0
        %2203 = vmatpush1.msra.mxu0 0.0
        %2204 = vmatprep.subr.mxu0 0.0
        %2205 = vmatpush1.msra.mxu0 0.0
        %2206 = vmatprep.subr.mxu0 0.0
        %2207 = vmatpush1.msra.mxu0 0.0
        %2208 = vmatprep.subr.mxu0 0.0
        %2209 = vmatpush1.msra.mxu0 0.0
        %2210 = vmatprep.subr.mxu0 0.0
        %2211 = vmatpush1.msra.mxu0 0.0
        %2212 = vmatprep.subr.mxu0 0.0
        %2213 = vmatpush1.msra.mxu0 0.0
        %2214 = vmatprep.subr.mxu0 0.0
        %2215 = vmatpush1.msra.mxu0 0.0
        %2216 = vmatprep.subr.mxu0 0.0
        %2217 = vmatpush1.msra.mxu0 0.0
        %2218 = vmatprep.subr.mxu0 0.0
        %2219 = vmatpush1.msra.mxu0 0.0
        %2220 = vmatprep.subr.mxu0 0.0
        %2221 = vmatpush1.msra.mxu0 0.0
        %2222 = vmatprep.subr.mxu0 0.0
        %2223 = vmatpush1.msra.mxu0 0.0
        %2224 = vmatprep.subr.mxu0 0.0
        %2225 = vmatpush1.msra.mxu0 0.0
        %2226 = vmatprep.subr.mxu0 0.0
        %2227 = vmatpush1.msra.mxu0 0.0
        %2228 = vmatprep.subr.mxu0 0.0
        %2229 = vmatpush1.msra.mxu0 0.0
        %2230 = vmatprep.subr.mxu0 0.0
        %2231 = vmatpush1.msra.mxu0 %v2195
        %2232 = vmatprep.subr.mxu0 0.0
        %2233 = vmatpush2.msra.mxu0 0.0
        %2234 = vmatprep.subr.mxu0 0.0
        %2235 = vmatpush2.msra.mxu0 0.0
        %2236 = vmatprep.subr.mxu0 0.0
        %2237 = vmatpush2.msra.mxu0 0.0
        %2238 = vmatprep.subr.mxu0 0.0
        %2239 = vmatpush2.msra.mxu0 0.0
        %2240 = vmatprep.subr.mxu0 0.0
        %2241 = vmatpush2.msra.mxu0 0.0
        %2242 = vmatprep.subr.mxu0 0.0
        %2243 = vmatpush2.msra.mxu0 0.0
        %2244 = vmatprep.subr.mxu0 0.0
        %2245 = vmatpush2.msra.mxu0 0.0
        %2246 = vmatprep.subr.mxu0 0.0
        %2247 = vmatpush2.msra.mxu0 0.0
        %2248 = vmatprep.subr.mxu0 0.0
        %2249 = vmatpush2.msra.mxu0 0.0
        %2250 = vmatprep.subr.mxu0 0.0
        %2251 = vmatpush2.msra.mxu0 0.0
        %2252 = vmatprep.subr.mxu0 0.0
        %2253 = vmatpush2.msra.mxu0 0.0
        %2254 = vmatprep.subr.mxu0 0.0
        %2255 = vmatpush2.msra.mxu0 0.0
        %2256 = vmatprep.subr.mxu0 0.0
        %2257 = vmatpush2.msra.mxu0 0.0
        %2258 = vmatprep.subr.mxu0 0.0
        %2259 = vmatpush2.msra.mxu0 0.0
        %2260 = vmatprep.subr.mxu0 0.0
        %2261 = vmatpush2.msra.mxu0 0.0
        %2262 = vmatprep.subr.mxu0 0.0
        %2263 = vmatpush2.msra.mxu0 0.0
        %2264 = vmatprep.mubr.f32.mxu0 0.0
        %2265 = vmatmul.mubr.f32.gmra.mxu0 %v2198
        %v2266 = vpop.f32.mrf.mxu0
        %v2267 = vadd.f32 0.0, %v2266
        %v2268 = vpop.f32.mrf.mxu0
        %2269 = vdwg.mxu0
        %2270 = vrot.lane.b32.xlu0 %v306, 48
        %v2271 = vpop.permute.xlu0 %2270
        %v2274 = vsel %vm322, %v2189, 0
        %2276 = vmatprep.subr.mxu0 0.0
        %2277 = vmatpush1.msra.mxu0 0.0
        %2278 = vmatprep.subr.mxu0 0.0
        %2279 = vmatpush1.msra.mxu0 0.0
        %2280 = vmatprep.subr.mxu0 0.0
        %2281 = vmatpush1.msra.mxu0 0.0
        %2282 = vmatprep.subr.mxu0 0.0
        %2283 = vmatpush1.msra.mxu0 0.0
        %2284 = vmatprep.subr.mxu0 0.0
        %2285 = vmatpush1.msra.mxu0 0.0
        %2286 = vmatprep.subr.mxu0 0.0
        %2287 = vmatpush1.msra.mxu0 0.0
        %2288 = vmatprep.subr.mxu0 0.0
        %2289 = vmatpush1.msra.mxu0 0.0
        %2290 = vmatprep.subr.mxu0 0.0
        %2291 = vmatpush1.msra.mxu0 0.0
        %2292 = vmatprep.subr.mxu0 0.0
        %2293 = vmatpush1.msra.mxu0 0.0
        %2294 = vmatprep.subr.mxu0 0.0
        %2295 = vmatpush1.msra.mxu0 0.0
        %2296 = vmatprep.subr.mxu0 0.0
        %2297 = vmatpush1.msra.mxu0 0.0
        %2298 = vmatprep.subr.mxu0 0.0
        %2299 = vmatpush1.msra.mxu0 0.0
        %2300 = vmatprep.subr.mxu0 0.0
        %2301 = vmatpush1.msra.mxu0 0.0
        %2302 = vmatprep.subr.mxu0 0.0
        %2303 = vmatpush1.msra.mxu0 0.0
        %2304 = vmatprep.subr.mxu0 0.0
        %2305 = vmatpush1.msra.mxu0 0.0
        %2306 = vmatprep.subr.mxu0 0.0
        %2307 = vmatpush1.msra.mxu0 %v2271
        %2308 = vmatprep.subr.mxu0 0.0
        %2309 = vmatpush2.msra.mxu0 0.0
        %2310 = vmatprep.subr.mxu0 0.0
        %2311 = vmatpush2.msra.mxu0 0.0
        %2312 = vmatprep.subr.mxu0 0.0
        %2313 = vmatpush2.msra.mxu0 0.0
        %2314 = vmatprep.subr.mxu0 0.0
        %2315 = vmatpush2.msra.mxu0 0.0
        %2316 = vmatprep.subr.mxu0 0.0
        %2317 = vmatpush2.msra.mxu0 0.0
        %2318 = vmatprep.subr.mxu0 0.0
        %2319 = vmatpush2.msra.mxu0 0.0
        %2320 = vmatprep.subr.mxu0 0.0
        %2321 = vmatpush2.msra.mxu0 0.0
        %2322 = vmatprep.subr.mxu0 0.0
        %2323 = vmatpush2.msra.mxu0 0.0
        %2324 = vmatprep.subr.mxu0 0.0
        %2325 = vmatpush2.msra.mxu0 0.0
        %2326 = vmatprep.subr.mxu0 0.0
        %2327 = vmatpush2.msra.mxu0 0.0
        %2328 = vmatprep.subr.mxu0 0.0
        %2329 = vmatpush2.msra.mxu0 0.0
        %2330 = vmatprep.subr.mxu0 0.0
        %2331 = vmatpush2.msra.mxu0 0.0
        %2332 = vmatprep.subr.mxu0 0.0
        %2333 = vmatpush2.msra.mxu0 0.0
        %2334 = vmatprep.subr.mxu0 0.0
        %2335 = vmatpush2.msra.mxu0 0.0
        %2336 = vmatprep.subr.mxu0 0.0
        %2337 = vmatpush2.msra.mxu0 0.0
        %2338 = vmatprep.subr.mxu0 0.0
        %2339 = vmatpush2.msra.mxu0 0.0
        %2340 = vmatprep.mubr.f32.mxu0 0.0
        %2341 = vmatmul.mubr.f32.gmra.mxu0 %v2274
        %v2342 = vpop.f32.mrf.mxu0
        %v2343 = vadd.f32 0.0, %v2342
        %v2344 = vpop.f32.mrf.mxu0
        %2345 = vdwg.mxu0
        %2346 = vrot.lane.b32.xlu0 %v311, 48
        %v2347 = vpop.permute.xlu0 %2346
        %v2350 = vsel %vm322, %v2191, 0
        %2352 = vmatprep.subr.mxu0 0.0
        %2353 = vmatpush1.msra.mxu0 0.0
        %2354 = vmatprep.subr.mxu0 0.0
        %2355 = vmatpush1.msra.mxu0 0.0
        %2356 = vmatprep.subr.mxu0 0.0
        %2357 = vmatpush1.msra.mxu0 0.0
        %2358 = vmatprep.subr.mxu0 0.0
        %2359 = vmatpush1.msra.mxu0 0.0
        %2360 = vmatprep.subr.mxu0 0.0
        %2361 = vmatpush1.msra.mxu0 0.0
        %2362 = vmatprep.subr.mxu0 0.0
        %2363 = vmatpush1.msra.mxu0 0.0
        %2364 = vmatprep.subr.mxu0 0.0
        %2365 = vmatpush1.msra.mxu0 0.0
        %2366 = vmatprep.subr.mxu0 0.0
        %2367 = vmatpush1.msra.mxu0 0.0
        %2368 = vmatprep.subr.mxu0 0.0
        %2369 = vmatpush1.msra.mxu0 0.0
        %2370 = vmatprep.subr.mxu0 0.0
        %2371 = vmatpush1.msra.mxu0 0.0
        %2372 = vmatprep.subr.mxu0 0.0
        %2373 = vmatpush1.msra.mxu0 0.0
        %2374 = vmatprep.subr.mxu0 0.0
        %2375 = vmatpush1.msra.mxu0 0.0
        %2376 = vmatprep.subr.mxu0 0.0
        %2377 = vmatpush1.msra.mxu0 0.0
        %2378 = vmatprep.subr.mxu0 0.0
        %2379 = vmatpush1.msra.mxu0 0.0
        %2380 = vmatprep.subr.mxu0 0.0
        %2381 = vmatpush1.msra.mxu0 0.0
        %2382 = vmatprep.subr.mxu0 0.0
        %2383 = vmatpush1.msra.mxu0 %v2347
        %2384 = vmatprep.subr.mxu0 0.0
        %2385 = vmatpush2.msra.mxu0 0.0
        %2386 = vmatprep.subr.mxu0 0.0
        %2387 = vmatpush2.msra.mxu0 0.0
        %2388 = vmatprep.subr.mxu0 0.0
        %2389 = vmatpush2.msra.mxu0 0.0
        %2390 = vmatprep.subr.mxu0 0.0
        %2391 = vmatpush2.msra.mxu0 0.0
        %2392 = vmatprep.subr.mxu0 0.0
        %2393 = vmatpush2.msra.mxu0 0.0
        %2394 = vmatprep.subr.mxu0 0.0
        %2395 = vmatpush2.msra.mxu0 0.0
        %2396 = vmatprep.subr.mxu0 0.0
        %2397 = vmatpush2.msra.mxu0 0.0
        %2398 = vmatprep.subr.mxu0 0.0
        %2399 = vmatpush2.msra.mxu0 0.0
        %2400 = vmatprep.subr.mxu0 0.0
        %2401 = vmatpush2.msra.mxu0 0.0
        %2402 = vmatprep.subr.mxu0 0.0
        %2403 = vmatpush2.msra.mxu0 0.0
        %2404 = vmatprep.subr.mxu0 0.0
        %2405 = vmatpush2.msra.mxu0 0.0
        %2406 = vmatprep.subr.mxu0 0.0
        %2407 = vmatpush2.msra.mxu0 0.0
        %2408 = vmatprep.subr.mxu0 0.0
        %2409 = vmatpush2.msra.mxu0 0.0
        %2410 = vmatprep.subr.mxu0 0.0
        %2411 = vmatpush2.msra.mxu0 0.0
        %2412 = vmatprep.subr.mxu0 0.0
        %2413 = vmatpush2.msra.mxu0 0.0
        %2414 = vmatprep.subr.mxu0 0.0
        %2415 = vmatpush2.msra.mxu0 0.0
        %2416 = vmatprep.mubr.f32.mxu0 0.0
        %2417 = vmatmul.mubr.f32.gmra.mxu0 %v2350
        %v2418 = vpop.f32.mrf.mxu0
        %v2419 = vadd.f32 0.0, %v2418
        %v2420 = vpop.f32.mrf.mxu0
        %2421 = vdwg.mxu0
        %2422 = vrot.lane.b32.xlu0 %v316, 48
        %v2423 = vpop.permute.xlu0 %2422
        %v2426 = vsel %vm322, %v2193, 0
        %2428 = vmatprep.subr.mxu0 0.0
        %2429 = vmatpush1.msra.mxu0 0.0
        %2430 = vmatprep.subr.mxu0 0.0
        %2431 = vmatpush1.msra.mxu0 0.0
        %2432 = vmatprep.subr.mxu0 0.0
        %2433 = vmatpush1.msra.mxu0 0.0
        %2434 = vmatprep.subr.mxu0 0.0
        %2435 = vmatpush1.msra.mxu0 0.0
        %2436 = vmatprep.subr.mxu0 0.0
        %2437 = vmatpush1.msra.mxu0 0.0
        %2438 = vmatprep.subr.mxu0 0.0
        %2439 = vmatpush1.msra.mxu0 0.0
        %2440 = vmatprep.subr.mxu0 0.0
        %2441 = vmatpush1.msra.mxu0 0.0
        %2442 = vmatprep.subr.mxu0 0.0
        %2443 = vmatpush1.msra.mxu0 0.0
        %2444 = vmatprep.subr.mxu0 0.0
        %2445 = vmatpush1.msra.mxu0 0.0
        %2446 = vmatprep.subr.mxu0 0.0
        %2447 = vmatpush1.msra.mxu0 0.0
        %2448 = vmatprep.subr.mxu0 0.0
        %2449 = vmatpush1.msra.mxu0 0.0
        %2450 = vmatprep.subr.mxu0 0.0
        %2451 = vmatpush1.msra.mxu0 0.0
        %2452 = vmatprep.subr.mxu0 0.0
        %2453 = vmatpush1.msra.mxu0 0.0
        %2454 = vmatprep.subr.mxu0 0.0
        %2455 = vmatpush1.msra.mxu0 0.0
        %2456 = vmatprep.subr.mxu0 0.0
        %2457 = vmatpush1.msra.mxu0 0.0
        %2458 = vmatprep.subr.mxu0 0.0
        %2459 = vmatpush1.msra.mxu0 %v2423
        %2460 = vmatprep.subr.mxu0 0.0
        %2461 = vmatpush2.msra.mxu0 0.0
        %2462 = vmatprep.subr.mxu0 0.0
        %2463 = vmatpush2.msra.mxu0 0.0
        %2464 = vmatprep.subr.mxu0 0.0
        %2465 = vmatpush2.msra.mxu0 0.0
        %2466 = vmatprep.subr.mxu0 0.0
        %2467 = vmatpush2.msra.mxu0 0.0
        %2468 = vmatprep.subr.mxu0 0.0
        %2469 = vmatpush2.msra.mxu0 0.0
        %2470 = vmatprep.subr.mxu0 0.0
        %2471 = vmatpush2.msra.mxu0 0.0
        %2472 = vmatprep.subr.mxu0 0.0
        %2473 = vmatpush2.msra.mxu0 0.0
        %2474 = vmatprep.subr.mxu0 0.0
        %2475 = vmatpush2.msra.mxu0 0.0
        %2476 = vmatprep.subr.mxu0 0.0
        %2477 = vmatpush2.msra.mxu0 0.0
        %2478 = vmatprep.subr.mxu0 0.0
        %2479 = vmatpush2.msra.mxu0 0.0
        %2480 = vmatprep.subr.mxu0 0.0
        %2481 = vmatpush2.msra.mxu0 0.0
        %2482 = vmatprep.subr.mxu0 0.0
        %2483 = vmatpush2.msra.mxu0 0.0
        %2484 = vmatprep.subr.mxu0 0.0
        %2485 = vmatpush2.msra.mxu0 0.0
        %2486 = vmatprep.subr.mxu0 0.0
        %2487 = vmatpush2.msra.mxu0 0.0
        %2488 = vmatprep.subr.mxu0 0.0
        %2489 = vmatpush2.msra.mxu0 0.0
        %2490 = vmatprep.subr.mxu0 0.0
        %2491 = vmatpush2.msra.mxu0 0.0
        %2492 = vmatprep.mubr.f32.mxu0 0.0
        %2493 = vmatmul.mubr.f32.gmra.mxu0 %v2426
        %v2494 = vpop.f32.mrf.mxu0
        %v2495 = vadd.f32 0.0, %v2494
        %v2496 = vpop.f32.mrf.mxu0
        %2497 = vdwg.mxu0
        %2499 = vrot.lane.b32.xlu0 %v212, 32
        %v2500 = vpop.permute.xlu0 %2499
        %v2503 = vsel %vm322, %v2267, 0
        %v2506 = vsel %vm322, %v2343, 0
        %v2509 = vsel %vm322, %v2419, 0
        %v2512 = vsel %vm322, %v2495, 0
        %2514 = vmatprep.subr.mxu0 0.0
        %2515 = vmatpush1.msra.mxu0 0.0
        %2516 = vmatprep.subr.mxu0 0.0
        %2517 = vmatpush1.msra.mxu0 0.0
        %2518 = vmatprep.subr.mxu0 0.0
        %2519 = vmatpush1.msra.mxu0 0.0
        %2520 = vmatprep.subr.mxu0 0.0
        %2521 = vmatpush1.msra.mxu0 0.0
        %2522 = vmatprep.subr.mxu0 0.0
        %2523 = vmatpush1.msra.mxu0 0.0
        %2524 = vmatprep.subr.mxu0 0.0
        %2525 = vmatpush1.msra.mxu0 0.0
        %2526 = vmatprep.subr.mxu0 0.0
        %2527 = vmatpush1.msra.mxu0 0.0
        %2528 = vmatprep.subr.mxu0 0.0
        %2529 = vmatpush1.msra.mxu0 0.0
        %2530 = vmatprep.subr.mxu0 0.0
        %2531 = vmatpush1.msra.mxu0 0.0
        %2532 = vmatprep.subr.mxu0 0.0
        %2533 = vmatpush1.msra.mxu0 0.0
        %2534 = vmatprep.subr.mxu0 0.0
        %2535 = vmatpush1.msra.mxu0 0.0
        %2536 = vmatprep.subr.mxu0 0.0
        %2537 = vmatpush1.msra.mxu0 0.0
        %2538 = vmatprep.subr.mxu0 0.0
        %2539 = vmatpush1.msra.mxu0 0.0
        %2540 = vmatprep.subr.mxu0 0.0
        %2541 = vmatpush1.msra.mxu0 0.0
        %2542 = vmatprep.subr.mxu0 0.0
        %2543 = vmatpush1.msra.mxu0 0.0
        %2544 = vmatprep.subr.mxu0 0.0
        %2545 = vmatpush1.msra.mxu0 %v2500
        %2546 = vmatprep.subr.mxu0 0.0
        %2547 = vmatpush2.msra.mxu0 0.0
        %2548 = vmatprep.subr.mxu0 0.0
        %2549 = vmatpush2.msra.mxu0 0.0
        %2550 = vmatprep.subr.mxu0 0.0
        %2551 = vmatpush2.msra.mxu0 0.0
        %2552 = vmatprep.subr.mxu0 0.0
        %2553 = vmatpush2.msra.mxu0 0.0
        %2554 = vmatprep.subr.mxu0 0.0
        %2555 = vmatpush2.msra.mxu0 0.0
        %2556 = vmatprep.subr.mxu0 0.0
        %2557 = vmatpush2.msra.mxu0 0.0
        %2558 = vmatprep.subr.mxu0 0.0
        %2559 = vmatpush2.msra.mxu0 0.0
        %2560 = vmatprep.subr.mxu0 0.0
        %2561 = vmatpush2.msra.mxu0 0.0
        %2562 = vmatprep.subr.mxu0 0.0
        %2563 = vmatpush2.msra.mxu0 0.0
        %2564 = vmatprep.subr.mxu0 0.0
        %2565 = vmatpush2.msra.mxu0 0.0
        %2566 = vmatprep.subr.mxu0 0.0
        %2567 = vmatpush2.msra.mxu0 0.0
        %2568 = vmatprep.subr.mxu0 0.0
        %2569 = vmatpush2.msra.mxu0 0.0
        %2570 = vmatprep.subr.mxu0 0.0
        %2571 = vmatpush2.msra.mxu0 0.0
        %2572 = vmatprep.subr.mxu0 0.0
        %2573 = vmatpush2.msra.mxu0 0.0
        %2574 = vmatprep.subr.mxu0 0.0
        %2575 = vmatpush2.msra.mxu0 0.0
        %2576 = vmatprep.subr.mxu0 0.0
        %2577 = vmatpush2.msra.mxu0 0.0
        %2578 = vmatprep.mubr.f32.mxu0 0.0
        %2579 = vmatmul.mubr.f32.gmra.mxu0 %v2503
        %v2580 = vpop.f32.mrf.mxu0
        %v2581 = vadd.f32 0.0, %v2580
        %v2582 = vpop.f32.mrf.mxu0
        %2583 = vmatprep.mubr.f32.mxu0 0.0
        %2584 = vmatmul.mubr.f32.gmra.mxu0 %v2506
        %v2585 = vpop.f32.mrf.mxu0
        %v2586 = vadd.f32 0.0, %v2585
        %v2587 = vpop.f32.mrf.mxu0
        %2588 = vmatprep.mubr.f32.mxu0 0.0
        %2589 = vmatmul.mubr.f32.gmra.mxu0 %v2509
        %v2590 = vpop.f32.mrf.mxu0
        %v2591 = vadd.f32 0.0, %v2590
        %v2592 = vpop.f32.mrf.mxu0
        %2593 = vmatprep.mubr.f32.mxu0 0.0
        %2594 = vmatmul.mubr.f32.gmra.mxu0 %v2512
        %v2595 = vpop.f32.mrf.mxu0
        %v2596 = vadd.f32 0.0, %v2595
        %v2597 = vpop.f32.mrf.mxu0
        %2598 = vdwg.mxu0
        %v2599 = vadd.f32 %v1820, %v2581
        %v2600 = vadd.f32 %v1825, %v2586
        %v2601 = vadd.f32 %v1830, %v2591
        %v2602 = vadd.f32 %v1835, %v2596
        %2603 = vrot.lane.b32.xlu0 %v301, 104
        %v2604 = vpop.permute.xlu0 %2603
        %2605 = vrot.lane.b32.xlu0 %v301, 72
        %v2606 = vpop.permute.xlu0 %2605
        %v2607 = vsel %vm322, %v2604, 0
        %v2609 = vsel %vm322, %v2606, 0
        %2611 = vmatprep.subr.mxu0 0.0
        %2612 = vmatpush1.xpose.msra.mxu0 0.0
        %2613 = vmatprep.subr.mxu0 0.0
        %2614 = vmatpush1.xpose.msra.mxu0 0.0
        %2615 = vmatprep.subr.mxu0 0.0
        %2616 = vmatpush1.xpose.msra.mxu0 0.0
        %2617 = vmatprep.subr.mxu0 0.0
        %2618 = vmatpush1.xpose.msra.mxu0 0.0
        %2619 = vmatprep.subr.mxu0 0.0
        %2620 = vmatpush1.xpose.msra.mxu0 0.0
        %2621 = vmatprep.subr.mxu0 0.0
        %2622 = vmatpush1.xpose.msra.mxu0 0.0
        %2623 = vmatprep.subr.mxu0 0.0
        %2624 = vmatpush1.xpose.msra.mxu0 0.0
        %2625 = vmatprep.subr.mxu0 0.0
        %2626 = vmatpush1.xpose.msra.mxu0 0.0
        %2627 = vmatprep.subr.mxu0 0.0
        %2628 = vmatpush1.xpose.msra.mxu0 0.0
        %2629 = vmatprep.subr.mxu0 0.0
        %2630 = vmatpush1.xpose.msra.mxu0 0.0
        %2631 = vmatprep.subr.mxu0 0.0
        %2632 = vmatpush1.xpose.msra.mxu0 0.0
        %2633 = vmatprep.subr.mxu0 0.0
        %2634 = vmatpush1.xpose.msra.mxu0 0.0
        %2635 = vmatprep.subr.mxu0 0.0
        %2636 = vmatpush1.xpose.msra.mxu0 0.0
        %2637 = vmatprep.subr.mxu0 0.0
        %2638 = vmatpush1.xpose.msra.mxu0 0.0
        %2639 = vmatprep.subr.mxu0 0.0
        %2640 = vmatpush1.xpose.msra.mxu0 0.0
        %2641 = vmatprep.subr.mxu0 0.0
        %2642 = vmatpush1.xpose.msra.mxu0 %v2609
        %2643 = vmatprep.subr.mxu0 0.0
        %2644 = vmatpush2.xpose.msra.mxu0 0.0
        %2645 = vmatprep.subr.mxu0 0.0
        %2646 = vmatpush2.xpose.msra.mxu0 0.0
        %2647 = vmatprep.subr.mxu0 0.0
        %2648 = vmatpush2.xpose.msra.mxu0 0.0
        %2649 = vmatprep.subr.mxu0 0.0
        %2650 = vmatpush2.xpose.msra.mxu0 0.0
        %2651 = vmatprep.subr.mxu0 0.0
        %2652 = vmatpush2.xpose.msra.mxu0 0.0
        %2653 = vmatprep.subr.mxu0 0.0
        %2654 = vmatpush2.xpose.msra.mxu0 0.0
        %2655 = vmatprep.subr.mxu0 0.0
        %2656 = vmatpush2.xpose.msra.mxu0 0.0
        %2657 = vmatprep.subr.mxu0 0.0
        %2658 = vmatpush2.xpose.msra.mxu0 0.0
        %2659 = vmatprep.subr.mxu0 0.0
        %2660 = vmatpush2.xpose.msra.mxu0 0.0
        %2661 = vmatprep.subr.mxu0 0.0
        %2662 = vmatpush2.xpose.msra.mxu0 0.0
        %2663 = vmatprep.subr.mxu0 0.0
        %2664 = vmatpush2.xpose.msra.mxu0 0.0
        %2665 = vmatprep.subr.mxu0 0.0
        %2666 = vmatpush2.xpose.msra.mxu0 0.0
        %2667 = vmatprep.subr.mxu0 0.0
        %2668 = vmatpush2.xpose.msra.mxu0 0.0
        %2669 = vmatprep.subr.mxu0 0.0
        %2670 = vmatpush2.xpose.msra.mxu0 0.0
        %2671 = vmatprep.subr.mxu0 0.0
        %2672 = vmatpush2.xpose.msra.mxu0 0.0
        %2673 = vmatprep.subr.mxu0 0.0
        %2674 = vmatpush2.xpose.msra.mxu0 0.0
        %2675 = vmatprep.mubr.f32.mxu0 0.0
        %2676 = vmatmul.mubr.f32.gmra.mxu0 %v2607
        %v2677 = vpop.f32.mrf.mxu0
        %v2678 = vadd.f32 0.0, %v2677
        %v2679 = vpop.f32.mrf.mxu0
        %2680 = vdwg.mxu0
        %2681 = vrot.lane.b32.xlu0 %v306, 104
        %v2682 = vpop.permute.xlu0 %2681
        %2683 = vrot.lane.b32.xlu0 %v306, 72
        %v2684 = vpop.permute.xlu0 %2683
        %v2685 = vsel %vm322, %v2682, 0
        %v2687 = vsel %vm322, %v2684, 0
        %2689 = vmatprep.subr.mxu0 0.0
        %2690 = vmatpush1.xpose.msra.mxu0 0.0
        %2691 = vmatprep.subr.mxu0 0.0
        %2692 = vmatpush1.xpose.msra.mxu0 0.0
        %2693 = vmatprep.subr.mxu0 0.0
        %2694 = vmatpush1.xpose.msra.mxu0 0.0
        %2695 = vmatprep.subr.mxu0 0.0
        %2696 = vmatpush1.xpose.msra.mxu0 0.0
        %2697 = vmatprep.subr.mxu0 0.0
        %2698 = vmatpush1.xpose.msra.mxu0 0.0
        %2699 = vmatprep.subr.mxu0 0.0
        %2700 = vmatpush1.xpose.msra.mxu0 0.0
        %2701 = vmatprep.subr.mxu0 0.0
        %2702 = vmatpush1.xpose.msra.mxu0 0.0
        %2703 = vmatprep.subr.mxu0 0.0
        %2704 = vmatpush1.xpose.msra.mxu0 0.0
        %2705 = vmatprep.subr.mxu0 0.0
        %2706 = vmatpush1.xpose.msra.mxu0 0.0
        %2707 = vmatprep.subr.mxu0 0.0
        %2708 = vmatpush1.xpose.msra.mxu0 0.0
        %2709 = vmatprep.subr.mxu0 0.0
        %2710 = vmatpush1.xpose.msra.mxu0 0.0
        %2711 = vmatprep.subr.mxu0 0.0
        %2712 = vmatpush1.xpose.msra.mxu0 0.0
        %2713 = vmatprep.subr.mxu0 0.0
        %2714 = vmatpush1.xpose.msra.mxu0 0.0
        %2715 = vmatprep.subr.mxu0 0.0
        %2716 = vmatpush1.xpose.msra.mxu0 0.0
        %2717 = vmatprep.subr.mxu0 0.0
        %2718 = vmatpush1.xpose.msra.mxu0 0.0
        %2719 = vmatprep.subr.mxu0 0.0
        %2720 = vmatpush1.xpose.msra.mxu0 %v2687
        %2721 = vmatprep.subr.mxu0 0.0
        %2722 = vmatpush2.xpose.msra.mxu0 0.0
        %2723 = vmatprep.subr.mxu0 0.0
        %2724 = vmatpush2.xpose.msra.mxu0 0.0
        %2725 = vmatprep.subr.mxu0 0.0
        %2726 = vmatpush2.xpose.msra.mxu0 0.0
        %2727 = vmatprep.subr.mxu0 0.0
        %2728 = vmatpush2.xpose.msra.mxu0 0.0
        %2729 = vmatprep.subr.mxu0 0.0
        %2730 = vmatpush2.xpose.msra.mxu0 0.0
        %2731 = vmatprep.subr.mxu0 0.0
        %2732 = vmatpush2.xpose.msra.mxu0 0.0
        %2733 = vmatprep.subr.mxu0 0.0
        %2734 = vmatpush2.xpose.msra.mxu0 0.0
        %2735 = vmatprep.subr.mxu0 0.0
        %2736 = vmatpush2.xpose.msra.mxu0 0.0
        %2737 = vmatprep.subr.mxu0 0.0
        %2738 = vmatpush2.xpose.msra.mxu0 0.0
        %2739 = vmatprep.subr.mxu0 0.0
        %2740 = vmatpush2.xpose.msra.mxu0 0.0
        %2741 = vmatprep.subr.mxu0 0.0
        %2742 = vmatpush2.xpose.msra.mxu0 0.0
        %2743 = vmatprep.subr.mxu0 0.0
        %2744 = vmatpush2.xpose.msra.mxu0 0.0
        %2745 = vmatprep.subr.mxu0 0.0
        %2746 = vmatpush2.xpose.msra.mxu0 0.0
        %2747 = vmatprep.subr.mxu0 0.0
        %2748 = vmatpush2.xpose.msra.mxu0 0.0
        %2749 = vmatprep.subr.mxu0 0.0
        %2750 = vmatpush2.xpose.msra.mxu0 0.0
        %2751 = vmatprep.subr.mxu0 0.0
        %2752 = vmatpush2.xpose.msra.mxu0 0.0
        %2753 = vmatprep.mubr.f32.mxu0 0.0
        %2754 = vmatmul.mubr.f32.gmra.mxu0 %v2685
        %v2755 = vpop.f32.mrf.mxu0
        %v2756 = vadd.f32 0.0, %v2755
        %v2757 = vpop.f32.mrf.mxu0
        %2758 = vdwg.mxu0
        %2759 = vrot.lane.b32.xlu0 %v311, 104
        %v2760 = vpop.permute.xlu0 %2759
        %2761 = vrot.lane.b32.xlu0 %v311, 72
        %v2762 = vpop.permute.xlu0 %2761
        %v2763 = vsel %vm322, %v2760, 0
        %v2765 = vsel %vm322, %v2762, 0
        %2767 = vmatprep.subr.mxu0 0.0
        %2768 = vmatpush1.xpose.msra.mxu0 0.0
        %2769 = vmatprep.subr.mxu0 0.0
        %2770 = vmatpush1.xpose.msra.mxu0 0.0
        %2771 = vmatprep.subr.mxu0 0.0
        %2772 = vmatpush1.xpose.msra.mxu0 0.0
        %2773 = vmatprep.subr.mxu0 0.0
        %2774 = vmatpush1.xpose.msra.mxu0 0.0
        %2775 = vmatprep.subr.mxu0 0.0
        %2776 = vmatpush1.xpose.msra.mxu0 0.0
        %2777 = vmatprep.subr.mxu0 0.0
        %2778 = vmatpush1.xpose.msra.mxu0 0.0
        %2779 = vmatprep.subr.mxu0 0.0
        %2780 = vmatpush1.xpose.msra.mxu0 0.0
        %2781 = vmatprep.subr.mxu0 0.0
        %2782 = vmatpush1.xpose.msra.mxu0 0.0
        %2783 = vmatprep.subr.mxu0 0.0
        %2784 = vmatpush1.xpose.msra.mxu0 0.0
        %2785 = vmatprep.subr.mxu0 0.0
        %2786 = vmatpush1.xpose.msra.mxu0 0.0
        %2787 = vmatprep.subr.mxu0 0.0
        %2788 = vmatpush1.xpose.msra.mxu0 0.0
        %2789 = vmatprep.subr.mxu0 0.0
        %2790 = vmatpush1.xpose.msra.mxu0 0.0
        %2791 = vmatprep.subr.mxu0 0.0
        %2792 = vmatpush1.xpose.msra.mxu0 0.0
        %2793 = vmatprep.subr.mxu0 0.0
        %2794 = vmatpush1.xpose.msra.mxu0 0.0
        %2795 = vmatprep.subr.mxu0 0.0
        %2796 = vmatpush1.xpose.msra.mxu0 0.0
        %2797 = vmatprep.subr.mxu0 0.0
        %2798 = vmatpush1.xpose.msra.mxu0 %v2765
        %2799 = vmatprep.subr.mxu0 0.0
        %2800 = vmatpush2.xpose.msra.mxu0 0.0
        %2801 = vmatprep.subr.mxu0 0.0
        %2802 = vmatpush2.xpose.msra.mxu0 0.0
        %2803 = vmatprep.subr.mxu0 0.0
        %2804 = vmatpush2.xpose.msra.mxu0 0.0
        %2805 = vmatprep.subr.mxu0 0.0
        %2806 = vmatpush2.xpose.msra.mxu0 0.0
        %2807 = vmatprep.subr.mxu0 0.0
        %2808 = vmatpush2.xpose.msra.mxu0 0.0
        %2809 = vmatprep.subr.mxu0 0.0
        %2810 = vmatpush2.xpose.msra.mxu0 0.0
        %2811 = vmatprep.subr.mxu0 0.0
        %2812 = vmatpush2.xpose.msra.mxu0 0.0
        %2813 = vmatprep.subr.mxu0 0.0
        %2814 = vmatpush2.xpose.msra.mxu0 0.0
        %2815 = vmatprep.subr.mxu0 0.0
        %2816 = vmatpush2.xpose.msra.mxu0 0.0
        %2817 = vmatprep.subr.mxu0 0.0
        %2818 = vmatpush2.xpose.msra.mxu0 0.0
        %2819 = vmatprep.subr.mxu0 0.0
        %2820 = vmatpush2.xpose.msra.mxu0 0.0
        %2821 = vmatprep.subr.mxu0 0.0
        %2822 = vmatpush2.xpose.msra.mxu0 0.0
        %2823 = vmatprep.subr.mxu0 0.0
        %2824 = vmatpush2.xpose.msra.mxu0 0.0
        %2825 = vmatprep.subr.mxu0 0.0
        %2826 = vmatpush2.xpose.msra.mxu0 0.0
        %2827 = vmatprep.subr.mxu0 0.0
        %2828 = vmatpush2.xpose.msra.mxu0 0.0
        %2829 = vmatprep.subr.mxu0 0.0
        %2830 = vmatpush2.xpose.msra.mxu0 0.0
        %2831 = vmatprep.mubr.f32.mxu0 0.0
        %2832 = vmatmul.mubr.f32.gmra.mxu0 %v2763
        %v2833 = vpop.f32.mrf.mxu0
        %v2834 = vadd.f32 0.0, %v2833
        %v2835 = vpop.f32.mrf.mxu0
        %2836 = vdwg.mxu0
        %2837 = vrot.lane.b32.xlu0 %v316, 104
        %v2838 = vpop.permute.xlu0 %2837
        %2839 = vrot.lane.b32.xlu0 %v316, 72
        %v2840 = vpop.permute.xlu0 %2839
        %v2841 = vsel %vm322, %v2838, 0
        %v2843 = vsel %vm322, %v2840, 0
        %2845 = vmatprep.subr.mxu0 0.0
        %2846 = vmatpush1.xpose.msra.mxu0 0.0
        %2847 = vmatprep.subr.mxu0 0.0
        %2848 = vmatpush1.xpose.msra.mxu0 0.0
        %2849 = vmatprep.subr.mxu0 0.0
        %2850 = vmatpush1.xpose.msra.mxu0 0.0
        %2851 = vmatprep.subr.mxu0 0.0
        %2852 = vmatpush1.xpose.msra.mxu0 0.0
        %2853 = vmatprep.subr.mxu0 0.0
        %2854 = vmatpush1.xpose.msra.mxu0 0.0
        %2855 = vmatprep.subr.mxu0 0.0
        %2856 = vmatpush1.xpose.msra.mxu0 0.0
        %2857 = vmatprep.subr.mxu0 0.0
        %2858 = vmatpush1.xpose.msra.mxu0 0.0
        %2859 = vmatprep.subr.mxu0 0.0
        %2860 = vmatpush1.xpose.msra.mxu0 0.0
        %2861 = vmatprep.subr.mxu0 0.0
        %2862 = vmatpush1.xpose.msra.mxu0 0.0
        %2863 = vmatprep.subr.mxu0 0.0
        %2864 = vmatpush1.xpose.msra.mxu0 0.0
        %2865 = vmatprep.subr.mxu0 0.0
        %2866 = vmatpush1.xpose.msra.mxu0 0.0
        %2867 = vmatprep.subr.mxu0 0.0
        %2868 = vmatpush1.xpose.msra.mxu0 0.0
        %2869 = vmatprep.subr.mxu0 0.0
        %2870 = vmatpush1.xpose.msra.mxu0 0.0
        %2871 = vmatprep.subr.mxu0 0.0
        %2872 = vmatpush1.xpose.msra.mxu0 0.0
        %2873 = vmatprep.subr.mxu0 0.0
        %2874 = vmatpush1.xpose.msra.mxu0 0.0
        %2875 = vmatprep.subr.mxu0 0.0
        %2876 = vmatpush1.xpose.msra.mxu0 %v2843
        %2877 = vmatprep.subr.mxu0 0.0
        %2878 = vmatpush2.xpose.msra.mxu0 0.0
        %2879 = vmatprep.subr.mxu0 0.0
        %2880 = vmatpush2.xpose.msra.mxu0 0.0
        %2881 = vmatprep.subr.mxu0 0.0
        %2882 = vmatpush2.xpose.msra.mxu0 0.0
        %2883 = vmatprep.subr.mxu0 0.0
        %2884 = vmatpush2.xpose.msra.mxu0 0.0
        %2885 = vmatprep.subr.mxu0 0.0
        %2886 = vmatpush2.xpose.msra.mxu0 0.0
        %2887 = vmatprep.subr.mxu0 0.0
        %2888 = vmatpush2.xpose.msra.mxu0 0.0
        %2889 = vmatprep.subr.mxu0 0.0
        %2890 = vmatpush2.xpose.msra.mxu0 0.0
        %2891 = vmatprep.subr.mxu0 0.0
        %2892 = vmatpush2.xpose.msra.mxu0 0.0
        %2893 = vmatprep.subr.mxu0 0.0
        %2894 = vmatpush2.xpose.msra.mxu0 0.0
        %2895 = vmatprep.subr.mxu0 0.0
        %2896 = vmatpush2.xpose.msra.mxu0 0.0
        %2897 = vmatprep.subr.mxu0 0.0
        %2898 = vmatpush2.xpose.msra.mxu0 0.0
        %2899 = vmatprep.subr.mxu0 0.0
        %2900 = vmatpush2.xpose.msra.mxu0 0.0
        %2901 = vmatprep.subr.mxu0 0.0
        %2902 = vmatpush2.xpose.msra.mxu0 0.0
        %2903 = vmatprep.subr.mxu0 0.0
        %2904 = vmatpush2.xpose.msra.mxu0 0.0
        %2905 = vmatprep.subr.mxu0 0.0
        %2906 = vmatpush2.xpose.msra.mxu0 0.0
        %2907 = vmatprep.subr.mxu0 0.0
        %2908 = vmatpush2.xpose.msra.mxu0 0.0
        %2909 = vmatprep.mubr.f32.mxu0 0.0
        %2910 = vmatmul.mubr.f32.gmra.mxu0 %v2841
        %v2911 = vpop.f32.mrf.mxu0
        %v2912 = vadd.f32 0.0, %v2911
        %v2913 = vpop.f32.mrf.mxu0
        %2914 = vdwg.mxu0
        %v2915 = vsel %vm322, %v2678, -inf
        %2916 = vmax.xlane.f32.xlu0 %v2915
        %v2917 = vpop.xlane.xlu0 %2916
        %v2918 = vsel %vm322, %v2756, -inf
        %2919 = vmax.xlane.f32.xlu0 %v2918
        %v2920 = vpop.xlane.xlu0 %2919
        %v2921 = vsel %vm322, %v2834, -inf
        %2922 = vmax.xlane.f32.xlu0 %v2921
        %v2923 = vpop.xlane.xlu0 %2922
        %v2924 = vsel %vm322, %v2912, -inf
        %2925 = vmax.xlane.f32.xlu0 %v2924
        %v2926 = vpop.xlane.xlu0 %2925
        %v2927 = vsub.f32 %v2678, %v2917
        %v2928 = vsub.f32 %v2756, %v2920
        %v2929 = vsub.f32 %v2834, %v2923
        %v2930 = vsub.f32 %v2912, %v2926
        %v2931 = vmul.f32 %v2927, 1.442695
        %v2932 = vpow.pop %v2931
        %v2933 = vmul.f32 %v2928, 1.442695
        %v2934 = vpow.pop %v2933
        %v2935 = vmul.f32 %v2929, 1.442695
        %v2936 = vpow.pop %v2935
        %v2937 = vmul.f32 %v2930, 1.442695
        %v2938 = vpow.pop %v2937
        %v2939 = vsel %vm322, %v2932, 0.0
        %2940 = vadd.xlane.f32.xlu0 %v2939
        %v2941 = vpop.xlane.xlu0 %2940
        %v2942 = vsel %vm322, %v2934, 0.0
        %2943 = vadd.xlane.f32.xlu0 %v2942
        %v2944 = vpop.xlane.xlu0 %2943
        %v2945 = vsel %vm322, %v2936, 0.0
        %2946 = vadd.xlane.f32.xlu0 %v2945
        %v2947 = vpop.xlane.xlu0 %2946
        %v2948 = vsel %vm322, %v2938, 0.0
        %2949 = vadd.xlane.f32.xlu0 %v2948
        %v2950 = vpop.xlane.xlu0 %2949
        %v2951 = vrcp.pop %v2941
        %v2952 = vmul.f32 %v2932, %v2951
        %v2953 = vrcp.pop %v2944
        %v2954 = vmul.f32 %v2934, %v2953
        %v2955 = vrcp.pop %v2947
        %v2956 = vmul.f32 %v2936, %v2955
        %v2957 = vrcp.pop %v2950
        %v2958 = vmul.f32 %v2938, %v2957
        %2959 = vrot.lane.b32.xlu0 %v301, 40
        %v2960 = vpop.permute.xlu0 %2959
        %v2963 = vsel %vm322, %v2952, 0
        %2965 = vmatprep.subr.mxu0 0.0
        %2966 = vmatpush1.msra.mxu0 0.0
        %2967 = vmatprep.subr.mxu0 0.0
        %2968 = vmatpush1.msra.mxu0 0.0
        %2969 = vmatprep.subr.mxu0 0.0
        %2970 = vmatpush1.msra.mxu0 0.0
        %2971 = vmatprep.subr.mxu0 0.0
        %2972 = vmatpush1.msra.mxu0 0.0
        %2973 = vmatprep.subr.mxu0 0.0
        %2974 = vmatpush1.msra.mxu0 0.0
        %2975 = vmatprep.subr.mxu0 0.0
        %2976 = vmatpush1.msra.mxu0 0.0
        %2977 = vmatprep.subr.mxu0 0.0
        %2978 = vmatpush1.msra.mxu0 0.0
        %2979 = vmatprep.subr.mxu0 0.0
        %2980 = vmatpush1.msra.mxu0 0.0
        %2981 = vmatprep.subr.mxu0 0.0
        %2982 = vmatpush1.msra.mxu0 0.0
        %2983 = vmatprep.subr.mxu0 0.0
        %2984 = vmatpush1.msra.mxu0 0.0
        %2985 = vmatprep.subr.mxu0 0.0
        %2986 = vmatpush1.msra.mxu0 0.0
        %2987 = vmatprep.subr.mxu0 0.0
        %2988 = vmatpush1.msra.mxu0 0.0
        %2989 = vmatprep.subr.mxu0 0.0
        %2990 = vmatpush1.msra.mxu0 0.0
        %2991 = vmatprep.subr.mxu0 0.0
        %2992 = vmatpush1.msra.mxu0 0.0
        %2993 = vmatprep.subr.mxu0 0.0
        %2994 = vmatpush1.msra.mxu0 0.0
        %2995 = vmatprep.subr.mxu0 0.0
        %2996 = vmatpush1.msra.mxu0 %v2960
        %2997 = vmatprep.subr.mxu0 0.0
        %2998 = vmatpush2.msra.mxu0 0.0
        %2999 = vmatprep.subr.mxu0 0.0
        %3000 = vmatpush2.msra.mxu0 0.0
        %3001 = vmatprep.subr.mxu0 0.0
        %3002 = vmatpush2.msra.mxu0 0.0
        %3003 = vmatprep.subr.mxu0 0.0
        %3004 = vmatpush2.msra.mxu0 0.0
        %3005 = vmatprep.subr.mxu0 0.0
        %3006 = vmatpush2.msra.mxu0 0.0
        %3007 = vmatprep.subr.mxu0 0.0
        %3008 = vmatpush2.msra.mxu0 0.0
        %3009 = vmatprep.subr.mxu0 0.0
        %3010 = vmatpush2.msra.mxu0 0.0
        %3011 = vmatprep.subr.mxu0 0.0
        %3012 = vmatpush2.msra.mxu0 0.0
        %3013 = vmatprep.subr.mxu0 0.0
        %3014 = vmatpush2.msra.mxu0 0.0
        %3015 = vmatprep.subr.mxu0 0.0
        %3016 = vmatpush2.msra.mxu0 0.0
        %3017 = vmatprep.subr.mxu0 0.0
        %3018 = vmatpush2.msra.mxu0 0.0
        %3019 = vmatprep.subr.mxu0 0.0
        %3020 = vmatpush2.msra.mxu0 0.0
        %3021 = vmatprep.subr.mxu0 0.0
        %3022 = vmatpush2.msra.mxu0 0.0
        %3023 = vmatprep.subr.mxu0 0.0
        %3024 = vmatpush2.msra.mxu0 0.0
        %3025 = vmatprep.subr.mxu0 0.0
        %3026 = vmatpush2.msra.mxu0 0.0
        %3027 = vmatprep.subr.mxu0 0.0
        %3028 = vmatpush2.msra.mxu0 0.0
        %3029 = vmatprep.mubr.f32.mxu0 0.0
        %3030 = vmatmul.mubr.f32.gmra.mxu0 %v2963
        %v3031 = vpop.f32.mrf.mxu0
        %v3032 = vadd.f32 0.0, %v3031
        %v3033 = vpop.f32.mrf.mxu0
        %3034 = vdwg.mxu0
        %3035 = vrot.lane.b32.xlu0 %v306, 40
        %v3036 = vpop.permute.xlu0 %3035
        %v3039 = vsel %vm322, %v2954, 0
        %3041 = vmatprep.subr.mxu0 0.0
        %3042 = vmatpush1.msra.mxu0 0.0
        %3043 = vmatprep.subr.mxu0 0.0
        %3044 = vmatpush1.msra.mxu0 0.0
        %3045 = vmatprep.subr.mxu0 0.0
        %3046 = vmatpush1.msra.mxu0 0.0
        %3047 = vmatprep.subr.mxu0 0.0
        %3048 = vmatpush1.msra.mxu0 0.0
        %3049 = vmatprep.subr.mxu0 0.0
        %3050 = vmatpush1.msra.mxu0 0.0
        %3051 = vmatprep.subr.mxu0 0.0
        %3052 = vmatpush1.msra.mxu0 0.0
        %3053 = vmatprep.subr.mxu0 0.0
        %3054 = vmatpush1.msra.mxu0 0.0
        %3055 = vmatprep.subr.mxu0 0.0
        %3056 = vmatpush1.msra.mxu0 0.0
        %3057 = vmatprep.subr.mxu0 0.0
        %3058 = vmatpush1.msra.mxu0 0.0
        %3059 = vmatprep.subr.mxu0 0.0
        %3060 = vmatpush1.msra.mxu0 0.0
        %3061 = vmatprep.subr.mxu0 0.0
        %3062 = vmatpush1.msra.mxu0 0.0
        %3063 = vmatprep.subr.mxu0 0.0
        %3064 = vmatpush1.msra.mxu0 0.0
        %3065 = vmatprep.subr.mxu0 0.0
        %3066 = vmatpush1.msra.mxu0 0.0
        %3067 = vmatprep.subr.mxu0 0.0
        %3068 = vmatpush1.msra.mxu0 0.0
        %3069 = vmatprep.subr.mxu0 0.0
        %3070 = vmatpush1.msra.mxu0 0.0
        %3071 = vmatprep.subr.mxu0 0.0
        %3072 = vmatpush1.msra.mxu0 %v3036
        %3073 = vmatprep.subr.mxu0 0.0
        %3074 = vmatpush2.msra.mxu0 0.0
        %3075 = vmatprep.subr.mxu0 0.0
        %3076 = vmatpush2.msra.mxu0 0.0
        %3077 = vmatprep.subr.mxu0 0.0
        %3078 = vmatpush2.msra.mxu0 0.0
        %3079 = vmatprep.subr.mxu0 0.0
        %3080 = vmatpush2.msra.mxu0 0.0
        %3081 = vmatprep.subr.mxu0 0.0
        %3082 = vmatpush2.msra.mxu0 0.0
        %3083 = vmatprep.subr.mxu0 0.0
        %3084 = vmatpush2.msra.mxu0 0.0
        %3085 = vmatprep.subr.mxu0 0.0
        %3086 = vmatpush2.msra.mxu0 0.0
        %3087 = vmatprep.subr.mxu0 0.0
        %3088 = vmatpush2.msra.mxu0 0.0
        %3089 = vmatprep.subr.mxu0 0.0
        %3090 = vmatpush2.msra.mxu0 0.0
        %3091 = vmatprep.subr.mxu0 0.0
        %3092 = vmatpush2.msra.mxu0 0.0
        %3093 = vmatprep.subr.mxu0 0.0
        %3094 = vmatpush2.msra.mxu0 0.0
        %3095 = vmatprep.subr.mxu0 0.0
        %3096 = vmatpush2.msra.mxu0 0.0
        %3097 = vmatprep.subr.mxu0 0.0
        %3098 = vmatpush2.msra.mxu0 0.0
        %3099 = vmatprep.subr.mxu0 0.0
        %3100 = vmatpush2.msra.mxu0 0.0
        %3101 = vmatprep.subr.mxu0 0.0
        %3102 = vmatpush2.msra.mxu0 0.0
        %3103 = vmatprep.subr.mxu0 0.0
        %3104 = vmatpush2.msra.mxu0 0.0
        %3105 = vmatprep.mubr.f32.mxu0 0.0
        %3106 = vmatmul.mubr.f32.gmra.mxu0 %v3039
        %v3107 = vpop.f32.mrf.mxu0
        %v3108 = vadd.f32 0.0, %v3107
        %v3109 = vpop.f32.mrf.mxu0
        %3110 = vdwg.mxu0
        %3111 = vrot.lane.b32.xlu0 %v311, 40
        %v3112 = vpop.permute.xlu0 %3111
        %v3115 = vsel %vm322, %v2956, 0
        %3117 = vmatprep.subr.mxu0 0.0
        %3118 = vmatpush1.msra.mxu0 0.0
        %3119 = vmatprep.subr.mxu0 0.0
        %3120 = vmatpush1.msra.mxu0 0.0
        %3121 = vmatprep.subr.mxu0 0.0
        %3122 = vmatpush1.msra.mxu0 0.0
        %3123 = vmatprep.subr.mxu0 0.0
        %3124 = vmatpush1.msra.mxu0 0.0
        %3125 = vmatprep.subr.mxu0 0.0
        %3126 = vmatpush1.msra.mxu0 0.0
        %3127 = vmatprep.subr.mxu0 0.0
        %3128 = vmatpush1.msra.mxu0 0.0
        %3129 = vmatprep.subr.mxu0 0.0
        %3130 = vmatpush1.msra.mxu0 0.0
        %3131 = vmatprep.subr.mxu0 0.0
        %3132 = vmatpush1.msra.mxu0 0.0
        %3133 = vmatprep.subr.mxu0 0.0
        %3134 = vmatpush1.msra.mxu0 0.0
        %3135 = vmatprep.subr.mxu0 0.0
        %3136 = vmatpush1.msra.mxu0 0.0
        %3137 = vmatprep.subr.mxu0 0.0
        %3138 = vmatpush1.msra.mxu0 0.0
        %3139 = vmatprep.subr.mxu0 0.0
        %3140 = vmatpush1.msra.mxu0 0.0
        %3141 = vmatprep.subr.mxu0 0.0
        %3142 = vmatpush1.msra.mxu0 0.0
        %3143 = vmatprep.subr.mxu0 0.0
        %3144 = vmatpush1.msra.mxu0 0.0
        %3145 = vmatprep.subr.mxu0 0.0
        %3146 = vmatpush1.msra.mxu0 0.0
        %3147 = vmatprep.subr.mxu0 0.0
        %3148 = vmatpush1.msra.mxu0 %v3112
        %3149 = vmatprep.subr.mxu0 0.0
        %3150 = vmatpush2.msra.mxu0 0.0
        %3151 = vmatprep.subr.mxu0 0.0
        %3152 = vmatpush2.msra.mxu0 0.0
        %3153 = vmatprep.subr.mxu0 0.0
        %3154 = vmatpush2.msra.mxu0 0.0
        %3155 = vmatprep.subr.mxu0 0.0
        %3156 = vmatpush2.msra.mxu0 0.0
        %3157 = vmatprep.subr.mxu0 0.0
        %3158 = vmatpush2.msra.mxu0 0.0
        %3159 = vmatprep.subr.mxu0 0.0
        %3160 = vmatpush2.msra.mxu0 0.0
        %3161 = vmatprep.subr.mxu0 0.0
        %3162 = vmatpush2.msra.mxu0 0.0
        %3163 = vmatprep.subr.mxu0 0.0
        %3164 = vmatpush2.msra.mxu0 0.0
        %3165 = vmatprep.subr.mxu0 0.0
        %3166 = vmatpush2.msra.mxu0 0.0
        %3167 = vmatprep.subr.mxu0 0.0
        %3168 = vmatpush2.msra.mxu0 0.0
        %3169 = vmatprep.subr.mxu0 0.0
        %3170 = vmatpush2.msra.mxu0 0.0
        %3171 = vmatprep.subr.mxu0 0.0
        %3172 = vmatpush2.msra.mxu0 0.0
        %3173 = vmatprep.subr.mxu0 0.0
        %3174 = vmatpush2.msra.mxu0 0.0
        %3175 = vmatprep.subr.mxu0 0.0
        %3176 = vmatpush2.msra.mxu0 0.0
        %3177 = vmatprep.subr.mxu0 0.0
        %3178 = vmatpush2.msra.mxu0 0.0
        %3179 = vmatprep.subr.mxu0 0.0
        %3180 = vmatpush2.msra.mxu0 0.0
        %3181 = vmatprep.mubr.f32.mxu0 0.0
        %3182 = vmatmul.mubr.f32.gmra.mxu0 %v3115
        %v3183 = vpop.f32.mrf.mxu0
        %v3184 = vadd.f32 0.0, %v3183
        %v3185 = vpop.f32.mrf.mxu0
        %3186 = vdwg.mxu0
        %3187 = vrot.lane.b32.xlu0 %v316, 40
        %v3188 = vpop.permute.xlu0 %3187
        %v3191 = vsel %vm322, %v2958, 0
        %3193 = vmatprep.subr.mxu0 0.0
        %3194 = vmatpush1.msra.mxu0 0.0
        %3195 = vmatprep.subr.mxu0 0.0
        %3196 = vmatpush1.msra.mxu0 0.0
        %3197 = vmatprep.subr.mxu0 0.0
        %3198 = vmatpush1.msra.mxu0 0.0
        %3199 = vmatprep.subr.mxu0 0.0
        %3200 = vmatpush1.msra.mxu0 0.0
        %3201 = vmatprep.subr.mxu0 0.0
        %3202 = vmatpush1.msra.mxu0 0.0
        %3203 = vmatprep.subr.mxu0 0.0
        %3204 = vmatpush1.msra.mxu0 0.0
        %3205 = vmatprep.subr.mxu0 0.0
        %3206 = vmatpush1.msra.mxu0 0.0
        %3207 = vmatprep.subr.mxu0 0.0
        %3208 = vmatpush1.msra.mxu0 0.0
        %3209 = vmatprep.subr.mxu0 0.0
        %3210 = vmatpush1.msra.mxu0 0.0
        %3211 = vmatprep.subr.mxu0 0.0
        %3212 = vmatpush1.msra.mxu0 0.0
        %3213 = vmatprep.subr.mxu0 0.0
        %3214 = vmatpush1.msra.mxu0 0.0
        %3215 = vmatprep.subr.mxu0 0.0
        %3216 = vmatpush1.msra.mxu0 0.0
        %3217 = vmatprep.subr.mxu0 0.0
        %3218 = vmatpush1.msra.mxu0 0.0
        %3219 = vmatprep.subr.mxu0 0.0
        %3220 = vmatpush1.msra.mxu0 0.0
        %3221 = vmatprep.subr.mxu0 0.0
        %3222 = vmatpush1.msra.mxu0 0.0
        %3223 = vmatprep.subr.mxu0 0.0
        %3224 = vmatpush1.msra.mxu0 %v3188
        %3225 = vmatprep.subr.mxu0 0.0
        %3226 = vmatpush2.msra.mxu0 0.0
        %3227 = vmatprep.subr.mxu0 0.0
        %3228 = vmatpush2.msra.mxu0 0.0
        %3229 = vmatprep.subr.mxu0 0.0
        %3230 = vmatpush2.msra.mxu0 0.0
        %3231 = vmatprep.subr.mxu0 0.0
        %3232 = vmatpush2.msra.mxu0 0.0
        %3233 = vmatprep.subr.mxu0 0.0
        %3234 = vmatpush2.msra.mxu0 0.0
        %3235 = vmatprep.subr.mxu0 0.0
        %3236 = vmatpush2.msra.mxu0 0.0
        %3237 = vmatprep.subr.mxu0 0.0
        %3238 = vmatpush2.msra.mxu0 0.0
        %3239 = vmatprep.subr.mxu0 0.0
        %3240 = vmatpush2.msra.mxu0 0.0
        %3241 = vmatprep.subr.mxu0 0.0
        %3242 = vmatpush2.msra.mxu0 0.0
        %3243 = vmatprep.subr.mxu0 0.0
        %3244 = vmatpush2.msra.mxu0 0.0
        %3245 = vmatprep.subr.mxu0 0.0
        %3246 = vmatpush2.msra.mxu0 0.0
        %3247 = vmatprep.subr.mxu0 0.0
        %3248 = vmatpush2.msra.mxu0 0.0
        %3249 = vmatprep.subr.mxu0 0.0
        %3250 = vmatpush2.msra.mxu0 0.0
        %3251 = vmatprep.subr.mxu0 0.0
        %3252 = vmatpush2.msra.mxu0 0.0
        %3253 = vmatprep.subr.mxu0 0.0
        %3254 = vmatpush2.msra.mxu0 0.0
        %3255 = vmatprep.subr.mxu0 0.0
        %3256 = vmatpush2.msra.mxu0 0.0
        %3257 = vmatprep.mubr.f32.mxu0 0.0
        %3258 = vmatmul.mubr.f32.gmra.mxu0 %v3191
        %v3259 = vpop.f32.mrf.mxu0
        %v3260 = vadd.f32 0.0, %v3259
        %v3261 = vpop.f32.mrf.mxu0
        %3262 = vdwg.mxu0
        %3264 = vrot.lane.b32.xlu0 %v213, 32
        %v3265 = vpop.permute.xlu0 %3264
        %v3268 = vsel %vm322, %v3032, 0
        %v3271 = vsel %vm322, %v3108, 0
        %v3274 = vsel %vm322, %v3184, 0
        %v3277 = vsel %vm322, %v3260, 0
        %3279 = vmatprep.subr.mxu0 0.0
        %3280 = vmatpush1.msra.mxu0 0.0
        %3281 = vmatprep.subr.mxu0 0.0
        %3282 = vmatpush1.msra.mxu0 0.0
        %3283 = vmatprep.subr.mxu0 0.0
        %3284 = vmatpush1.msra.mxu0 0.0
        %3285 = vmatprep.subr.mxu0 0.0
        %3286 = vmatpush1.msra.mxu0 0.0
        %3287 = vmatprep.subr.mxu0 0.0
        %3288 = vmatpush1.msra.mxu0 0.0
        %3289 = vmatprep.subr.mxu0 0.0
        %3290 = vmatpush1.msra.mxu0 0.0
        %3291 = vmatprep.subr.mxu0 0.0
        %3292 = vmatpush1.msra.mxu0 0.0
        %3293 = vmatprep.subr.mxu0 0.0
        %3294 = vmatpush1.msra.mxu0 0.0
        %3295 = vmatprep.subr.mxu0 0.0
        %3296 = vmatpush1.msra.mxu0 0.0
        %3297 = vmatprep.subr.mxu0 0.0
        %3298 = vmatpush1.msra.mxu0 0.0
        %3299 = vmatprep.subr.mxu0 0.0
        %3300 = vmatpush1.msra.mxu0 0.0
        %3301 = vmatprep.subr.mxu0 0.0
        %3302 = vmatpush1.msra.mxu0 0.0
        %3303 = vmatprep.subr.mxu0 0.0
        %3304 = vmatpush1.msra.mxu0 0.0
        %3305 = vmatprep.subr.mxu0 0.0
        %3306 = vmatpush1.msra.mxu0 0.0
        %3307 = vmatprep.subr.mxu0 0.0
        %3308 = vmatpush1.msra.mxu0 0.0
        %3309 = vmatprep.subr.mxu0 0.0
        %3310 = vmatpush1.msra.mxu0 %v3265
        %3311 = vmatprep.subr.mxu0 0.0
        %3312 = vmatpush2.msra.mxu0 0.0
        %3313 = vmatprep.subr.mxu0 0.0
        %3314 = vmatpush2.msra.mxu0 0.0
        %3315 = vmatprep.subr.mxu0 0.0
        %3316 = vmatpush2.msra.mxu0 0.0
        %3317 = vmatprep.subr.mxu0 0.0
        %3318 = vmatpush2.msra.mxu0 0.0
        %3319 = vmatprep.subr.mxu0 0.0
        %3320 = vmatpush2.msra.mxu0 0.0
        %3321 = vmatprep.subr.mxu0 0.0
        %3322 = vmatpush2.msra.mxu0 0.0
        %3323 = vmatprep.subr.mxu0 0.0
        %3324 = vmatpush2.msra.mxu0 0.0
        %3325 = vmatprep.subr.mxu0 0.0
        %3326 = vmatpush2.msra.mxu0 0.0
        %3327 = vmatprep.subr.mxu0 0.0
        %3328 = vmatpush2.msra.mxu0 0.0
        %3329 = vmatprep.subr.mxu0 0.0
        %3330 = vmatpush2.msra.mxu0 0.0
        %3331 = vmatprep.subr.mxu0 0.0
        %3332 = vmatpush2.msra.mxu0 0.0
        %3333 = vmatprep.subr.mxu0 0.0
        %3334 = vmatpush2.msra.mxu0 0.0
        %3335 = vmatprep.subr.mxu0 0.0
        %3336 = vmatpush2.msra.mxu0 0.0
        %3337 = vmatprep.subr.mxu0 0.0
        %3338 = vmatpush2.msra.mxu0 0.0
        %3339 = vmatprep.subr.mxu0 0.0
        %3340 = vmatpush2.msra.mxu0 0.0
        %3341 = vmatprep.subr.mxu0 0.0
        %3342 = vmatpush2.msra.mxu0 0.0
        %3343 = vmatprep.mubr.f32.mxu0 0.0
        %3344 = vmatmul.mubr.f32.gmra.mxu0 %v3268
        %v3345 = vpop.f32.mrf.mxu0
        %v3346 = vadd.f32 0.0, %v3345
        %v3347 = vpop.f32.mrf.mxu0
        %3348 = vmatprep.mubr.f32.mxu0 0.0
        %3349 = vmatmul.mubr.f32.gmra.mxu0 %v3271
        %v3350 = vpop.f32.mrf.mxu0
        %v3351 = vadd.f32 0.0, %v3350
        %v3352 = vpop.f32.mrf.mxu0
        %3353 = vmatprep.mubr.f32.mxu0 0.0
        %3354 = vmatmul.mubr.f32.gmra.mxu0 %v3274
        %v3355 = vpop.f32.mrf.mxu0
        %v3356 = vadd.f32 0.0, %v3355
        %v3357 = vpop.f32.mrf.mxu0
        %3358 = vmatprep.mubr.f32.mxu0 0.0
        %3359 = vmatmul.mubr.f32.gmra.mxu0 %v3277
        %v3360 = vpop.f32.mrf.mxu0
        %v3361 = vadd.f32 0.0, %v3360
        %v3362 = vpop.f32.mrf.mxu0
        %3363 = vdwg.mxu0
        %v3364 = vadd.f32 %v2599, %v3346
        %v3365 = vadd.f32 %v2600, %v3351
        %v3366 = vadd.f32 %v2601, %v3356
        %v3367 = vadd.f32 %v2602, %v3361
        %3368 = vrot.lane.b32.xlu0 %v219, 32
        %v3369 = vpop.permute.xlu0 %3368
        %v3371 = vadd.f32 %v3364, %v3369
        %v3372 = vadd.f32 %v3365, %v3369
        %v3373 = vadd.f32 %v3366, %v3369
        %v3374 = vadd.f32 %v3367, %v3369
        %3375 = vst.msk [vmem:[%s203] sm:$0xff] %vm221, %v3371
        %3376 = vst.msk [vmem:[%s203 + $0x8] sm:$0xff] %vm221, %v3372
        %3377 = vst.msk [vmem:[%s203 + $0x10] sm:$0xff] %vm221, %v3373
        %3378 = vst.msk [vmem:[%s203 + $0x18] sm:$0xff] %vm221, %v3374
        %s3379 = sand.u32 %s97, 1
        %s3380 = scalar_lea.sflag [#allocation4], %s3379
        %s3381 = sand.u32 %s97, 1
        %s3382 = smul.addr %s3381, 32
        %s3383 = scalar_lea.vmem [#allocation7], %s3382
        // Predicated region
        $region41: #{tpu_custom_call.1} parent=31 // pred_check
          %p3384 = pneg %p107
        $region42: #{tpu_custom_call.1} parent=31 // pred_check_branch
          %3386 = sbr.rel (%p3384) target = $region44
        $region43: #{tpu_custom_call.1} parent=31 // pred_region
          %s3387 = smul.u32 4, %s21
          %s3389 = ssub.s32 512, 512
          %3390 = vsyncadd %s3380, %s3389
          %s3391 = smul.addr %s3387, 128
          %s3392 = scalar_lea.hbm %s3, %s3391
          %s3393 = sshll.u32 %s3383, 4
          %s3394 = int_to_ptr.vmem [resolvable:$true] %s3393
          %3399 = dma.vmem_to_hbm [thread:$0]  %s3394, 512, %s3392, %s3380, 128, 128, 8
        $region44: #{tpu_custom_call.1} parent=31 // pred_fallthru
          _
      $region32: #{tpu_custom_call.1} parent=5 // pred_fallthru
        _
      %p3400 = scmp.le.s32.totalorder 2, %s16
      // Predicated region
      $region45: #{tpu_custom_call.1} parent=5 // pred_check
        %p3401 = pneg %p3400
      $region46: #{tpu_custom_call.1} parent=5 // pred_check_branch
        %3403 = sbr.rel (%p3401) target = $region48
      $region47: #{tpu_custom_call.1} parent=5 // pred_region
        %s3404 = ssub.s32 %s16, 2
        // Predicated region
        $region49: #{tpu_custom_call.1} parent=47 // pred_check
          %p3405 = pneg %p113
        $region50: #{tpu_custom_call.1} parent=47 // pred_check_branch
          %3407 = sbr.rel (%p3405) target = $region52
        $region51: #{tpu_custom_call.1} parent=47 // pred_region
          %s3408 = sand.u32 %s98, 1
          %s3409 = scalar_lea.sflag [#allocation4], %s3408
          %s3410 = sand.u32 %s98, 1
          %s3411 = smul.addr %s3410, 32
          %s3412 = scalar_lea.vmem [#allocation7], %s3411
          %3413 = dma.done %s3409, 512
        $region52: #{tpu_custom_call.1} parent=47 // pred_fallthru
          _
      $region48: #{tpu_custom_call.1} parent=5 // pred_fallthru
        _
    $region6: #{tpu_custom_call.1} parent=1 // loop_footer
      %s20 = sadd.s32 1, %s16
    $region7: #{tpu_custom_call.1} parent=1 // loop_footer_branch
      %15 = sbr.rel target = $region3
    $region8: #{tpu_custom_call.1} parent=1 // loop_exit
      _
    %3414 = vsyncpa [#allocation3], 1
    %s3415 = scalar_lea.sflag [#allocation3], 1
    %3416 = vsyncpa %s3415, 1
    %3417 = vsyncpa [#allocation6], 1
    %3418 = vsyncpa [#allocation4], 1
    %s3419 = scalar_lea.sflag [#allocation4], 1
    %3420 = vsyncpa %s3419, 1

</llo_original>
